<compile_context>
chip_gen: v7x
topology: tpu7x:2x2x1
jax: 0.10.0
libtpu: 0.0.40
codegen_flags: <defaults>
</compile_context>

<pallas_src>
import jax
import jax.numpy as jnp
from jax import lax
from jax.experimental import pallas as pl
from jax.experimental.pallas import tpu as pltpu

KH = KW = 3
NUM_VARIANTS = 8
_TAPS = tuple((dh, dw) for dh in (-1, 0, 1) for dw in (-1, 0, 1))  # 9 taps


# ----------------------------------------------------------------------------
# Fused ensemble conv kernel
# ----------------------------------------------------------------------------
def _make_ensemble_conv_kernel(H, W, Cin, Cout):
    """Fused 8-variant 3x3-conv ensemble; one grid step = (batch b, variant v)."""
    HW = H * W
    offsets = tuple(dh * W + dw for (dh, dw) in _TAPS)
    wsz = Cout * Cin * KH * KW  # weights per variant

    def kernel(x_ref, mask_ref, w_ref, b_ref, o_ref, acc_ref):
        v = pl.program_id(1)                    # ensemble-variant index

        x = x_ref[0].astype(jnp.float32)        # (Cin, H*W)  lane-dense
        masks = mask_ref[...]                   # (9,  H*W)   0/1 f32

        # Hoist the 9 shifted+masked slabs out of the channel loops:
        # one XLU roll + one VPU mul each, reused by every output channel.
        slabs = []
        for t, d in enumerate(offsets):
            shifted = x if d == 0 else pltpu.roll(x, (-d) % HW, 1)
            slabs.append(shifted * masks[t:t + 1, :])

        # Per-variant weights in a flat SMEM table, laid out as
        #   [v, co, ci, kh, kw] -> v*wsz + (co*Cin + ci)*9 + (kh*3 + kw)
        wbase = v * wsz
        rows = []
        for co in range(Cout):
            r = jnp.full((1, HW), b_ref[co], jnp.float32)
            for t in range(len(offsets)):
                slab = slabs[t]
                for ci in range(Cin):
                    wt = w_ref[wbase + (co * Cin + ci) * (KH * KW) + t]
                    r = r + slab[ci:ci + 1, :] * wt
            rows.append(r)
        y = jnp.concatenate(rows, axis=0)       # (Cout, H*W) for this variant

        @pl.when(v == 0)
        def _init():
            acc_ref[...] = jnp.zeros_like(acc_ref)

        acc_ref[...] += y

        @pl.when(v == NUM_VARIANTS - 1)
        def _finalize():
            o_ref[0] = (acc_ref[...] * (1.0 / NUM_VARIANTS)).astype(o_ref.dtype)

    return kernel


def _tap_masks(H, W):
    """(9, H*W) 0/1 masks: tap (dh, dw) is valid where (i+dh, j+dw) is in-bounds."""
    idx = jnp.arange(H * W, dtype=jnp.int32)
    ii, jj = idx // W, idx % W
    rows = []
    for dh, dw in _TAPS:
        ok = (ii + dh >= 0) & (ii + dh < H) & (jj + dw >= 0) & (jj + dw < W)
        rows.append(ok)
    return jnp.stack(rows, axis=0).astype(jnp.float32)


def _variant_weights(w):
    """Effective conv weights per ensemble variant: A_v^-1 o conv_w o A_v == conv_{w_v}.

    Image transforms (applied in img_list order: V, then H, then T) map to
    kernel transforms applied in REVERSE order.
    """
    fv = lambda a: a[..., :, ::-1]          # image flip(W)   -> flip kernel kw
    fh = lambda a: a[..., ::-1, :]          # image flip(H)   -> flip kernel kh
    ft = lambda a: jnp.swapaxes(a, -1, -2)  # image transpose -> transpose kernel
    return jnp.stack([
        w,                    # identity
        fv(w),                # V
        fh(w),                # H
        fv(fh(w)),            # H o V
        ft(w),                # T
        fv(ft(w)),            # T o V
        fh(ft(w)),            # T o H
        fv(fh(ft(w))),        # T o H o V
    ], axis=0)                # (8, Cout, Cin, 3, 3)


def ensemble_conv3x3(x, w, b):
    """Fused 8-variant spatial-ensemble of a 3x3 conv.

    x: (B, Cin, H, W), w: (Cout, Cin, 3, 3), b: (Cout,) -> (B, Cout, H, W)
    """
    B, Cin, H, W = x.shape
    Cout = w.shape[0]
    HW = H * W

    xf = x.reshape(B, Cin, HW)                                     # free reshape
    w_flat = _variant_weights(w).astype(jnp.float32).reshape(-1)   # (8*Cout*Cin*9,)
    bias = b.astype(jnp.float32)
    masks = _tap_masks(H, W)                                       # (9, H*W)

    kernel = _make_ensemble_conv_kernel(H, W, Cin, Cout)
    out = pl.pallas_call(
        kernel,
        out_shape=jax.ShapeDtypeStruct((B, Cout, HW), x.dtype),
        grid_spec=pltpu.PrefetchScalarGridSpec(
            num_scalar_prefetch=0,
            grid=(B, NUM_VARIANTS),
            in_specs=[
                # same image block revisited for all 8 variants (fetched once per b)
                pl.BlockSpec((1, Cin, HW), lambda bi, vi: (bi, 0, 0)),
                pl.BlockSpec((len(_TAPS), HW), lambda bi, vi: (0, 0)),
                pl.BlockSpec(memory_space=pltpu.MemorySpace.SMEM),   # weights
                pl.BlockSpec(memory_space=pltpu.MemorySpace.SMEM),   # bias
            ],
            out_specs=pl.BlockSpec((1, Cout, HW), lambda bi, vi: (bi, 0, 0)),
            scratch_shapes=[pltpu.VMEM((Cout, HW), jnp.float32)],
        ),
        compiler_params=pltpu.CompilerParams(
            dimension_semantics=("parallel", "arbitrary")),
    )(xf, masks, w_flat, bias)
    return out.reshape(B, Cout, H, W)


# ----------------------------------------------------------------------------
# Module forward (Pallas path)
# ----------------------------------------------------------------------------
def spatial_temporal_ensemble_forward(imgs, w, b, is_temporal_ensemble=False):
    """Pallas-backed forward of SpatialTemporalEnsemble (synthetic conv model)."""
    if imgs.ndim == 4 and is_temporal_ensemble:
        raise ValueError('"is_temporal_ensemble" must be False if the input is an image.')

    def run(x):
        lead = x.shape[:-3]
        C, H, W = x.shape[-3:]
        y = ensemble_conv3x3(x.reshape((-1, C, H, W)), w, b)
        return y.reshape(lead + (w.shape[0], H, W))

    outputs = run(imgs)
    if is_temporal_ensemble:
        if imgs.ndim != 5:
            raise ValueError('"is_temporal_ensemble" requires (n, t, c, h, w) inputs.')
        outputs = 0.5 * (outputs + run(imgs[:, ::-1])[:, ::-1])
    return outputs


# ----------------------------------------------------------------------------
# Pure-JAX reference that literally mirrors the PyTorch module
# ----------------------------------------------------------------------------
def _transform_ref(imgs, mode):
    single = imgs.ndim == 4
    if single:
        imgs = imgs[:, None]
    if mode == "vertical":        # PyTorch: imgs.flip(4)
        imgs = imgs[..., ::-1]
    elif mode == "horizontal":    # PyTorch: imgs.flip(3)
        imgs = imgs[..., ::-1, :]
    elif mode == "transpose":     # PyTorch: permute(0, 1, 2, 4, 3)
        imgs = jnp.swapaxes(imgs, 3, 4)
    if single:
        imgs = imgs[:, 0]
    return imgs


def _conv_model_ref(x, w, b):
    lead = x.shape[:-3]
    C, H, W = x.shape[-3:]
    y = lax.conv_general_dilated(
        x.reshape((-1, C, H, W)), w, window_strides=(1, 1),
        padding=((1, 1), (1, 1)), dimension_numbers=("NCHW", "OIHW", "NCHW"))
    y = y + b[None, :, None, None]
    return y.reshape(lead + (w.shape[0],) + y.shape[-2:])


def reference_forward(imgs, w, b, is_temporal_ensemble=False):
    def spatial(x):
        img_list = [x]
        for mode in ("vertical", "horizontal", "transpose"):
            img_list = img_list + [_transform_ref(t, mode) for t in img_list]
        out_list = [_conv_model_ref(t, w, b) for t in img_list]
        for i in range(len(out_list)):
            if i > 3:
                out_list[i] = _transform_ref(out_list[i], "transpose")
            if i % 4 > 1:
                out_list[i] = _transform_ref(out_list[i], "horizontal")
            if i % 4 % 2 == 1:
                out_list[i] = _transform_ref(out_list[i], "vertical")
        return jnp.mean(jnp.stack(out_list, axis=0), axis=0)

    outputs = spatial(imgs)
    if is_temporal_ensemble:
        outputs = 0.5 * (outputs + spatial(imgs[:, ::-1])[:, ::-1])
    return outputs


# ----------------------------------------------------------------------------
if __name__ == "__main__":
    key = jax.random.PRNGKey(0)
    k_w, k_b, k_x, k_r, k_t = jax.random.split(key, 5)

    C = 4
    w = 0.1 * jax.random.normal(k_w, (C, C, KH, KW), jnp.float32)
    b = 0.1 * jax.random.normal(k_b, (C,), jnp.float32)

    def check(out, ref, name):
        assert out.shape == ref.shape, (name, out.shape, ref.shape)
        err = float(jnp.max(jnp.abs(out - ref)))
        assert err < 1e-4, (name, err)

    # 1) image mode (n, c, h, w) -- the module default.
    imgs = jax.random.normal(k_x, (2, C, 16, 16), jnp.float32)
    out = jax.block_until_ready(spatial_temporal_ensemble_forward(imgs, w, b, False))
    ref = jax.block_until_ready(reference_forward(imgs, w, b, False))
    check(out, ref, "image")

    # 2) rectangular image (H != W): exercises the transpose variants, which
    #    the previous (input-stacking) implementation could not handle.
    imgs_r = jax.random.normal(k_r, (1, C, 8, 16), jnp.float32)
    out_r = jax.block_until_ready(spatial_temporal_ensemble_forward(imgs_r, w, b, False))
    ref_r = jax.block_until_ready(reference_forward(imgs_r, w, b, False))
    check(out_r, ref_r, "rect_image")

    # 3) video mode (n, t, c, h, w) with the temporal ensemble enabled.
    vids = jax.random.normal(k_t, (1, 2, C, 16, 16), jnp.float32)
    out_v = jax.block_until_ready(spatial_temporal_ensemble_forward(vids, w, b, True))
    ref_v = jax.block_until_ready(reference_forward(vids, w, b, True))
    check(out_v, ref_v, "video_temporal")

    print("KERNEL_OK")
</pallas_src>

<mosaic_0001>
module attributes {stable_mosaic.version = 11 : i64} {
  func.func @kernel(%arg0: i32, %arg1: i32, %arg2: memref<1x4x256xf32, #tpu.memory_space<vmem>>, %arg3: memref<9x256xf32, #tpu.memory_space<vmem>>, %arg4: memref<1152xf32, #tpu.memory_space<smem>>, %arg5: memref<4xf32, #tpu.memory_space<smem>>, %arg6: memref<1x4x256xf32, #tpu.memory_space<vmem>>, %arg7: memref<4x256xf32, #tpu.memory_space<vmem>>) attributes {dimension_semantics = [#tpu.dimension_semantics<parallel>, #tpu.dimension_semantics<arbitrary>], iteration_bounds = array<i64: 2, 8>, scalar_prefetch = 0 : i64, scratch_operands = 1 : i64, tpu.core_type = #tpu.core_type<tc>, window_params = [{transform_indices = @transform_0, window_bounds = array<i64: 1, 4, 256>}, {pipeline_mode = #tpu.pipeline_mode<synchronous>, transform_indices = @transform_1, window_bounds = array<i64: 9, 256>}, {transform_indices = @transform_2, window_bounds = array<i64: 1152>}, {transform_indices = @transform_3, window_bounds = array<i64: 4>}, {transform_indices = @transform_4, window_bounds = array<i64: 1, 4, 256>}]} {
    %c0 = arith.constant 0 : index
    %c0_0 = arith.constant 0 : index
    %c0_1 = arith.constant 0 : index
    %0 = vector.load %arg2[%c0, %c0_0, %c0_1] : memref<1x4x256xf32, #tpu.memory_space<vmem>>, vector<1x4x256xf32>
    %1 = vector.shape_cast %0 : vector<1x4x256xf32> to vector<4x256xf32>
    %c0_2 = arith.constant 0 : index
    %c0_3 = arith.constant 0 : index
    %2 = vector.load %arg3[%c0_2, %c0_3] : memref<9x256xf32, #tpu.memory_space<vmem>>, vector<9x256xf32>
    %c17_i32 = arith.constant 17 : i32
    %3 = tpu.dynamic_rotate %1 by %c17_i32 dim 1 : vector<4x256xf32>, i32 -> vector<4x256xf32>
    %4 = vector.extract_strided_slice %2 {offsets = [0, 0], sizes = [1, 256], strides = [1, 1]} : vector<9x256xf32> to vector<1x256xf32>
    %5 = vector.broadcast %4 : vector<1x256xf32> to vector<4x256xf32>
    %6 = arith.mulf %3, %5 : vector<4x256xf32>
    %c16_i32 = arith.constant 16 : i32
    %7 = tpu.dynamic_rotate %1 by %c16_i32 dim 1 : vector<4x256xf32>, i32 -> vector<4x256xf32>
    %8 = vector.extract_strided_slice %2 {offsets = [1, 0], sizes = [1, 256], strides = [1, 1]} : vector<9x256xf32> to vector<1x256xf32>
    %9 = vector.broadcast %8 : vector<1x256xf32> to vector<4x256xf32>
    %10 = arith.mulf %7, %9 : vector<4x256xf32>
    %c15_i32 = arith.constant 15 : i32
    %11 = tpu.dynamic_rotate %1 by %c15_i32 dim 1 : vector<4x256xf32>, i32 -> vector<4x256xf32>
    %12 = vector.extract_strided_slice %2 {offsets = [2, 0], sizes = [1, 256], strides = [1, 1]} : vector<9x256xf32> to vector<1x256xf32>
    %13 = vector.broadcast %12 : vector<1x256xf32> to vector<4x256xf32>
    %14 = arith.mulf %11, %13 : vector<4x256xf32>
    %c1_i32 = arith.constant 1 : i32
    %15 = tpu.dynamic_rotate %1 by %c1_i32 dim 1 : vector<4x256xf32>, i32 -> vector<4x256xf32>
    %16 = vector.extract_strided_slice %2 {offsets = [3, 0], sizes = [1, 256], strides = [1, 1]} : vector<9x256xf32> to vector<1x256xf32>
    %17 = vector.broadcast %16 : vector<1x256xf32> to vector<4x256xf32>
    %18 = arith.mulf %15, %17 : vector<4x256xf32>
    %19 = vector.extract_strided_slice %2 {offsets = [4, 0], sizes = [1, 256], strides = [1, 1]} : vector<9x256xf32> to vector<1x256xf32>
    %20 = vector.broadcast %19 : vector<1x256xf32> to vector<4x256xf32>
    %21 = arith.mulf %1, %20 : vector<4x256xf32>
    %c255_i32 = arith.constant 255 : i32
    %22 = tpu.dynamic_rotate %1 by %c255_i32 dim 1 : vector<4x256xf32>, i32 -> vector<4x256xf32>
    %23 = vector.extract_strided_slice %2 {offsets = [5, 0], sizes = [1, 256], strides = [1, 1]} : vector<9x256xf32> to vector<1x256xf32>
    %24 = vector.broadcast %23 : vector<1x256xf32> to vector<4x256xf32>
    %25 = arith.mulf %22, %24 : vector<4x256xf32>
    %c241_i32 = arith.constant 241 : i32
    %26 = tpu.dynamic_rotate %1 by %c241_i32 dim 1 : vector<4x256xf32>, i32 -> vector<4x256xf32>
    %27 = vector.extract_strided_slice %2 {offsets = [6, 0], sizes = [1, 256], strides = [1, 1]} : vector<9x256xf32> to vector<1x256xf32>
    %28 = vector.broadcast %27 : vector<1x256xf32> to vector<4x256xf32>
    %29 = arith.mulf %26, %28 : vector<4x256xf32>
    %c240_i32 = arith.constant 240 : i32
    %30 = tpu.dynamic_rotate %1 by %c240_i32 dim 1 : vector<4x256xf32>, i32 -> vector<4x256xf32>
    %31 = vector.extract_strided_slice %2 {offsets = [7, 0], sizes = [1, 256], strides = [1, 1]} : vector<9x256xf32> to vector<1x256xf32>
    %32 = vector.broadcast %31 : vector<1x256xf32> to vector<4x256xf32>
    %33 = arith.mulf %30, %32 : vector<4x256xf32>
    %c239_i32 = arith.constant 239 : i32
    %34 = tpu.dynamic_rotate %1 by %c239_i32 dim 1 : vector<4x256xf32>, i32 -> vector<4x256xf32>
    %35 = vector.extract_strided_slice %2 {offsets = [8, 0], sizes = [1, 256], strides = [1, 1]} : vector<9x256xf32> to vector<1x256xf32>
    %36 = vector.broadcast %35 : vector<1x256xf32> to vector<4x256xf32>
    %37 = arith.mulf %34, %36 : vector<4x256xf32>
    %c144_i32 = arith.constant 144 : i32
    %38 = arith.muli %arg1, %c144_i32 : i32
    %c0_4 = arith.constant 0 : index
    %39 = memref.load %arg5[%c0_4] : memref<4xf32, #tpu.memory_space<smem>>
    %40 = vector.broadcast %39 : f32 to vector<1x256xf32>
    %c0_i32 = arith.constant 0 : i32
    %41 = arith.addi %38, %c0_i32 : i32
    %c0_i32_5 = arith.constant 0 : i32
    %42 = arith.addi %41, %c0_i32_5 : i32
    %43 = arith.index_cast %42 : i32 to index
    %44 = memref.load %arg4[%43] : memref<1152xf32, #tpu.memory_space<smem>>
    %45 = vector.extract_strided_slice %6 {offsets = [0, 0], sizes = [1, 256], strides = [1, 1]} : vector<4x256xf32> to vector<1x256xf32>
    %46 = vector.broadcast %44 : f32 to vector<1x256xf32>
    %47 = arith.mulf %45, %46 : vector<1x256xf32>
    %48 = arith.addf %40, %47 : vector<1x256xf32>
    %c9_i32 = arith.constant 9 : i32
    %49 = arith.addi %38, %c9_i32 : i32
    %c0_i32_6 = arith.constant 0 : i32
    %50 = arith.addi %49, %c0_i32_6 : i32
    %51 = arith.index_cast %50 : i32 to index
    %52 = memref.load %arg4[%51] : memref<1152xf32, #tpu.memory_space<smem>>
    %53 = vector.extract_strided_slice %6 {offsets = [1, 0], sizes = [1, 256], strides = [1, 1]} : vector<4x256xf32> to vector<1x256xf32>
    %54 = vector.broadcast %52 : f32 to vector<1x256xf32>
    %55 = arith.mulf %53, %54 : vector<1x256xf32>
    %56 = arith.addf %48, %55 : vector<1x256xf32>
    %c18_i32 = arith.constant 18 : i32
    %57 = arith.addi %38, %c18_i32 : i32
    %c0_i32_7 = arith.constant 0 : i32
    %58 = arith.addi %57, %c0_i32_7 : i32
    %59 = arith.index_cast %58 : i32 to index
    %60 = memref.load %arg4[%59] : memref<1152xf32, #tpu.memory_space<smem>>
    %61 = vector.extract_strided_slice %6 {offsets = [2, 0], sizes = [1, 256], strides = [1, 1]} : vector<4x256xf32> to vector<1x256xf32>
    %62 = vector.broadcast %60 : f32 to vector<1x256xf32>
    %63 = arith.mulf %61, %62 : vector<1x256xf32>
    %64 = arith.addf %56, %63 : vector<1x256xf32>
    %c27_i32 = arith.constant 27 : i32
    %65 = arith.addi %38, %c27_i32 : i32
    %c0_i32_8 = arith.constant 0 : i32
    %66 = arith.addi %65, %c0_i32_8 : i32
    %67 = arith.index_cast %66 : i32 to index
    %68 = memref.load %arg4[%67] : memref<1152xf32, #tpu.memory_space<smem>>
    %69 = vector.extract_strided_slice %6 {offsets = [3, 0], sizes = [1, 256], strides = [1, 1]} : vector<4x256xf32> to vector<1x256xf32>
    %70 = vector.broadcast %68 : f32 to vector<1x256xf32>
    %71 = arith.mulf %69, %70 : vector<1x256xf32>
    %72 = arith.addf %64, %71 : vector<1x256xf32>
    %c0_i32_9 = arith.constant 0 : i32
    %73 = arith.addi %38, %c0_i32_9 : i32
    %c1_i32_10 = arith.constant 1 : i32
    %74 = arith.addi %73, %c1_i32_10 : i32
    %75 = arith.index_cast %74 : i32 to index
    %76 = memref.load %arg4[%75] : memref<1152xf32, #tpu.memory_space<smem>>
    %77 = vector.extract_strided_slice %10 {offsets = [0, 0], sizes = [1, 256], strides = [1, 1]} : vector<4x256xf32> to vector<1x256xf32>
    %78 = vector.broadcast %76 : f32 to vector<1x256xf32>
    %79 = arith.mulf %77, %78 : vector<1x256xf32>
    %80 = arith.addf %72, %79 : vector<1x256xf32>
    %c9_i32_11 = arith.constant 9 : i32
    %81 = arith.addi %38, %c9_i32_11 : i32
    %c1_i32_12 = arith.constant 1 : i32
    %82 = arith.addi %81, %c1_i32_12 : i32
    %83 = arith.index_cast %82 : i32 to index
    %84 = memref.load %arg4[%83] : memref<1152xf32, #tpu.memory_space<smem>>
    %85 = vector.extract_strided_slice %10 {offsets = [1, 0], sizes = [1, 256], strides = [1, 1]} : vector<4x256xf32> to vector<1x256xf32>
    %86 = vector.broadcast %84 : f32 to vector<1x256xf32>
    %87 = arith.mulf %85, %86 : vector<1x256xf32>
    %88 = arith.addf %80, %87 : vector<1x256xf32>
    %c18_i32_13 = arith.constant 18 : i32
    %89 = arith.addi %38, %c18_i32_13 : i32
    %c1_i32_14 = arith.constant 1 : i32
    %90 = arith.addi %89, %c1_i32_14 : i32
    %91 = arith.index_cast %90 : i32 to index
    %92 = memref.load %arg4[%91] : memref<1152xf32, #tpu.memory_space<smem>>
    %93 = vector.extract_strided_slice %10 {offsets = [2, 0], sizes = [1, 256], strides = [1, 1]} : vector<4x256xf32> to vector<1x256xf32>
    %94 = vector.broadcast %92 : f32 to vector<1x256xf32>
    %95 = arith.mulf %93, %94 : vector<1x256xf32>
    %96 = arith.addf %88, %95 : vector<1x256xf32>
    %c27_i32_15 = arith.constant 27 : i32
    %97 = arith.addi %38, %c27_i32_15 : i32
    %c1_i32_16 = arith.constant 1 : i32
    %98 = arith.addi %97, %c1_i32_16 : i32
    %99 = arith.index_cast %98 : i32 to index
    %100 = memref.load %arg4[%99] : memref<1152xf32, #tpu.memory_space<smem>>
    %101 = vector.extract_strided_slice %10 {offsets = [3, 0], sizes = [1, 256], strides = [1, 1]} : vector<4x256xf32> to vector<1x256xf32>
    %102 = vector.broadcast %100 : f32 to vector<1x256xf32>
    %103 = arith.mulf %101, %102 : vector<1x256xf32>
    %104 = arith.addf %96, %103 : vector<1x256xf32>
    %c0_i32_17 = arith.constant 0 : i32
    %105 = arith.addi %38, %c0_i32_17 : i32
    %c2_i32 = arith.constant 2 : i32
    %106 = arith.addi %105, %c2_i32 : i32
    %107 = arith.index_cast %106 : i32 to index
    %108 = memref.load %arg4[%107] : memref<1152xf32, #tpu.memory_space<smem>>
    %109 = vector.extract_strided_slice %14 {offsets = [0, 0], sizes = [1, 256], strides = [1, 1]} : vector<4x256xf32> to vector<1x256xf32>
    %110 = vector.broadcast %108 : f32 to vector<1x256xf32>
    %111 = arith.mulf %109, %110 : vector<1x256xf32>
    %112 = arith.addf %104, %111 : vector<1x256xf32>
    %c9_i32_18 = arith.constant 9 : i32
    %113 = arith.addi %38, %c9_i32_18 : i32
    %c2_i32_19 = arith.constant 2 : i32
    %114 = arith.addi %113, %c2_i32_19 : i32
    %115 = arith.index_cast %114 : i32 to index
    %116 = memref.load %arg4[%115] : memref<1152xf32, #tpu.memory_space<smem>>
    %117 = vector.extract_strided_slice %14 {offsets = [1, 0], sizes = [1, 256], strides = [1, 1]} : vector<4x256xf32> to vector<1x256xf32>
    %118 = vector.broadcast %116 : f32 to vector<1x256xf32>
    %119 = arith.mulf %117, %118 : vector<1x256xf32>
    %120 = arith.addf %112, %119 : vector<1x256xf32>
    %c18_i32_20 = arith.constant 18 : i32
    %121 = arith.addi %38, %c18_i32_20 : i32
    %c2_i32_21 = arith.constant 2 : i32
    %122 = arith.addi %121, %c2_i32_21 : i32
    %123 = arith.index_cast %122 : i32 to index
    %124 = memref.load %arg4[%123] : memref<1152xf32, #tpu.memory_space<smem>>
    %125 = vector.extract_strided_slice %14 {offsets = [2, 0], sizes = [1, 256], strides = [1, 1]} : vector<4x256xf32> to vector<1x256xf32>
    %126 = vector.broadcast %124 : f32 to vector<1x256xf32>
    %127 = arith.mulf %125, %126 : vector<1x256xf32>
    %128 = arith.addf %120, %127 : vector<1x256xf32>
    %c27_i32_22 = arith.constant 27 : i32
    %129 = arith.addi %38, %c27_i32_22 : i32
    %c2_i32_23 = arith.constant 2 : i32
    %130 = arith.addi %129, %c2_i32_23 : i32
    %131 = arith.index_cast %130 : i32 to index
    %132 = memref.load %arg4[%131] : memref<1152xf32, #tpu.memory_space<smem>>
    %133 = vector.extract_strided_slice %14 {offsets = [3, 0], sizes = [1, 256], strides = [1, 1]} : vector<4x256xf32> to vector<1x256xf32>
    %134 = vector.broadcast %132 : f32 to vector<1x256xf32>
    %135 = arith.mulf %133, %134 : vector<1x256xf32>
    %136 = arith.addf %128, %135 : vector<1x256xf32>
    %c0_i32_24 = arith.constant 0 : i32
    %137 = arith.addi %38, %c0_i32_24 : i32
    %c3_i32 = arith.constant 3 : i32
    %138 = arith.addi %137, %c3_i32 : i32
    %139 = arith.index_cast %138 : i32 to index
    %140 = memref.load %arg4[%139] : memref<1152xf32, #tpu.memory_space<smem>>
    %141 = vector.extract_strided_slice %18 {offsets = [0, 0], sizes = [1, 256], strides = [1, 1]} : vector<4x256xf32> to vector<1x256xf32>
    %142 = vector.broadcast %140 : f32 to vector<1x256xf32>
    %143 = arith.mulf %141, %142 : vector<1x256xf32>
    %144 = arith.addf %136, %143 : vector<1x256xf32>
    %c9_i32_25 = arith.constant 9 : i32
    %145 = arith.addi %38, %c9_i32_25 : i32
    %c3_i32_26 = arith.constant 3 : i32
    %146 = arith.addi %145, %c3_i32_26 : i32
    %147 = arith.index_cast %146 : i32 to index
    %148 = memref.load %arg4[%147] : memref<1152xf32, #tpu.memory_space<smem>>
    %149 = vector.extract_strided_slice %18 {offsets = [1, 0], sizes = [1, 256], strides = [1, 1]} : vector<4x256xf32> to vector<1x256xf32>
    %150 = vector.broadcast %148 : f32 to vector<1x256xf32>
    %151 = arith.mulf %149, %150 : vector<1x256xf32>
    %152 = arith.addf %144, %151 : vector<1x256xf32>
    %c18_i32_27 = arith.constant 18 : i32
    %153 = arith.addi %38, %c18_i32_27 : i32
    %c3_i32_28 = arith.constant 3 : i32
    %154 = arith.addi %153, %c3_i32_28 : i32
    %155 = arith.index_cast %154 : i32 to index
    %156 = memref.load %arg4[%155] : memref<1152xf32, #tpu.memory_space<smem>>
    %157 = vector.extract_strided_slice %18 {offsets = [2, 0], sizes = [1, 256], strides = [1, 1]} : vector<4x256xf32> to vector<1x256xf32>
    %158 = vector.broadcast %156 : f32 to vector<1x256xf32>
    %159 = arith.mulf %157, %158 : vector<1x256xf32>
    %160 = arith.addf %152, %159 : vector<1x256xf32>
    %c27_i32_29 = arith.constant 27 : i32
    %161 = arith.addi %38, %c27_i32_29 : i32
    %c3_i32_30 = arith.constant 3 : i32
    %162 = arith.addi %161, %c3_i32_30 : i32
    %163 = arith.index_cast %162 : i32 to index
    %164 = memref.load %arg4[%163] : memref<1152xf32, #tpu.memory_space<smem>>
    %165 = vector.extract_strided_slice %18 {offsets = [3, 0], sizes = [1, 256], strides = [1, 1]} : vector<4x256xf32> to vector<1x256xf32>
    %166 = vector.broadcast %164 : f32 to vector<1x256xf32>
    %167 = arith.mulf %165, %166 : vector<1x256xf32>
    %168 = arith.addf %160, %167 : vector<1x256xf32>
    %c0_i32_31 = arith.constant 0 : i32
    %169 = arith.addi %38, %c0_i32_31 : i32
    %c4_i32 = arith.constant 4 : i32
    %170 = arith.addi %169, %c4_i32 : i32
    %171 = arith.index_cast %170 : i32 to index
    %172 = memref.load %arg4[%171] : memref<1152xf32, #tpu.memory_space<smem>>
    %173 = vector.extract_strided_slice %21 {offsets = [0, 0], sizes = [1, 256], strides = [1, 1]} : vector<4x256xf32> to vector<1x256xf32>
    %174 = vector.broadcast %172 : f32 to vector<1x256xf32>
    %175 = arith.mulf %173, %174 : vector<1x256xf32>
    %176 = arith.addf %168, %175 : vector<1x256xf32>
    %c9_i32_32 = arith.constant 9 : i32
    %177 = arith.addi %38, %c9_i32_32 : i32
    %c4_i32_33 = arith.constant 4 : i32
    %178 = arith.addi %177, %c4_i32_33 : i32
    %179 = arith.index_cast %178 : i32 to index
    %180 = memref.load %arg4[%179] : memref<1152xf32, #tpu.memory_space<smem>>
    %181 = vector.extract_strided_slice %21 {offsets = [1, 0], sizes = [1, 256], strides = [1, 1]} : vector<4x256xf32> to vector<1x256xf32>
    %182 = vector.broadcast %180 : f32 to vector<1x256xf32>
    %183 = arith.mulf %181, %182 : vector<1x256xf32>
    %184 = arith.addf %176, %183 : vector<1x256xf32>
    %c18_i32_34 = arith.constant 18 : i32
    %185 = arith.addi %38, %c18_i32_34 : i32
    %c4_i32_35 = arith.constant 4 : i32
    %186 = arith.addi %185, %c4_i32_35 : i32
    %187 = arith.index_cast %186 : i32 to index
    %188 = memref.load %arg4[%187] : memref<1152xf32, #tpu.memory_space<smem>>
    %189 = vector.extract_strided_slice %21 {offsets = [2, 0], sizes = [1, 256], strides = [1, 1]} : vector<4x256xf32> to vector<1x256xf32>
    %190 = vector.broadcast %188 : f32 to vector<1x256xf32>
    %191 = arith.mulf %189, %190 : vector<1x256xf32>
    %192 = arith.addf %184, %191 : vector<1x256xf32>
    %c27_i32_36 = arith.constant 27 : i32
    %193 = arith.addi %38, %c27_i32_36 : i32
    %c4_i32_37 = arith.constant 4 : i32
    %194 = arith.addi %193, %c4_i32_37 : i32
    %195 = arith.index_cast %194 : i32 to index
    %196 = memref.load %arg4[%195] : memref<1152xf32, #tpu.memory_space<smem>>
    %197 = vector.extract_strided_slice %21 {offsets = [3, 0], sizes = [1, 256], strides = [1, 1]} : vector<4x256xf32> to vector<1x256xf32>
    %198 = vector.broadcast %196 : f32 to vector<1x256xf32>
    %199 = arith.mulf %197, %198 : vector<1x256xf32>
    %200 = arith.addf %192, %199 : vector<1x256xf32>
    %c0_i32_38 = arith.constant 0 : i32
    %201 = arith.addi %38, %c0_i32_38 : i32
    %c5_i32 = arith.constant 5 : i32
    %202 = arith.addi %201, %c5_i32 : i32
    %203 = arith.index_cast %202 : i32 to index
    %204 = memref.load %arg4[%203] : memref<1152xf32, #tpu.memory_space<smem>>
    %205 = vector.extract_strided_slice %25 {offsets = [0, 0], sizes = [1, 256], strides = [1, 1]} : vector<4x256xf32> to vector<1x256xf32>
    %206 = vector.broadcast %204 : f32 to vector<1x256xf32>
    %207 = arith.mulf %205, %206 : vector<1x256xf32>
    %208 = arith.addf %200, %207 : vector<1x256xf32>
    %c9_i32_39 = arith.constant 9 : i32
    %209 = arith.addi %38, %c9_i32_39 : i32
    %c5_i32_40 = arith.constant 5 : i32
    %210 = arith.addi %209, %c5_i32_40 : i32
    %211 = arith.index_cast %210 : i32 to index
    %212 = memref.load %arg4[%211] : memref<1152xf32, #tpu.memory_space<smem>>
    %213 = vector.extract_strided_slice %25 {offsets = [1, 0], sizes = [1, 256], strides = [1, 1]} : vector<4x256xf32> to vector<1x256xf32>
    %214 = vector.broadcast %212 : f32 to vector<1x256xf32>
    %215 = arith.mulf %213, %214 : vector<1x256xf32>
    %216 = arith.addf %208, %215 : vector<1x256xf32>
    %c18_i32_41 = arith.constant 18 : i32
    %217 = arith.addi %38, %c18_i32_41 : i32
    %c5_i32_42 = arith.constant 5 : i32
    %218 = arith.addi %217, %c5_i32_42 : i32
    %219 = arith.index_cast %218 : i32 to index
    %220 = memref.load %arg4[%219] : memref<1152xf32, #tpu.memory_space<smem>>
    %221 = vector.extract_strided_slice %25 {offsets = [2, 0], sizes = [1, 256], strides = [1, 1]} : vector<4x256xf32> to vector<1x256xf32>
    %222 = vector.broadcast %220 : f32 to vector<1x256xf32>
    %223 = arith.mulf %221, %222 : vector<1x256xf32>
    %224 = arith.addf %216, %223 : vector<1x256xf32>
    %c27_i32_43 = arith.constant 27 : i32
    %225 = arith.addi %38, %c27_i32_43 : i32
    %c5_i32_44 = arith.constant 5 : i32
    %226 = arith.addi %225, %c5_i32_44 : i32
    %227 = arith.index_cast %226 : i32 to index
    %228 = memref.load %arg4[%227] : memref<1152xf32, #tpu.memory_space<smem>>
    %229 = vector.extract_strided_slice %25 {offsets = [3, 0], sizes = [1, 256], strides = [1, 1]} : vector<4x256xf32> to vector<1x256xf32>
    %230 = vector.broadcast %228 : f32 to vector<1x256xf32>
    %231 = arith.mulf %229, %230 : vector<1x256xf32>
    %232 = arith.addf %224, %231 : vector<1x256xf32>
    %c0_i32_45 = arith.constant 0 : i32
    %233 = arith.addi %38, %c0_i32_45 : i32
    %c6_i32 = arith.constant 6 : i32
    %234 = arith.addi %233, %c6_i32 : i32
    %235 = arith.index_cast %234 : i32 to index
    %236 = memref.load %arg4[%235] : memref<1152xf32, #tpu.memory_space<smem>>
    %237 = vector.extract_strided_slice %29 {offsets = [0, 0], sizes = [1, 256], strides = [1, 1]} : vector<4x256xf32> to vector<1x256xf32>
    %238 = vector.broadcast %236 : f32 to vector<1x256xf32>
    %239 = arith.mulf %237, %238 : vector<1x256xf32>
    %240 = arith.addf %232, %239 : vector<1x256xf32>
    %c9_i32_46 = arith.constant 9 : i32
    %241 = arith.addi %38, %c9_i32_46 : i32
    %c6_i32_47 = arith.constant 6 : i32
    %242 = arith.addi %241, %c6_i32_47 : i32
    %243 = arith.index_cast %242 : i32 to index
    %244 = memref.load %arg4[%243] : memref<1152xf32, #tpu.memory_space<smem>>
    %245 = vector.extract_strided_slice %29 {offsets = [1, 0], sizes = [1, 256], strides = [1, 1]} : vector<4x256xf32> to vector<1x256xf32>
    %246 = vector.broadcast %244 : f32 to vector<1x256xf32>
    %247 = arith.mulf %245, %246 : vector<1x256xf32>
    %248 = arith.addf %240, %247 : vector<1x256xf32>
    %c18_i32_48 = arith.constant 18 : i32
    %249 = arith.addi %38, %c18_i32_48 : i32
    %c6_i32_49 = arith.constant 6 : i32
    %250 = arith.addi %249, %c6_i32_49 : i32
    %251 = arith.index_cast %250 : i32 to index
    %252 = memref.load %arg4[%251] : memref<1152xf32, #tpu.memory_space<smem>>
    %253 = vector.extract_strided_slice %29 {offsets = [2, 0], sizes = [1, 256], strides = [1, 1]} : vector<4x256xf32> to vector<1x256xf32>
    %254 = vector.broadcast %252 : f32 to vector<1x256xf32>
    %255 = arith.mulf %253, %254 : vector<1x256xf32>
    %256 = arith.addf %248, %255 : vector<1x256xf32>
    %c27_i32_50 = arith.constant 27 : i32
    %257 = arith.addi %38, %c27_i32_50 : i32
    %c6_i32_51 = arith.constant 6 : i32
    %258 = arith.addi %257, %c6_i32_51 : i32
    %259 = arith.index_cast %258 : i32 to index
    %260 = memref.load %arg4[%259] : memref<1152xf32, #tpu.memory_space<smem>>
    %261 = vector.extract_strided_slice %29 {offsets = [3, 0], sizes = [1, 256], strides = [1, 1]} : vector<4x256xf32> to vector<1x256xf32>
    %262 = vector.broadcast %260 : f32 to vector<1x256xf32>
    %263 = arith.mulf %261, %262 : vector<1x256xf32>
    %264 = arith.addf %256, %263 : vector<1x256xf32>
    %c0_i32_52 = arith.constant 0 : i32
    %265 = arith.addi %38, %c0_i32_52 : i32
    %c7_i32 = arith.constant 7 : i32
    %266 = arith.addi %265, %c7_i32 : i32
    %267 = arith.index_cast %266 : i32 to index
    %268 = memref.load %arg4[%267] : memref<1152xf32, #tpu.memory_space<smem>>
    %269 = vector.extract_strided_slice %33 {offsets = [0, 0], sizes = [1, 256], strides = [1, 1]} : vector<4x256xf32> to vector<1x256xf32>
    %270 = vector.broadcast %268 : f32 to vector<1x256xf32>
    %271 = arith.mulf %269, %270 : vector<1x256xf32>
    %272 = arith.addf %264, %271 : vector<1x256xf32>
    %c9_i32_53 = arith.constant 9 : i32
    %273 = arith.addi %38, %c9_i32_53 : i32
    %c7_i32_54 = arith.constant 7 : i32
    %274 = arith.addi %273, %c7_i32_54 : i32
    %275 = arith.index_cast %274 : i32 to index
    %276 = memref.load %arg4[%275] : memref<1152xf32, #tpu.memory_space<smem>>
    %277 = vector.extract_strided_slice %33 {offsets = [1, 0], sizes = [1, 256], strides = [1, 1]} : vector<4x256xf32> to vector<1x256xf32>
    %278 = vector.broadcast %276 : f32 to vector<1x256xf32>
    %279 = arith.mulf %277, %278 : vector<1x256xf32>
    %280 = arith.addf %272, %279 : vector<1x256xf32>
    %c18_i32_55 = arith.constant 18 : i32
    %281 = arith.addi %38, %c18_i32_55 : i32
    %c7_i32_56 = arith.constant 7 : i32
    %282 = arith.addi %281, %c7_i32_56 : i32
    %283 = arith.index_cast %282 : i32 to index
    %284 = memref.load %arg4[%283] : memref<1152xf32, #tpu.memory_space<smem>>
    %285 = vector.extract_strided_slice %33 {offsets = [2, 0], sizes = [1, 256], strides = [1, 1]} : vector<4x256xf32> to vector<1x256xf32>
    %286 = vector.broadcast %284 : f32 to vector<1x256xf32>
    %287 = arith.mulf %285, %286 : vector<1x256xf32>
    %288 = arith.addf %280, %287 : vector<1x256xf32>
    %c27_i32_57 = arith.constant 27 : i32
    %289 = arith.addi %38, %c27_i32_57 : i32
    %c7_i32_58 = arith.constant 7 : i32
    %290 = arith.addi %289, %c7_i32_58 : i32
    %291 = arith.index_cast %290 : i32 to index
    %292 = memref.load %arg4[%291] : memref<1152xf32, #tpu.memory_space<smem>>
    %293 = vector.extract_strided_slice %33 {offsets = [3, 0], sizes = [1, 256], strides = [1, 1]} : vector<4x256xf32> to vector<1x256xf32>
    %294 = vector.broadcast %292 : f32 to vector<1x256xf32>
    %295 = arith.mulf %293, %294 : vector<1x256xf32>
    %296 = arith.addf %288, %295 : vector<1x256xf32>
    %c0_i32_59 = arith.constant 0 : i32
    %297 = arith.addi %38, %c0_i32_59 : i32
    %c8_i32 = arith.constant 8 : i32
    %298 = arith.addi %297, %c8_i32 : i32
    %299 = arith.index_cast %298 : i32 to index
    %300 = memref.load %arg4[%299] : memref<1152xf32, #tpu.memory_space<smem>>
    %301 = vector.extract_strided_slice %37 {offsets = [0, 0], sizes = [1, 256], strides = [1, 1]} : vector<4x256xf32> to vector<1x256xf32>
    %302 = vector.broadcast %300 : f32 to vector<1x256xf32>
    %303 = arith.mulf %301, %302 : vector<1x256xf32>
    %304 = arith.addf %296, %303 : vector<1x256xf32>
    %c9_i32_60 = arith.constant 9 : i32
    %305 = arith.addi %38, %c9_i32_60 : i32
    %c8_i32_61 = arith.constant 8 : i32
    %306 = arith.addi %305, %c8_i32_61 : i32
    %307 = arith.index_cast %306 : i32 to index
    %308 = memref.load %arg4[%307] : memref<1152xf32, #tpu.memory_space<smem>>
    %309 = vector.extract_strided_slice %37 {offsets = [1, 0], sizes = [1, 256], strides = [1, 1]} : vector<4x256xf32> to vector<1x256xf32>
    %310 = vector.broadcast %308 : f32 to vector<1x256xf32>
    %311 = arith.mulf %309, %310 : vector<1x256xf32>
    %312 = arith.addf %304, %311 : vector<1x256xf32>
    %c18_i32_62 = arith.constant 18 : i32
    %313 = arith.addi %38, %c18_i32_62 : i32
    %c8_i32_63 = arith.constant 8 : i32
    %314 = arith.addi %313, %c8_i32_63 : i32
    %315 = arith.index_cast %314 : i32 to index
    %316 = memref.load %arg4[%315] : memref<1152xf32, #tpu.memory_space<smem>>
    %317 = vector.extract_strided_slice %37 {offsets = [2, 0], sizes = [1, 256], strides = [1, 1]} : vector<4x256xf32> to vector<1x256xf32>
    %318 = vector.broadcast %316 : f32 to vector<1x256xf32>
    %319 = arith.mulf %317, %318 : vector<1x256xf32>
    %320 = arith.addf %312, %319 : vector<1x256xf32>
    %c27_i32_64 = arith.constant 27 : i32
    %321 = arith.addi %38, %c27_i32_64 : i32
    %c8_i32_65 = arith.constant 8 : i32
    %322 = arith.addi %321, %c8_i32_65 : i32
    %323 = arith.index_cast %322 : i32 to index
    %324 = memref.load %arg4[%323] : memref<1152xf32, #tpu.memory_space<smem>>
    %325 = vector.extract_strided_slice %37 {offsets = [3, 0], sizes = [1, 256], strides = [1, 1]} : vector<4x256xf32> to vector<1x256xf32>
    %326 = vector.broadcast %324 : f32 to vector<1x256xf32>
    %327 = arith.mulf %325, %326 : vector<1x256xf32>
    %328 = arith.addf %320, %327 : vector<1x256xf32>
    %c1 = arith.constant 1 : index
    %329 = memref.load %arg5[%c1] : memref<4xf32, #tpu.memory_space<smem>>
    %330 = vector.broadcast %329 : f32 to vector<1x256xf32>
    %c36_i32 = arith.constant 36 : i32
    %331 = arith.addi %38, %c36_i32 : i32
    %c0_i32_66 = arith.constant 0 : i32
    %332 = arith.addi %331, %c0_i32_66 : i32
    %333 = arith.index_cast %332 : i32 to index
    %334 = memref.load %arg4[%333] : memref<1152xf32, #tpu.memory_space<smem>>
    %335 = vector.extract_strided_slice %6 {offsets = [0, 0], sizes = [1, 256], strides = [1, 1]} : vector<4x256xf32> to vector<1x256xf32>
    %336 = vector.broadcast %334 : f32 to vector<1x256xf32>
    %337 = arith.mulf %335, %336 : vector<1x256xf32>
    %338 = arith.addf %330, %337 : vector<1x256xf32>
    %c45_i32 = arith.constant 45 : i32
    %339 = arith.addi %38, %c45_i32 : i32
    %c0_i32_67 = arith.constant 0 : i32
    %340 = arith.addi %339, %c0_i32_67 : i32
    %341 = arith.index_cast %340 : i32 to index
    %342 = memref.load %arg4[%341] : memref<1152xf32, #tpu.memory_space<smem>>
    %343 = vector.extract_strided_slice %6 {offsets = [1, 0], sizes = [1, 256], strides = [1, 1]} : vector<4x256xf32> to vector<1x256xf32>
    %344 = vector.broadcast %342 : f32 to vector<1x256xf32>
    %345 = arith.mulf %343, %344 : vector<1x256xf32>
    %346 = arith.addf %338, %345 : vector<1x256xf32>
    %c54_i32 = arith.constant 54 : i32
    %347 = arith.addi %38, %c54_i32 : i32
    %c0_i32_68 = arith.constant 0 : i32
    %348 = arith.addi %347, %c0_i32_68 : i32
    %349 = arith.index_cast %348 : i32 to index
    %350 = memref.load %arg4[%349] : memref<1152xf32, #tpu.memory_space<smem>>
    %351 = vector.extract_strided_slice %6 {offsets = [2, 0], sizes = [1, 256], strides = [1, 1]} : vector<4x256xf32> to vector<1x256xf32>
    %352 = vector.broadcast %350 : f32 to vector<1x256xf32>
    %353 = arith.mulf %351, %352 : vector<1x256xf32>
    %354 = arith.addf %346, %353 : vector<1x256xf32>
    %c63_i32 = arith.constant 63 : i32
    %355 = arith.addi %38, %c63_i32 : i32
    %c0_i32_69 = arith.constant 0 : i32
    %356 = arith.addi %355, %c0_i32_69 : i32
    %357 = arith.index_cast %356 : i32 to index
    %358 = memref.load %arg4[%357] : memref<1152xf32, #tpu.memory_space<smem>>
    %359 = vector.extract_strided_slice %6 {offsets = [3, 0], sizes = [1, 256], strides = [1, 1]} : vector<4x256xf32> to vector<1x256xf32>
    %360 = vector.broadcast %358 : f32 to vector<1x256xf32>
    %361 = arith.mulf %359, %360 : vector<1x256xf32>
    %362 = arith.addf %354, %361 : vector<1x256xf32>
    %c36_i32_70 = arith.constant 36 : i32
    %363 = arith.addi %38, %c36_i32_70 : i32
    %c1_i32_71 = arith.constant 1 : i32
    %364 = arith.addi %363, %c1_i32_71 : i32
    %365 = arith.index_cast %364 : i32 to index
    %366 = memref.load %arg4[%365] : memref<1152xf32, #tpu.memory_space<smem>>
    %367 = vector.extract_strided_slice %10 {offsets = [0, 0], sizes = [1, 256], strides = [1, 1]} : vector<4x256xf32> to vector<1x256xf32>
    %368 = vector.broadcast %366 : f32 to vector<1x256xf32>
    %369 = arith.mulf %367, %368 : vector<1x256xf32>
    %370 = arith.addf %362, %369 : vector<1x256xf32>
    %c45_i32_72 = arith.constant 45 : i32
    %371 = arith.addi %38, %c45_i32_72 : i32
    %c1_i32_73 = arith.constant 1 : i32
    %372 = arith.addi %371, %c1_i32_73 : i32
    %373 = arith.index_cast %372 : i32 to index
    %374 = memref.load %arg4[%373] : memref<1152xf32, #tpu.memory_space<smem>>
    %375 = vector.extract_strided_slice %10 {offsets = [1, 0], sizes = [1, 256], strides = [1, 1]} : vector<4x256xf32> to vector<1x256xf32>
    %376 = vector.broadcast %374 : f32 to vector<1x256xf32>
    %377 = arith.mulf %375, %376 : vector<1x256xf32>
    %378 = arith.addf %370, %377 : vector<1x256xf32>
    %c54_i32_74 = arith.constant 54 : i32
    %379 = arith.addi %38, %c54_i32_74 : i32
    %c1_i32_75 = arith.constant 1 : i32
    %380 = arith.addi %379, %c1_i32_75 : i32
    %381 = arith.index_cast %380 : i32 to index
    %382 = memref.load %arg4[%381] : memref<1152xf32, #tpu.memory_space<smem>>
    %383 = vector.extract_strided_slice %10 {offsets = [2, 0], sizes = [1, 256], strides = [1, 1]} : vector<4x256xf32> to vector<1x256xf32>
    %384 = vector.broadcast %382 : f32 to vector<1x256xf32>
    %385 = arith.mulf %383, %384 : vector<1x256xf32>
    %386 = arith.addf %378, %385 : vector<1x256xf32>
    %c63_i32_76 = arith.constant 63 : i32
    %387 = arith.addi %38, %c63_i32_76 : i32
    %c1_i32_77 = arith.constant 1 : i32
    %388 = arith.addi %387, %c1_i32_77 : i32
    %389 = arith.index_cast %388 : i32 to index
    %390 = memref.load %arg4[%389] : memref<1152xf32, #tpu.memory_space<smem>>
    %391 = vector.extract_strided_slice %10 {offsets = [3, 0], sizes = [1, 256], strides = [1, 1]} : vector<4x256xf32> to vector<1x256xf32>
    %392 = vector.broadcast %390 : f32 to vector<1x256xf32>
    %393 = arith.mulf %391, %392 : vector<1x256xf32>
    %394 = arith.addf %386, %393 : vector<1x256xf32>
    %c36_i32_78 = arith.constant 36 : i32
    %395 = arith.addi %38, %c36_i32_78 : i32
    %c2_i32_79 = arith.constant 2 : i32
    %396 = arith.addi %395, %c2_i32_79 : i32
    %397 = arith.index_cast %396 : i32 to index
    %398 = memref.load %arg4[%397] : memref<1152xf32, #tpu.memory_space<smem>>
    %399 = vector.extract_strided_slice %14 {offsets = [0, 0], sizes = [1, 256], strides = [1, 1]} : vector<4x256xf32> to vector<1x256xf32>
    %400 = vector.broadcast %398 : f32 to vector<1x256xf32>
    %401 = arith.mulf %399, %400 : vector<1x256xf32>
    %402 = arith.addf %394, %401 : vector<1x256xf32>
    %c45_i32_80 = arith.constant 45 : i32
    %403 = arith.addi %38, %c45_i32_80 : i32
    %c2_i32_81 = arith.constant 2 : i32
    %404 = arith.addi %403, %c2_i32_81 : i32
    %405 = arith.index_cast %404 : i32 to index
    %406 = memref.load %arg4[%405] : memref<1152xf32, #tpu.memory_space<smem>>
    %407 = vector.extract_strided_slice %14 {offsets = [1, 0], sizes = [1, 256], strides = [1, 1]} : vector<4x256xf32> to vector<1x256xf32>
    %408 = vector.broadcast %406 : f32 to vector<1x256xf32>
    %409 = arith.mulf %407, %408 : vector<1x256xf32>
    %410 = arith.addf %402, %409 : vector<1x256xf32>
    %c54_i32_82 = arith.constant 54 : i32
    %411 = arith.addi %38, %c54_i32_82 : i32
    %c2_i32_83 = arith.constant 2 : i32
    %412 = arith.addi %411, %c2_i32_83 : i32
    %413 = arith.index_cast %412 : i32 to index
    %414 = memref.load %arg4[%413] : memref<1152xf32, #tpu.memory_space<smem>>
    %415 = vector.extract_strided_slice %14 {offsets = [2, 0], sizes = [1, 256], strides = [1, 1]} : vector<4x256xf32> to vector<1x256xf32>
    %416 = vector.broadcast %414 : f32 to vector<1x256xf32>
    %417 = arith.mulf %415, %416 : vector<1x256xf32>
    %418 = arith.addf %410, %417 : vector<1x256xf32>
    %c63_i32_84 = arith.constant 63 : i32
    %419 = arith.addi %38, %c63_i32_84 : i32
    %c2_i32_85 = arith.constant 2 : i32
    %420 = arith.addi %419, %c2_i32_85 : i32
    %421 = arith.index_cast %420 : i32 to index
    %422 = memref.load %arg4[%421] : memref<1152xf32, #tpu.memory_space<smem>>
    %423 = vector.extract_strided_slice %14 {offsets = [3, 0], sizes = [1, 256], strides = [1, 1]} : vector<4x256xf32> to vector<1x256xf32>
    %424 = vector.broadcast %422 : f32 to vector<1x256xf32>
    %425 = arith.mulf %423, %424 : vector<1x256xf32>
    %426 = arith.addf %418, %425 : vector<1x256xf32>
    %c36_i32_86 = arith.constant 36 : i32
    %427 = arith.addi %38, %c36_i32_86 : i32
    %c3_i32_87 = arith.constant 3 : i32
    %428 = arith.addi %427, %c3_i32_87 : i32
    %429 = arith.index_cast %428 : i32 to index
    %430 = memref.load %arg4[%429] : memref<1152xf32, #tpu.memory_space<smem>>
    %431 = vector.extract_strided_slice %18 {offsets = [0, 0], sizes = [1, 256], strides = [1, 1]} : vector<4x256xf32> to vector<1x256xf32>
    %432 = vector.broadcast %430 : f32 to vector<1x256xf32>
    %433 = arith.mulf %431, %432 : vector<1x256xf32>
    %434 = arith.addf %426, %433 : vector<1x256xf32>
    %c45_i32_88 = arith.constant 45 : i32
    %435 = arith.addi %38, %c45_i32_88 : i32
    %c3_i32_89 = arith.constant 3 : i32
    %436 = arith.addi %435, %c3_i32_89 : i32
    %437 = arith.index_cast %436 : i32 to index
    %438 = memref.load %arg4[%437] : memref<1152xf32, #tpu.memory_space<smem>>
    %439 = vector.extract_strided_slice %18 {offsets = [1, 0], sizes = [1, 256], strides = [1, 1]} : vector<4x256xf32> to vector<1x256xf32>
    %440 = vector.broadcast %438 : f32 to vector<1x256xf32>
    %441 = arith.mulf %439, %440 : vector<1x256xf32>
    %442 = arith.addf %434, %441 : vector<1x256xf32>
    %c54_i32_90 = arith.constant 54 : i32
    %443 = arith.addi %38, %c54_i32_90 : i32
    %c3_i32_91 = arith.constant 3 : i32
    %444 = arith.addi %443, %c3_i32_91 : i32
    %445 = arith.index_cast %444 : i32 to index
    %446 = memref.load %arg4[%445] : memref<1152xf32, #tpu.memory_space<smem>>
    %447 = vector.extract_strided_slice %18 {offsets = [2, 0], sizes = [1, 256], strides = [1, 1]} : vector<4x256xf32> to vector<1x256xf32>
    %448 = vector.broadcast %446 : f32 to vector<1x256xf32>
    %449 = arith.mulf %447, %448 : vector<1x256xf32>
    %450 = arith.addf %442, %449 : vector<1x256xf32>
    %c63_i32_92 = arith.constant 63 : i32
    %451 = arith.addi %38, %c63_i32_92 : i32
    %c3_i32_93 = arith.constant 3 : i32
    %452 = arith.addi %451, %c3_i32_93 : i32
    %453 = arith.index_cast %452 : i32 to index
    %454 = memref.load %arg4[%453] : memref<1152xf32, #tpu.memory_space<smem>>
    %455 = vector.extract_strided_slice %18 {offsets = [3, 0], sizes = [1, 256], strides = [1, 1]} : vector<4x256xf32> to vector<1x256xf32>
    %456 = vector.broadcast %454 : f32 to vector<1x256xf32>
    %457 = arith.mulf %455, %456 : vector<1x256xf32>
    %458 = arith.addf %450, %457 : vector<1x256xf32>
    %c36_i32_94 = arith.constant 36 : i32
    %459 = arith.addi %38, %c36_i32_94 : i32
    %c4_i32_95 = arith.constant 4 : i32
    %460 = arith.addi %459, %c4_i32_95 : i32
    %461 = arith.index_cast %460 : i32 to index
    %462 = memref.load %arg4[%461] : memref<1152xf32, #tpu.memory_space<smem>>
    %463 = vector.extract_strided_slice %21 {offsets = [0, 0], sizes = [1, 256], strides = [1, 1]} : vector<4x256xf32> to vector<1x256xf32>
    %464 = vector.broadcast %462 : f32 to vector<1x256xf32>
    %465 = arith.mulf %463, %464 : vector<1x256xf32>
    %466 = arith.addf %458, %465 : vector<1x256xf32>
    %c45_i32_96 = arith.constant 45 : i32
    %467 = arith.addi %38, %c45_i32_96 : i32
    %c4_i32_97 = arith.constant 4 : i32
    %468 = arith.addi %467, %c4_i32_97 : i32
    %469 = arith.index_cast %468 : i32 to index
    %470 = memref.load %arg4[%469] : memref<1152xf32, #tpu.memory_space<smem>>
    %471 = vector.extract_strided_slice %21 {offsets = [1, 0], sizes = [1, 256], strides = [1, 1]} : vector<4x256xf32> to vector<1x256xf32>
    %472 = vector.broadcast %470 : f32 to vector<1x256xf32>
    %473 = arith.mulf %471, %472 : vector<1x256xf32>
    %474 = arith.addf %466, %473 : vector<1x256xf32>
    %c54_i32_98 = arith.constant 54 : i32
    %475 = arith.addi %38, %c54_i32_98 : i32
    %c4_i32_99 = arith.constant 4 : i32
    %476 = arith.addi %475, %c4_i32_99 : i32
    %477 = arith.index_cast %476 : i32 to index
    %478 = memref.load %arg4[%477] : memref<1152xf32, #tpu.memory_space<smem>>
    %479 = vector.extract_strided_slice %21 {offsets = [2, 0], sizes = [1, 256], strides = [1, 1]} : vector<4x256xf32> to vector<1x256xf32>
    %480 = vector.broadcast %478 : f32 to vector<1x256xf32>
    %481 = arith.mulf %479, %480 : vector<1x256xf32>
    %482 = arith.addf %474, %481 : vector<1x256xf32>
    %c63_i32_100 = arith.constant 63 : i32
    %483 = arith.addi %38, %c63_i32_100 : i32
    %c4_i32_101 = arith.constant 4 : i32
    %484 = arith.addi %483, %c4_i32_101 : i32
    %485 = arith.index_cast %484 : i32 to index
    %486 = memref.load %arg4[%485] : memref<1152xf32, #tpu.memory_space<smem>>
    %487 = vector.extract_strided_slice %21 {offsets = [3, 0], sizes = [1, 256], strides = [1, 1]} : vector<4x256xf32> to vector<1x256xf32>
    %488 = vector.broadcast %486 : f32 to vector<1x256xf32>
    %489 = arith.mulf %487, %488 : vector<1x256xf32>
    %490 = arith.addf %482, %489 : vector<1x256xf32>
    %c36_i32_102 = arith.constant 36 : i32
    %491 = arith.addi %38, %c36_i32_102 : i32
    %c5_i32_103 = arith.constant 5 : i32
    %492 = arith.addi %491, %c5_i32_103 : i32
    %493 = arith.index_cast %492 : i32 to index
    %494 = memref.load %arg4[%493] : memref<1152xf32, #tpu.memory_space<smem>>
    %495 = vector.extract_strided_slice %25 {offsets = [0, 0], sizes = [1, 256], strides = [1, 1]} : vector<4x256xf32> to vector<1x256xf32>
    %496 = vector.broadcast %494 : f32 to vector<1x256xf32>
    %497 = arith.mulf %495, %496 : vector<1x256xf32>
    %498 = arith.addf %490, %497 : vector<1x256xf32>
    %c45_i32_104 = arith.constant 45 : i32
    %499 = arith.addi %38, %c45_i32_104 : i32
    %c5_i32_105 = arith.constant 5 : i32
    %500 = arith.addi %499, %c5_i32_105 : i32
    %501 = arith.index_cast %500 : i32 to index
    %502 = memref.load %arg4[%501] : memref<1152xf32, #tpu.memory_space<smem>>
    %503 = vector.extract_strided_slice %25 {offsets = [1, 0], sizes = [1, 256], strides = [1, 1]} : vector<4x256xf32> to vector<1x256xf32>
    %504 = vector.broadcast %502 : f32 to vector<1x256xf32>
    %505 = arith.mulf %503, %504 : vector<1x256xf32>
    %506 = arith.addf %498, %505 : vector<1x256xf32>
    %c54_i32_106 = arith.constant 54 : i32
    %507 = arith.addi %38, %c54_i32_106 : i32
    %c5_i32_107 = arith.constant 5 : i32
    %508 = arith.addi %507, %c5_i32_107 : i32
    %509 = arith.index_cast %508 : i32 to index
    %510 = memref.load %arg4[%509] : memref<1152xf32, #tpu.memory_space<smem>>
    %511 = vector.extract_strided_slice %25 {offsets = [2, 0], sizes = [1, 256], strides = [1, 1]} : vector<4x256xf32> to vector<1x256xf32>
    %512 = vector.broadcast %510 : f32 to vector<1x256xf32>
    %513 = arith.mulf %511, %512 : vector<1x256xf32>
    %514 = arith.addf %506, %513 : vector<1x256xf32>
    %c63_i32_108 = arith.constant 63 : i32
    %515 = arith.addi %38, %c63_i32_108 : i32
    %c5_i32_109 = arith.constant 5 : i32
    %516 = arith.addi %515, %c5_i32_109 : i32
    %517 = arith.index_cast %516 : i32 to index
    %518 = memref.load %arg4[%517] : memref<1152xf32, #tpu.memory_space<smem>>
    %519 = vector.extract_strided_slice %25 {offsets = [3, 0], sizes = [1, 256], strides = [1, 1]} : vector<4x256xf32> to vector<1x256xf32>
    %520 = vector.broadcast %518 : f32 to vector<1x256xf32>
    %521 = arith.mulf %519, %520 : vector<1x256xf32>
    %522 = arith.addf %514, %521 : vector<1x256xf32>
    %c36_i32_110 = arith.constant 36 : i32
    %523 = arith.addi %38, %c36_i32_110 : i32
    %c6_i32_111 = arith.constant 6 : i32
    %524 = arith.addi %523, %c6_i32_111 : i32
    %525 = arith.index_cast %524 : i32 to index
    %526 = memref.load %arg4[%525] : memref<1152xf32, #tpu.memory_space<smem>>
    %527 = vector.extract_strided_slice %29 {offsets = [0, 0], sizes = [1, 256], strides = [1, 1]} : vector<4x256xf32> to vector<1x256xf32>
    %528 = vector.broadcast %526 : f32 to vector<1x256xf32>
    %529 = arith.mulf %527, %528 : vector<1x256xf32>
    %530 = arith.addf %522, %529 : vector<1x256xf32>
    %c45_i32_112 = arith.constant 45 : i32
    %531 = arith.addi %38, %c45_i32_112 : i32
    %c6_i32_113 = arith.constant 6 : i32
    %532 = arith.addi %531, %c6_i32_113 : i32
    %533 = arith.index_cast %532 : i32 to index
    %534 = memref.load %arg4[%533] : memref<1152xf32, #tpu.memory_space<smem>>
    %535 = vector.extract_strided_slice %29 {offsets = [1, 0], sizes = [1, 256], strides = [1, 1]} : vector<4x256xf32> to vector<1x256xf32>
    %536 = vector.broadcast %534 : f32 to vector<1x256xf32>
    %537 = arith.mulf %535, %536 : vector<1x256xf32>
    %538 = arith.addf %530, %537 : vector<1x256xf32>
    %c54_i32_114 = arith.constant 54 : i32
    %539 = arith.addi %38, %c54_i32_114 : i32
    %c6_i32_115 = arith.constant 6 : i32
    %540 = arith.addi %539, %c6_i32_115 : i32
    %541 = arith.index_cast %540 : i32 to index
    %542 = memref.load %arg4[%541] : memref<1152xf32, #tpu.memory_space<smem>>
    %543 = vector.extract_strided_slice %29 {offsets = [2, 0], sizes = [1, 256], strides = [1, 1]} : vector<4x256xf32> to vector<1x256xf32>
    %544 = vector.broadcast %542 : f32 to vector<1x256xf32>
    %545 = arith.mulf %543, %544 : vector<1x256xf32>
    %546 = arith.addf %538, %545 : vector<1x256xf32>
    %c63_i32_116 = arith.constant 63 : i32
    %547 = arith.addi %38, %c63_i32_116 : i32
    %c6_i32_117 = arith.constant 6 : i32
    %548 = arith.addi %547, %c6_i32_117 : i32
    %549 = arith.index_cast %548 : i32 to index
    %550 = memref.load %arg4[%549] : memref<1152xf32, #tpu.memory_space<smem>>
    %551 = vector.extract_strided_slice %29 {offsets = [3, 0], sizes = [1, 256], strides = [1, 1]} : vector<4x256xf32> to vector<1x256xf32>
    %552 = vector.broadcast %550 : f32 to vector<1x256xf32>
    %553 = arith.mulf %551, %552 : vector<1x256xf32>
    %554 = arith.addf %546, %553 : vector<1x256xf32>
    %c36_i32_118 = arith.constant 36 : i32
    %555 = arith.addi %38, %c36_i32_118 : i32
    %c7_i32_119 = arith.constant 7 : i32
    %556 = arith.addi %555, %c7_i32_119 : i32
    %557 = arith.index_cast %556 : i32 to index
    %558 = memref.load %arg4[%557] : memref<1152xf32, #tpu.memory_space<smem>>
    %559 = vector.extract_strided_slice %33 {offsets = [0, 0], sizes = [1, 256], strides = [1, 1]} : vector<4x256xf32> to vector<1x256xf32>
    %560 = vector.broadcast %558 : f32 to vector<1x256xf32>
    %561 = arith.mulf %559, %560 : vector<1x256xf32>
    %562 = arith.addf %554, %561 : vector<1x256xf32>
    %c45_i32_120 = arith.constant 45 : i32
    %563 = arith.addi %38, %c45_i32_120 : i32
    %c7_i32_121 = arith.constant 7 : i32
    %564 = arith.addi %563, %c7_i32_121 : i32
    %565 = arith.index_cast %564 : i32 to index
    %566 = memref.load %arg4[%565] : memref<1152xf32, #tpu.memory_space<smem>>
    %567 = vector.extract_strided_slice %33 {offsets = [1, 0], sizes = [1, 256], strides = [1, 1]} : vector<4x256xf32> to vector<1x256xf32>
    %568 = vector.broadcast %566 : f32 to vector<1x256xf32>
    %569 = arith.mulf %567, %568 : vector<1x256xf32>
    %570 = arith.addf %562, %569 : vector<1x256xf32>
    %c54_i32_122 = arith.constant 54 : i32
    %571 = arith.addi %38, %c54_i32_122 : i32
    %c7_i32_123 = arith.constant 7 : i32
    %572 = arith.addi %571, %c7_i32_123 : i32
    %573 = arith.index_cast %572 : i32 to index
    %574 = memref.load %arg4[%573] : memref<1152xf32, #tpu.memory_space<smem>>
    %575 = vector.extract_strided_slice %33 {offsets = [2, 0], sizes = [1, 256], strides = [1, 1]} : vector<4x256xf32> to vector<1x256xf32>
    %576 = vector.broadcast %574 : f32 to vector<1x256xf32>
    %577 = arith.mulf %575, %576 : vector<1x256xf32>
    %578 = arith.addf %570, %577 : vector<1x256xf32>
    %c63_i32_124 = arith.constant 63 : i32
    %579 = arith.addi %38, %c63_i32_124 : i32
    %c7_i32_125 = arith.constant 7 : i32
    %580 = arith.addi %579, %c7_i32_125 : i32
    %581 = arith.index_cast %580 : i32 to index
    %582 = memref.load %arg4[%581] : memref<1152xf32, #tpu.memory_space<smem>>
    %583 = vector.extract_strided_slice %33 {offsets = [3, 0], sizes = [1, 256], strides = [1, 1]} : vector<4x256xf32> to vector<1x256xf32>
    %584 = vector.broadcast %582 : f32 to vector<1x256xf32>
    %585 = arith.mulf %583, %584 : vector<1x256xf32>
    %586 = arith.addf %578, %585 : vector<1x256xf32>
    %c36_i32_126 = arith.constant 36 : i32
    %587 = arith.addi %38, %c36_i32_126 : i32
    %c8_i32_127 = arith.constant 8 : i32
    %588 = arith.addi %587, %c8_i32_127 : i32
    %589 = arith.index_cast %588 : i32 to index
    %590 = memref.load %arg4[%589] : memref<1152xf32, #tpu.memory_space<smem>>
    %591 = vector.extract_strided_slice %37 {offsets = [0, 0], sizes = [1, 256], strides = [1, 1]} : vector<4x256xf32> to vector<1x256xf32>
    %592 = vector.broadcast %590 : f32 to vector<1x256xf32>
    %593 = arith.mulf %591, %592 : vector<1x256xf32>
    %594 = arith.addf %586, %593 : vector<1x256xf32>
    %c45_i32_128 = arith.constant 45 : i32
    %595 = arith.addi %38, %c45_i32_128 : i32
    %c8_i32_129 = arith.constant 8 : i32
    %596 = arith.addi %595, %c8_i32_129 : i32
    %597 = arith.index_cast %596 : i32 to index
    %598 = memref.load %arg4[%597] : memref<1152xf32, #tpu.memory_space<smem>>
    %599 = vector.extract_strided_slice %37 {offsets = [1, 0], sizes = [1, 256], strides = [1, 1]} : vector<4x256xf32> to vector<1x256xf32>
    %600 = vector.broadcast %598 : f32 to vector<1x256xf32>
    %601 = arith.mulf %599, %600 : vector<1x256xf32>
    %602 = arith.addf %594, %601 : vector<1x256xf32>
    %c54_i32_130 = arith.constant 54 : i32
    %603 = arith.addi %38, %c54_i32_130 : i32
    %c8_i32_131 = arith.constant 8 : i32
    %604 = arith.addi %603, %c8_i32_131 : i32
    %605 = arith.index_cast %604 : i32 to index
    %606 = memref.load %arg4[%605] : memref<1152xf32, #tpu.memory_space<smem>>
    %607 = vector.extract_strided_slice %37 {offsets = [2, 0], sizes = [1, 256], strides = [1, 1]} : vector<4x256xf32> to vector<1x256xf32>
    %608 = vector.broadcast %606 : f32 to vector<1x256xf32>
    %609 = arith.mulf %607, %608 : vector<1x256xf32>
    %610 = arith.addf %602, %609 : vector<1x256xf32>
    %c63_i32_132 = arith.constant 63 : i32
    %611 = arith.addi %38, %c63_i32_132 : i32
    %c8_i32_133 = arith.constant 8 : i32
    %612 = arith.addi %611, %c8_i32_133 : i32
    %613 = arith.index_cast %612 : i32 to index
    %614 = memref.load %arg4[%613] : memref<1152xf32, #tpu.memory_space<smem>>
    %615 = vector.extract_strided_slice %37 {offsets = [3, 0], sizes = [1, 256], strides = [1, 1]} : vector<4x256xf32> to vector<1x256xf32>
    %616 = vector.broadcast %614 : f32 to vector<1x256xf32>
    %617 = arith.mulf %615, %616 : vector<1x256xf32>
    %618 = arith.addf %610, %617 : vector<1x256xf32>
    %c2 = arith.constant 2 : index
    %619 = memref.load %arg5[%c2] : memref<4xf32, #tpu.memory_space<smem>>
    %620 = vector.broadcast %619 : f32 to vector<1x256xf32>
    %c72_i32 = arith.constant 72 : i32
    %621 = arith.addi %38, %c72_i32 : i32
    %c0_i32_134 = arith.constant 0 : i32
    %622 = arith.addi %621, %c0_i32_134 : i32
    %623 = arith.index_cast %622 : i32 to index
    %624 = memref.load %arg4[%623] : memref<1152xf32, #tpu.memory_space<smem>>
    %625 = vector.extract_strided_slice %6 {offsets = [0, 0], sizes = [1, 256], strides = [1, 1]} : vector<4x256xf32> to vector<1x256xf32>
    %626 = vector.broadcast %624 : f32 to vector<1x256xf32>
    %627 = arith.mulf %625, %626 : vector<1x256xf32>
    %628 = arith.addf %620, %627 : vector<1x256xf32>
    %c81_i32 = arith.constant 81 : i32
    %629 = arith.addi %38, %c81_i32 : i32
    %c0_i32_135 = arith.constant 0 : i32
    %630 = arith.addi %629, %c0_i32_135 : i32
    %631 = arith.index_cast %630 : i32 to index
    %632 = memref.load %arg4[%631] : memref<1152xf32, #tpu.memory_space<smem>>
    %633 = vector.extract_strided_slice %6 {offsets = [1, 0], sizes = [1, 256], strides = [1, 1]} : vector<4x256xf32> to vector<1x256xf32>
    %634 = vector.broadcast %632 : f32 to vector<1x256xf32>
    %635 = arith.mulf %633, %634 : vector<1x256xf32>
    %636 = arith.addf %628, %635 : vector<1x256xf32>
    %c90_i32 = arith.constant 90 : i32
    %637 = arith.addi %38, %c90_i32 : i32
    %c0_i32_136 = arith.constant 0 : i32
    %638 = arith.addi %637, %c0_i32_136 : i32
    %639 = arith.index_cast %638 : i32 to index
    %640 = memref.load %arg4[%639] : memref<1152xf32, #tpu.memory_space<smem>>
    %641 = vector.extract_strided_slice %6 {offsets = [2, 0], sizes = [1, 256], strides = [1, 1]} : vector<4x256xf32> to vector<1x256xf32>
    %642 = vector.broadcast %640 : f32 to vector<1x256xf32>
    %643 = arith.mulf %641, %642 : vector<1x256xf32>
    %644 = arith.addf %636, %643 : vector<1x256xf32>
    %c99_i32 = arith.constant 99 : i32
    %645 = arith.addi %38, %c99_i32 : i32
    %c0_i32_137 = arith.constant 0 : i32
    %646 = arith.addi %645, %c0_i32_137 : i32
    %647 = arith.index_cast %646 : i32 to index
    %648 = memref.load %arg4[%647] : memref<1152xf32, #tpu.memory_space<smem>>
    %649 = vector.extract_strided_slice %6 {offsets = [3, 0], sizes = [1, 256], strides = [1, 1]} : vector<4x256xf32> to vector<1x256xf32>
    %650 = vector.broadcast %648 : f32 to vector<1x256xf32>
    %651 = arith.mulf %649, %650 : vector<1x256xf32>
    %652 = arith.addf %644, %651 : vector<1x256xf32>
    %c72_i32_138 = arith.constant 72 : i32
    %653 = arith.addi %38, %c72_i32_138 : i32
    %c1_i32_139 = arith.constant 1 : i32
    %654 = arith.addi %653, %c1_i32_139 : i32
    %655 = arith.index_cast %654 : i32 to index
    %656 = memref.load %arg4[%655] : memref<1152xf32, #tpu.memory_space<smem>>
    %657 = vector.extract_strided_slice %10 {offsets = [0, 0], sizes = [1, 256], strides = [1, 1]} : vector<4x256xf32> to vector<1x256xf32>
    %658 = vector.broadcast %656 : f32 to vector<1x256xf32>
    %659 = arith.mulf %657, %658 : vector<1x256xf32>
    %660 = arith.addf %652, %659 : vector<1x256xf32>
    %c81_i32_140 = arith.constant 81 : i32
    %661 = arith.addi %38, %c81_i32_140 : i32
    %c1_i32_141 = arith.constant 1 : i32
    %662 = arith.addi %661, %c1_i32_141 : i32
    %663 = arith.index_cast %662 : i32 to index
    %664 = memref.load %arg4[%663] : memref<1152xf32, #tpu.memory_space<smem>>
    %665 = vector.extract_strided_slice %10 {offsets = [1, 0], sizes = [1, 256], strides = [1, 1]} : vector<4x256xf32> to vector<1x256xf32>
    %666 = vector.broadcast %664 : f32 to vector<1x256xf32>
    %667 = arith.mulf %665, %666 : vector<1x256xf32>
    %668 = arith.addf %660, %667 : vector<1x256xf32>
    %c90_i32_142 = arith.constant 90 : i32
    %669 = arith.addi %38, %c90_i32_142 : i32
    %c1_i32_143 = arith.constant 1 : i32
    %670 = arith.addi %669, %c1_i32_143 : i32
    %671 = arith.index_cast %670 : i32 to index
    %672 = memref.load %arg4[%671] : memref<1152xf32, #tpu.memory_space<smem>>
    %673 = vector.extract_strided_slice %10 {offsets = [2, 0], sizes = [1, 256], strides = [1, 1]} : vector<4x256xf32> to vector<1x256xf32>
    %674 = vector.broadcast %672 : f32 to vector<1x256xf32>
    %675 = arith.mulf %673, %674 : vector<1x256xf32>
    %676 = arith.addf %668, %675 : vector<1x256xf32>
    %c99_i32_144 = arith.constant 99 : i32
    %677 = arith.addi %38, %c99_i32_144 : i32
    %c1_i32_145 = arith.constant 1 : i32
    %678 = arith.addi %677, %c1_i32_145 : i32
    %679 = arith.index_cast %678 : i32 to index
    %680 = memref.load %arg4[%679] : memref<1152xf32, #tpu.memory_space<smem>>
    %681 = vector.extract_strided_slice %10 {offsets = [3, 0], sizes = [1, 256], strides = [1, 1]} : vector<4x256xf32> to vector<1x256xf32>
    %682 = vector.broadcast %680 : f32 to vector<1x256xf32>
    %683 = arith.mulf %681, %682 : vector<1x256xf32>
    %684 = arith.addf %676, %683 : vector<1x256xf32>
    %c72_i32_146 = arith.constant 72 : i32
    %685 = arith.addi %38, %c72_i32_146 : i32
    %c2_i32_147 = arith.constant 2 : i32
    %686 = arith.addi %685, %c2_i32_147 : i32
    %687 = arith.index_cast %686 : i32 to index
    %688 = memref.load %arg4[%687] : memref<1152xf32, #tpu.memory_space<smem>>
    %689 = vector.extract_strided_slice %14 {offsets = [0, 0], sizes = [1, 256], strides = [1, 1]} : vector<4x256xf32> to vector<1x256xf32>
    %690 = vector.broadcast %688 : f32 to vector<1x256xf32>
    %691 = arith.mulf %689, %690 : vector<1x256xf32>
    %692 = arith.addf %684, %691 : vector<1x256xf32>
    %c81_i32_148 = arith.constant 81 : i32
    %693 = arith.addi %38, %c81_i32_148 : i32
    %c2_i32_149 = arith.constant 2 : i32
    %694 = arith.addi %693, %c2_i32_149 : i32
    %695 = arith.index_cast %694 : i32 to index
    %696 = memref.load %arg4[%695] : memref<1152xf32, #tpu.memory_space<smem>>
    %697 = vector.extract_strided_slice %14 {offsets = [1, 0], sizes = [1, 256], strides = [1, 1]} : vector<4x256xf32> to vector<1x256xf32>
    %698 = vector.broadcast %696 : f32 to vector<1x256xf32>
    %699 = arith.mulf %697, %698 : vector<1x256xf32>
    %700 = arith.addf %692, %699 : vector<1x256xf32>
    %c90_i32_150 = arith.constant 90 : i32
    %701 = arith.addi %38, %c90_i32_150 : i32
    %c2_i32_151 = arith.constant 2 : i32
    %702 = arith.addi %701, %c2_i32_151 : i32
    %703 = arith.index_cast %702 : i32 to index
    %704 = memref.load %arg4[%703] : memref<1152xf32, #tpu.memory_space<smem>>
    %705 = vector.extract_strided_slice %14 {offsets = [2, 0], sizes = [1, 256], strides = [1, 1]} : vector<4x256xf32> to vector<1x256xf32>
    %706 = vector.broadcast %704 : f32 to vector<1x256xf32>
    %707 = arith.mulf %705, %706 : vector<1x256xf32>
    %708 = arith.addf %700, %707 : vector<1x256xf32>
    %c99_i32_152 = arith.constant 99 : i32
    %709 = arith.addi %38, %c99_i32_152 : i32
    %c2_i32_153 = arith.constant 2 : i32
    %710 = arith.addi %709, %c2_i32_153 : i32
    %711 = arith.index_cast %710 : i32 to index
    %712 = memref.load %arg4[%711] : memref<1152xf32, #tpu.memory_space<smem>>
    %713 = vector.extract_strided_slice %14 {offsets = [3, 0], sizes = [1, 256], strides = [1, 1]} : vector<4x256xf32> to vector<1x256xf32>
    %714 = vector.broadcast %712 : f32 to vector<1x256xf32>
    %715 = arith.mulf %713, %714 : vector<1x256xf32>
    %716 = arith.addf %708, %715 : vector<1x256xf32>
    %c72_i32_154 = arith.constant 72 : i32
    %717 = arith.addi %38, %c72_i32_154 : i32
    %c3_i32_155 = arith.constant 3 : i32
    %718 = arith.addi %717, %c3_i32_155 : i32
    %719 = arith.index_cast %718 : i32 to index
    %720 = memref.load %arg4[%719] : memref<1152xf32, #tpu.memory_space<smem>>
    %721 = vector.extract_strided_slice %18 {offsets = [0, 0], sizes = [1, 256], strides = [1, 1]} : vector<4x256xf32> to vector<1x256xf32>
    %722 = vector.broadcast %720 : f32 to vector<1x256xf32>
    %723 = arith.mulf %721, %722 : vector<1x256xf32>
    %724 = arith.addf %716, %723 : vector<1x256xf32>
    %c81_i32_156 = arith.constant 81 : i32
    %725 = arith.addi %38, %c81_i32_156 : i32
    %c3_i32_157 = arith.constant 3 : i32
    %726 = arith.addi %725, %c3_i32_157 : i32
    %727 = arith.index_cast %726 : i32 to index
    %728 = memref.load %arg4[%727] : memref<1152xf32, #tpu.memory_space<smem>>
    %729 = vector.extract_strided_slice %18 {offsets = [1, 0], sizes = [1, 256], strides = [1, 1]} : vector<4x256xf32> to vector<1x256xf32>
    %730 = vector.broadcast %728 : f32 to vector<1x256xf32>
    %731 = arith.mulf %729, %730 : vector<1x256xf32>
    %732 = arith.addf %724, %731 : vector<1x256xf32>
    %c90_i32_158 = arith.constant 90 : i32
    %733 = arith.addi %38, %c90_i32_158 : i32
    %c3_i32_159 = arith.constant 3 : i32
    %734 = arith.addi %733, %c3_i32_159 : i32
    %735 = arith.index_cast %734 : i32 to index
    %736 = memref.load %arg4[%735] : memref<1152xf32, #tpu.memory_space<smem>>
    %737 = vector.extract_strided_slice %18 {offsets = [2, 0], sizes = [1, 256], strides = [1, 1]} : vector<4x256xf32> to vector<1x256xf32>
    %738 = vector.broadcast %736 : f32 to vector<1x256xf32>
    %739 = arith.mulf %737, %738 : vector<1x256xf32>
    %740 = arith.addf %732, %739 : vector<1x256xf32>
    %c99_i32_160 = arith.constant 99 : i32
    %741 = arith.addi %38, %c99_i32_160 : i32
    %c3_i32_161 = arith.constant 3 : i32
    %742 = arith.addi %741, %c3_i32_161 : i32
    %743 = arith.index_cast %742 : i32 to index
    %744 = memref.load %arg4[%743] : memref<1152xf32, #tpu.memory_space<smem>>
    %745 = vector.extract_strided_slice %18 {offsets = [3, 0], sizes = [1, 256], strides = [1, 1]} : vector<4x256xf32> to vector<1x256xf32>
    %746 = vector.broadcast %744 : f32 to vector<1x256xf32>
    %747 = arith.mulf %745, %746 : vector<1x256xf32>
    %748 = arith.addf %740, %747 : vector<1x256xf32>
    %c72_i32_162 = arith.constant 72 : i32
    %749 = arith.addi %38, %c72_i32_162 : i32
    %c4_i32_163 = arith.constant 4 : i32
    %750 = arith.addi %749, %c4_i32_163 : i32
    %751 = arith.index_cast %750 : i32 to index
    %752 = memref.load %arg4[%751] : memref<1152xf32, #tpu.memory_space<smem>>
    %753 = vector.extract_strided_slice %21 {offsets = [0, 0], sizes = [1, 256], strides = [1, 1]} : vector<4x256xf32> to vector<1x256xf32>
    %754 = vector.broadcast %752 : f32 to vector<1x256xf32>
    %755 = arith.mulf %753, %754 : vector<1x256xf32>
    %756 = arith.addf %748, %755 : vector<1x256xf32>
    %c81_i32_164 = arith.constant 81 : i32
    %757 = arith.addi %38, %c81_i32_164 : i32
    %c4_i32_165 = arith.constant 4 : i32
    %758 = arith.addi %757, %c4_i32_165 : i32
    %759 = arith.index_cast %758 : i32 to index
    %760 = memref.load %arg4[%759] : memref<1152xf32, #tpu.memory_space<smem>>
    %761 = vector.extract_strided_slice %21 {offsets = [1, 0], sizes = [1, 256], strides = [1, 1]} : vector<4x256xf32> to vector<1x256xf32>
    %762 = vector.broadcast %760 : f32 to vector<1x256xf32>
    %763 = arith.mulf %761, %762 : vector<1x256xf32>
    %764 = arith.addf %756, %763 : vector<1x256xf32>
    %c90_i32_166 = arith.constant 90 : i32
    %765 = arith.addi %38, %c90_i32_166 : i32
    %c4_i32_167 = arith.constant 4 : i32
    %766 = arith.addi %765, %c4_i32_167 : i32
    %767 = arith.index_cast %766 : i32 to index
    %768 = memref.load %arg4[%767] : memref<1152xf32, #tpu.memory_space<smem>>
    %769 = vector.extract_strided_slice %21 {offsets = [2, 0], sizes = [1, 256], strides = [1, 1]} : vector<4x256xf32> to vector<1x256xf32>
    %770 = vector.broadcast %768 : f32 to vector<1x256xf32>
    %771 = arith.mulf %769, %770 : vector<1x256xf32>
    %772 = arith.addf %764, %771 : vector<1x256xf32>
    %c99_i32_168 = arith.constant 99 : i32
    %773 = arith.addi %38, %c99_i32_168 : i32
    %c4_i32_169 = arith.constant 4 : i32
    %774 = arith.addi %773, %c4_i32_169 : i32
    %775 = arith.index_cast %774 : i32 to index
    %776 = memref.load %arg4[%775] : memref<1152xf32, #tpu.memory_space<smem>>
    %777 = vector.extract_strided_slice %21 {offsets = [3, 0], sizes = [1, 256], strides = [1, 1]} : vector<4x256xf32> to vector<1x256xf32>
    %778 = vector.broadcast %776 : f32 to vector<1x256xf32>
    %779 = arith.mulf %777, %778 : vector<1x256xf32>
    %780 = arith.addf %772, %779 : vector<1x256xf32>
    %c72_i32_170 = arith.constant 72 : i32
    %781 = arith.addi %38, %c72_i32_170 : i32
    %c5_i32_171 = arith.constant 5 : i32
    %782 = arith.addi %781, %c5_i32_171 : i32
    %783 = arith.index_cast %782 : i32 to index
    %784 = memref.load %arg4[%783] : memref<1152xf32, #tpu.memory_space<smem>>
    %785 = vector.extract_strided_slice %25 {offsets = [0, 0], sizes = [1, 256], strides = [1, 1]} : vector<4x256xf32> to vector<1x256xf32>
    %786 = vector.broadcast %784 : f32 to vector<1x256xf32>
    %787 = arith.mulf %785, %786 : vector<1x256xf32>
    %788 = arith.addf %780, %787 : vector<1x256xf32>
    %c81_i32_172 = arith.constant 81 : i32
    %789 = arith.addi %38, %c81_i32_172 : i32
    %c5_i32_173 = arith.constant 5 : i32
    %790 = arith.addi %789, %c5_i32_173 : i32
    %791 = arith.index_cast %790 : i32 to index
    %792 = memref.load %arg4[%791] : memref<1152xf32, #tpu.memory_space<smem>>
    %793 = vector.extract_strided_slice %25 {offsets = [1, 0], sizes = [1, 256], strides = [1, 1]} : vector<4x256xf32> to vector<1x256xf32>
    %794 = vector.broadcast %792 : f32 to vector<1x256xf32>
    %795 = arith.mulf %793, %794 : vector<1x256xf32>
    %796 = arith.addf %788, %795 : vector<1x256xf32>
    %c90_i32_174 = arith.constant 90 : i32
    %797 = arith.addi %38, %c90_i32_174 : i32
    %c5_i32_175 = arith.constant 5 : i32
    %798 = arith.addi %797, %c5_i32_175 : i32
    %799 = arith.index_cast %798 : i32 to index
    %800 = memref.load %arg4[%799] : memref<1152xf32, #tpu.memory_space<smem>>
    %801 = vector.extract_strided_slice %25 {offsets = [2, 0], sizes = [1, 256], strides = [1, 1]} : vector<4x256xf32> to vector<1x256xf32>
    %802 = vector.broadcast %800 : f32 to vector<1x256xf32>
    %803 = arith.mulf %801, %802 : vector<1x256xf32>
    %804 = arith.addf %796, %803 : vector<1x256xf32>
    %c99_i32_176 = arith.constant 99 : i32
    %805 = arith.addi %38, %c99_i32_176 : i32
    %c5_i32_177 = arith.constant 5 : i32
    %806 = arith.addi %805, %c5_i32_177 : i32
    %807 = arith.index_cast %806 : i32 to index
    %808 = memref.load %arg4[%807] : memref<1152xf32, #tpu.memory_space<smem>>
    %809 = vector.extract_strided_slice %25 {offsets = [3, 0], sizes = [1, 256], strides = [1, 1]} : vector<4x256xf32> to vector<1x256xf32>
    %810 = vector.broadcast %808 : f32 to vector<1x256xf32>
    %811 = arith.mulf %809, %810 : vector<1x256xf32>
    %812 = arith.addf %804, %811 : vector<1x256xf32>
    %c72_i32_178 = arith.constant 72 : i32
    %813 = arith.addi %38, %c72_i32_178 : i32
    %c6_i32_179 = arith.constant 6 : i32
    %814 = arith.addi %813, %c6_i32_179 : i32
    %815 = arith.index_cast %814 : i32 to index
    %816 = memref.load %arg4[%815] : memref<1152xf32, #tpu.memory_space<smem>>
    %817 = vector.extract_strided_slice %29 {offsets = [0, 0], sizes = [1, 256], strides = [1, 1]} : vector<4x256xf32> to vector<1x256xf32>
    %818 = vector.broadcast %816 : f32 to vector<1x256xf32>
    %819 = arith.mulf %817, %818 : vector<1x256xf32>
    %820 = arith.addf %812, %819 : vector<1x256xf32>
    %c81_i32_180 = arith.constant 81 : i32
    %821 = arith.addi %38, %c81_i32_180 : i32
    %c6_i32_181 = arith.constant 6 : i32
    %822 = arith.addi %821, %c6_i32_181 : i32
    %823 = arith.index_cast %822 : i32 to index
    %824 = memref.load %arg4[%823] : memref<1152xf32, #tpu.memory_space<smem>>
    %825 = vector.extract_strided_slice %29 {offsets = [1, 0], sizes = [1, 256], strides = [1, 1]} : vector<4x256xf32> to vector<1x256xf32>
    %826 = vector.broadcast %824 : f32 to vector<1x256xf32>
    %827 = arith.mulf %825, %826 : vector<1x256xf32>
    %828 = arith.addf %820, %827 : vector<1x256xf32>
    %c90_i32_182 = arith.constant 90 : i32
    %829 = arith.addi %38, %c90_i32_182 : i32
    %c6_i32_183 = arith.constant 6 : i32
    %830 = arith.addi %829, %c6_i32_183 : i32
    %831 = arith.index_cast %830 : i32 to index
    %832 = memref.load %arg4[%831] : memref<1152xf32, #tpu.memory_space<smem>>
    %833 = vector.extract_strided_slice %29 {offsets = [2, 0], sizes = [1, 256], strides = [1, 1]} : vector<4x256xf32> to vector<1x256xf32>
    %834 = vector.broadcast %832 : f32 to vector<1x256xf32>
    %835 = arith.mulf %833, %834 : vector<1x256xf32>
    %836 = arith.addf %828, %835 : vector<1x256xf32>
    %c99_i32_184 = arith.constant 99 : i32
    %837 = arith.addi %38, %c99_i32_184 : i32
    %c6_i32_185 = arith.constant 6 : i32
    %838 = arith.addi %837, %c6_i32_185 : i32
    %839 = arith.index_cast %838 : i32 to index
    %840 = memref.load %arg4[%839] : memref<1152xf32, #tpu.memory_space<smem>>
    %841 = vector.extract_strided_slice %29 {offsets = [3, 0], sizes = [1, 256], strides = [1, 1]} : vector<4x256xf32> to vector<1x256xf32>
    %842 = vector.broadcast %840 : f32 to vector<1x256xf32>
    %843 = arith.mulf %841, %842 : vector<1x256xf32>
    %844 = arith.addf %836, %843 : vector<1x256xf32>
    %c72_i32_186 = arith.constant 72 : i32
    %845 = arith.addi %38, %c72_i32_186 : i32
    %c7_i32_187 = arith.constant 7 : i32
    %846 = arith.addi %845, %c7_i32_187 : i32
    %847 = arith.index_cast %846 : i32 to index
    %848 = memref.load %arg4[%847] : memref<1152xf32, #tpu.memory_space<smem>>
    %849 = vector.extract_strided_slice %33 {offsets = [0, 0], sizes = [1, 256], strides = [1, 1]} : vector<4x256xf32> to vector<1x256xf32>
    %850 = vector.broadcast %848 : f32 to vector<1x256xf32>
    %851 = arith.mulf %849, %850 : vector<1x256xf32>
    %852 = arith.addf %844, %851 : vector<1x256xf32>
    %c81_i32_188 = arith.constant 81 : i32
    %853 = arith.addi %38, %c81_i32_188 : i32
    %c7_i32_189 = arith.constant 7 : i32
    %854 = arith.addi %853, %c7_i32_189 : i32
    %855 = arith.index_cast %854 : i32 to index
    %856 = memref.load %arg4[%855] : memref<1152xf32, #tpu.memory_space<smem>>
    %857 = vector.extract_strided_slice %33 {offsets = [1, 0], sizes = [1, 256], strides = [1, 1]} : vector<4x256xf32> to vector<1x256xf32>
    %858 = vector.broadcast %856 : f32 to vector<1x256xf32>
    %859 = arith.mulf %857, %858 : vector<1x256xf32>
    %860 = arith.addf %852, %859 : vector<1x256xf32>
    %c90_i32_190 = arith.constant 90 : i32
    %861 = arith.addi %38, %c90_i32_190 : i32
    %c7_i32_191 = arith.constant 7 : i32
    %862 = arith.addi %861, %c7_i32_191 : i32
    %863 = arith.index_cast %862 : i32 to index
    %864 = memref.load %arg4[%863] : memref<1152xf32, #tpu.memory_space<smem>>
    %865 = vector.extract_strided_slice %33 {offsets = [2, 0], sizes = [1, 256], strides = [1, 1]} : vector<4x256xf32> to vector<1x256xf32>
    %866 = vector.broadcast %864 : f32 to vector<1x256xf32>
    %867 = arith.mulf %865, %866 : vector<1x256xf32>
    %868 = arith.addf %860, %867 : vector<1x256xf32>
    %c99_i32_192 = arith.constant 99 : i32
    %869 = arith.addi %38, %c99_i32_192 : i32
    %c7_i32_193 = arith.constant 7 : i32
    %870 = arith.addi %869, %c7_i32_193 : i32
    %871 = arith.index_cast %870 : i32 to index
    %872 = memref.load %arg4[%871] : memref<1152xf32, #tpu.memory_space<smem>>
    %873 = vector.extract_strided_slice %33 {offsets = [3, 0], sizes = [1, 256], strides = [1, 1]} : vector<4x256xf32> to vector<1x256xf32>
    %874 = vector.broadcast %872 : f32 to vector<1x256xf32>
    %875 = arith.mulf %873, %874 : vector<1x256xf32>
    %876 = arith.addf %868, %875 : vector<1x256xf32>
    %c72_i32_194 = arith.constant 72 : i32
    %877 = arith.addi %38, %c72_i32_194 : i32
    %c8_i32_195 = arith.constant 8 : i32
    %878 = arith.addi %877, %c8_i32_195 : i32
    %879 = arith.index_cast %878 : i32 to index
    %880 = memref.load %arg4[%879] : memref<1152xf32, #tpu.memory_space<smem>>
    %881 = vector.extract_strided_slice %37 {offsets = [0, 0], sizes = [1, 256], strides = [1, 1]} : vector<4x256xf32> to vector<1x256xf32>
    %882 = vector.broadcast %880 : f32 to vector<1x256xf32>
    %883 = arith.mulf %881, %882 : vector<1x256xf32>
    %884 = arith.addf %876, %883 : vector<1x256xf32>
    %c81_i32_196 = arith.constant 81 : i32
    %885 = arith.addi %38, %c81_i32_196 : i32
    %c8_i32_197 = arith.constant 8 : i32
    %886 = arith.addi %885, %c8_i32_197 : i32
    %887 = arith.index_cast %886 : i32 to index
    %888 = memref.load %arg4[%887] : memref<1152xf32, #tpu.memory_space<smem>>
    %889 = vector.extract_strided_slice %37 {offsets = [1, 0], sizes = [1, 256], strides = [1, 1]} : vector<4x256xf32> to vector<1x256xf32>
    %890 = vector.broadcast %888 : f32 to vector<1x256xf32>
    %891 = arith.mulf %889, %890 : vector<1x256xf32>
    %892 = arith.addf %884, %891 : vector<1x256xf32>
    %c90_i32_198 = arith.constant 90 : i32
    %893 = arith.addi %38, %c90_i32_198 : i32
    %c8_i32_199 = arith.constant 8 : i32
    %894 = arith.addi %893, %c8_i32_199 : i32
    %895 = arith.index_cast %894 : i32 to index
    %896 = memref.load %arg4[%895] : memref<1152xf32, #tpu.memory_space<smem>>
    %897 = vector.extract_strided_slice %37 {offsets = [2, 0], sizes = [1, 256], strides = [1, 1]} : vector<4x256xf32> to vector<1x256xf32>
    %898 = vector.broadcast %896 : f32 to vector<1x256xf32>
    %899 = arith.mulf %897, %898 : vector<1x256xf32>
    %900 = arith.addf %892, %899 : vector<1x256xf32>
    %c99_i32_200 = arith.constant 99 : i32
    %901 = arith.addi %38, %c99_i32_200 : i32
    %c8_i32_201 = arith.constant 8 : i32
    %902 = arith.addi %901, %c8_i32_201 : i32
    %903 = arith.index_cast %902 : i32 to index
    %904 = memref.load %arg4[%903] : memref<1152xf32, #tpu.memory_space<smem>>
    %905 = vector.extract_strided_slice %37 {offsets = [3, 0], sizes = [1, 256], strides = [1, 1]} : vector<4x256xf32> to vector<1x256xf32>
    %906 = vector.broadcast %904 : f32 to vector<1x256xf32>
    %907 = arith.mulf %905, %906 : vector<1x256xf32>
    %908 = arith.addf %900, %907 : vector<1x256xf32>
    %c3 = arith.constant 3 : index
    %909 = memref.load %arg5[%c3] : memref<4xf32, #tpu.memory_space<smem>>
    %910 = vector.broadcast %909 : f32 to vector<1x256xf32>
    %c108_i32 = arith.constant 108 : i32
    %911 = arith.addi %38, %c108_i32 : i32
    %c0_i32_202 = arith.constant 0 : i32
    %912 = arith.addi %911, %c0_i32_202 : i32
    %913 = arith.index_cast %912 : i32 to index
    %914 = memref.load %arg4[%913] : memref<1152xf32, #tpu.memory_space<smem>>
    %915 = vector.extract_strided_slice %6 {offsets = [0, 0], sizes = [1, 256], strides = [1, 1]} : vector<4x256xf32> to vector<1x256xf32>
    %916 = vector.broadcast %914 : f32 to vector<1x256xf32>
    %917 = arith.mulf %915, %916 : vector<1x256xf32>
    %918 = arith.addf %910, %917 : vector<1x256xf32>
    %c117_i32 = arith.constant 117 : i32
    %919 = arith.addi %38, %c117_i32 : i32
    %c0_i32_203 = arith.constant 0 : i32
    %920 = arith.addi %919, %c0_i32_203 : i32
    %921 = arith.index_cast %920 : i32 to index
    %922 = memref.load %arg4[%921] : memref<1152xf32, #tpu.memory_space<smem>>
    %923 = vector.extract_strided_slice %6 {offsets = [1, 0], sizes = [1, 256], strides = [1, 1]} : vector<4x256xf32> to vector<1x256xf32>
    %924 = vector.broadcast %922 : f32 to vector<1x256xf32>
    %925 = arith.mulf %923, %924 : vector<1x256xf32>
    %926 = arith.addf %918, %925 : vector<1x256xf32>
    %c126_i32 = arith.constant 126 : i32
    %927 = arith.addi %38, %c126_i32 : i32
    %c0_i32_204 = arith.constant 0 : i32
    %928 = arith.addi %927, %c0_i32_204 : i32
    %929 = arith.index_cast %928 : i32 to index
    %930 = memref.load %arg4[%929] : memref<1152xf32, #tpu.memory_space<smem>>
    %931 = vector.extract_strided_slice %6 {offsets = [2, 0], sizes = [1, 256], strides = [1, 1]} : vector<4x256xf32> to vector<1x256xf32>
    %932 = vector.broadcast %930 : f32 to vector<1x256xf32>
    %933 = arith.mulf %931, %932 : vector<1x256xf32>
    %934 = arith.addf %926, %933 : vector<1x256xf32>
    %c135_i32 = arith.constant 135 : i32
    %935 = arith.addi %38, %c135_i32 : i32
    %c0_i32_205 = arith.constant 0 : i32
    %936 = arith.addi %935, %c0_i32_205 : i32
    %937 = arith.index_cast %936 : i32 to index
    %938 = memref.load %arg4[%937] : memref<1152xf32, #tpu.memory_space<smem>>
    %939 = vector.extract_strided_slice %6 {offsets = [3, 0], sizes = [1, 256], strides = [1, 1]} : vector<4x256xf32> to vector<1x256xf32>
    %940 = vector.broadcast %938 : f32 to vector<1x256xf32>
    %941 = arith.mulf %939, %940 : vector<1x256xf32>
    %942 = arith.addf %934, %941 : vector<1x256xf32>
    %c108_i32_206 = arith.constant 108 : i32
    %943 = arith.addi %38, %c108_i32_206 : i32
    %c1_i32_207 = arith.constant 1 : i32
    %944 = arith.addi %943, %c1_i32_207 : i32
    %945 = arith.index_cast %944 : i32 to index
    %946 = memref.load %arg4[%945] : memref<1152xf32, #tpu.memory_space<smem>>
    %947 = vector.extract_strided_slice %10 {offsets = [0, 0], sizes = [1, 256], strides = [1, 1]} : vector<4x256xf32> to vector<1x256xf32>
    %948 = vector.broadcast %946 : f32 to vector<1x256xf32>
    %949 = arith.mulf %947, %948 : vector<1x256xf32>
    %950 = arith.addf %942, %949 : vector<1x256xf32>
    %c117_i32_208 = arith.constant 117 : i32
    %951 = arith.addi %38, %c117_i32_208 : i32
    %c1_i32_209 = arith.constant 1 : i32
    %952 = arith.addi %951, %c1_i32_209 : i32
    %953 = arith.index_cast %952 : i32 to index
    %954 = memref.load %arg4[%953] : memref<1152xf32, #tpu.memory_space<smem>>
    %955 = vector.extract_strided_slice %10 {offsets = [1, 0], sizes = [1, 256], strides = [1, 1]} : vector<4x256xf32> to vector<1x256xf32>
    %956 = vector.broadcast %954 : f32 to vector<1x256xf32>
    %957 = arith.mulf %955, %956 : vector<1x256xf32>
    %958 = arith.addf %950, %957 : vector<1x256xf32>
    %c126_i32_210 = arith.constant 126 : i32
    %959 = arith.addi %38, %c126_i32_210 : i32
    %c1_i32_211 = arith.constant 1 : i32
    %960 = arith.addi %959, %c1_i32_211 : i32
    %961 = arith.index_cast %960 : i32 to index
    %962 = memref.load %arg4[%961] : memref<1152xf32, #tpu.memory_space<smem>>
    %963 = vector.extract_strided_slice %10 {offsets = [2, 0], sizes = [1, 256], strides = [1, 1]} : vector<4x256xf32> to vector<1x256xf32>
    %964 = vector.broadcast %962 : f32 to vector<1x256xf32>
    %965 = arith.mulf %963, %964 : vector<1x256xf32>
    %966 = arith.addf %958, %965 : vector<1x256xf32>
    %c135_i32_212 = arith.constant 135 : i32
    %967 = arith.addi %38, %c135_i32_212 : i32
    %c1_i32_213 = arith.constant 1 : i32
    %968 = arith.addi %967, %c1_i32_213 : i32
    %969 = arith.index_cast %968 : i32 to index
    %970 = memref.load %arg4[%969] : memref<1152xf32, #tpu.memory_space<smem>>
    %971 = vector.extract_strided_slice %10 {offsets = [3, 0], sizes = [1, 256], strides = [1, 1]} : vector<4x256xf32> to vector<1x256xf32>
    %972 = vector.broadcast %970 : f32 to vector<1x256xf32>
    %973 = arith.mulf %971, %972 : vector<1x256xf32>
    %974 = arith.addf %966, %973 : vector<1x256xf32>
    %c108_i32_214 = arith.constant 108 : i32
    %975 = arith.addi %38, %c108_i32_214 : i32
    %c2_i32_215 = arith.constant 2 : i32
    %976 = arith.addi %975, %c2_i32_215 : i32
    %977 = arith.index_cast %976 : i32 to index
    %978 = memref.load %arg4[%977] : memref<1152xf32, #tpu.memory_space<smem>>
    %979 = vector.extract_strided_slice %14 {offsets = [0, 0], sizes = [1, 256], strides = [1, 1]} : vector<4x256xf32> to vector<1x256xf32>
    %980 = vector.broadcast %978 : f32 to vector<1x256xf32>
    %981 = arith.mulf %979, %980 : vector<1x256xf32>
    %982 = arith.addf %974, %981 : vector<1x256xf32>
    %c117_i32_216 = arith.constant 117 : i32
    %983 = arith.addi %38, %c117_i32_216 : i32
    %c2_i32_217 = arith.constant 2 : i32
    %984 = arith.addi %983, %c2_i32_217 : i32
    %985 = arith.index_cast %984 : i32 to index
    %986 = memref.load %arg4[%985] : memref<1152xf32, #tpu.memory_space<smem>>
    %987 = vector.extract_strided_slice %14 {offsets = [1, 0], sizes = [1, 256], strides = [1, 1]} : vector<4x256xf32> to vector<1x256xf32>
    %988 = vector.broadcast %986 : f32 to vector<1x256xf32>
    %989 = arith.mulf %987, %988 : vector<1x256xf32>
    %990 = arith.addf %982, %989 : vector<1x256xf32>
    %c126_i32_218 = arith.constant 126 : i32
    %991 = arith.addi %38, %c126_i32_218 : i32
    %c2_i32_219 = arith.constant 2 : i32
    %992 = arith.addi %991, %c2_i32_219 : i32
    %993 = arith.index_cast %992 : i32 to index
    %994 = memref.load %arg4[%993] : memref<1152xf32, #tpu.memory_space<smem>>
    %995 = vector.extract_strided_slice %14 {offsets = [2, 0], sizes = [1, 256], strides = [1, 1]} : vector<4x256xf32> to vector<1x256xf32>
    %996 = vector.broadcast %994 : f32 to vector<1x256xf32>
    %997 = arith.mulf %995, %996 : vector<1x256xf32>
    %998 = arith.addf %990, %997 : vector<1x256xf32>
    %c135_i32_220 = arith.constant 135 : i32
    %999 = arith.addi %38, %c135_i32_220 : i32
    %c2_i32_221 = arith.constant 2 : i32
    %1000 = arith.addi %999, %c2_i32_221 : i32
    %1001 = arith.index_cast %1000 : i32 to index
    %1002 = memref.load %arg4[%1001] : memref<1152xf32, #tpu.memory_space<smem>>
    %1003 = vector.extract_strided_slice %14 {offsets = [3, 0], sizes = [1, 256], strides = [1, 1]} : vector<4x256xf32> to vector<1x256xf32>
    %1004 = vector.broadcast %1002 : f32 to vector<1x256xf32>
    %1005 = arith.mulf %1003, %1004 : vector<1x256xf32>
    %1006 = arith.addf %998, %1005 : vector<1x256xf32>
    %c108_i32_222 = arith.constant 108 : i32
    %1007 = arith.addi %38, %c108_i32_222 : i32
    %c3_i32_223 = arith.constant 3 : i32
    %1008 = arith.addi %1007, %c3_i32_223 : i32
    %1009 = arith.index_cast %1008 : i32 to index
    %1010 = memref.load %arg4[%1009] : memref<1152xf32, #tpu.memory_space<smem>>
    %1011 = vector.extract_strided_slice %18 {offsets = [0, 0], sizes = [1, 256], strides = [1, 1]} : vector<4x256xf32> to vector<1x256xf32>
    %1012 = vector.broadcast %1010 : f32 to vector<1x256xf32>
    %1013 = arith.mulf %1011, %1012 : vector<1x256xf32>
    %1014 = arith.addf %1006, %1013 : vector<1x256xf32>
    %c117_i32_224 = arith.constant 117 : i32
    %1015 = arith.addi %38, %c117_i32_224 : i32
    %c3_i32_225 = arith.constant 3 : i32
    %1016 = arith.addi %1015, %c3_i32_225 : i32
    %1017 = arith.index_cast %1016 : i32 to index
    %1018 = memref.load %arg4[%1017] : memref<1152xf32, #tpu.memory_space<smem>>
    %1019 = vector.extract_strided_slice %18 {offsets = [1, 0], sizes = [1, 256], strides = [1, 1]} : vector<4x256xf32> to vector<1x256xf32>
    %1020 = vector.broadcast %1018 : f32 to vector<1x256xf32>
    %1021 = arith.mulf %1019, %1020 : vector<1x256xf32>
    %1022 = arith.addf %1014, %1021 : vector<1x256xf32>
    %c126_i32_226 = arith.constant 126 : i32
    %1023 = arith.addi %38, %c126_i32_226 : i32
    %c3_i32_227 = arith.constant 3 : i32
    %1024 = arith.addi %1023, %c3_i32_227 : i32
    %1025 = arith.index_cast %1024 : i32 to index
    %1026 = memref.load %arg4[%1025] : memref<1152xf32, #tpu.memory_space<smem>>
    %1027 = vector.extract_strided_slice %18 {offsets = [2, 0], sizes = [1, 256], strides = [1, 1]} : vector<4x256xf32> to vector<1x256xf32>
    %1028 = vector.broadcast %1026 : f32 to vector<1x256xf32>
    %1029 = arith.mulf %1027, %1028 : vector<1x256xf32>
    %1030 = arith.addf %1022, %1029 : vector<1x256xf32>
    %c135_i32_228 = arith.constant 135 : i32
    %1031 = arith.addi %38, %c135_i32_228 : i32
    %c3_i32_229 = arith.constant 3 : i32
    %1032 = arith.addi %1031, %c3_i32_229 : i32
    %1033 = arith.index_cast %1032 : i32 to index
    %1034 = memref.load %arg4[%1033] : memref<1152xf32, #tpu.memory_space<smem>>
    %1035 = vector.extract_strided_slice %18 {offsets = [3, 0], sizes = [1, 256], strides = [1, 1]} : vector<4x256xf32> to vector<1x256xf32>
    %1036 = vector.broadcast %1034 : f32 to vector<1x256xf32>
    %1037 = arith.mulf %1035, %1036 : vector<1x256xf32>
    %1038 = arith.addf %1030, %1037 : vector<1x256xf32>
    %c108_i32_230 = arith.constant 108 : i32
    %1039 = arith.addi %38, %c108_i32_230 : i32
    %c4_i32_231 = arith.constant 4 : i32
    %1040 = arith.addi %1039, %c4_i32_231 : i32
    %1041 = arith.index_cast %1040 : i32 to index
    %1042 = memref.load %arg4[%1041] : memref<1152xf32, #tpu.memory_space<smem>>
    %1043 = vector.extract_strided_slice %21 {offsets = [0, 0], sizes = [1, 256], strides = [1, 1]} : vector<4x256xf32> to vector<1x256xf32>
    %1044 = vector.broadcast %1042 : f32 to vector<1x256xf32>
    %1045 = arith.mulf %1043, %1044 : vector<1x256xf32>
    %1046 = arith.addf %1038, %1045 : vector<1x256xf32>
    %c117_i32_232 = arith.constant 117 : i32
    %1047 = arith.addi %38, %c117_i32_232 : i32
    %c4_i32_233 = arith.constant 4 : i32
    %1048 = arith.addi %1047, %c4_i32_233 : i32
    %1049 = arith.index_cast %1048 : i32 to index
    %1050 = memref.load %arg4[%1049] : memref<1152xf32, #tpu.memory_space<smem>>
    %1051 = vector.extract_strided_slice %21 {offsets = [1, 0], sizes = [1, 256], strides = [1, 1]} : vector<4x256xf32> to vector<1x256xf32>
    %1052 = vector.broadcast %1050 : f32 to vector<1x256xf32>
    %1053 = arith.mulf %1051, %1052 : vector<1x256xf32>
    %1054 = arith.addf %1046, %1053 : vector<1x256xf32>
    %c126_i32_234 = arith.constant 126 : i32
    %1055 = arith.addi %38, %c126_i32_234 : i32
    %c4_i32_235 = arith.constant 4 : i32
    %1056 = arith.addi %1055, %c4_i32_235 : i32
    %1057 = arith.index_cast %1056 : i32 to index
    %1058 = memref.load %arg4[%1057] : memref<1152xf32, #tpu.memory_space<smem>>
    %1059 = vector.extract_strided_slice %21 {offsets = [2, 0], sizes = [1, 256], strides = [1, 1]} : vector<4x256xf32> to vector<1x256xf32>
    %1060 = vector.broadcast %1058 : f32 to vector<1x256xf32>
    %1061 = arith.mulf %1059, %1060 : vector<1x256xf32>
    %1062 = arith.addf %1054, %1061 : vector<1x256xf32>
    %c135_i32_236 = arith.constant 135 : i32
    %1063 = arith.addi %38, %c135_i32_236 : i32
    %c4_i32_237 = arith.constant 4 : i32
    %1064 = arith.addi %1063, %c4_i32_237 : i32
    %1065 = arith.index_cast %1064 : i32 to index
    %1066 = memref.load %arg4[%1065] : memref<1152xf32, #tpu.memory_space<smem>>
    %1067 = vector.extract_strided_slice %21 {offsets = [3, 0], sizes = [1, 256], strides = [1, 1]} : vector<4x256xf32> to vector<1x256xf32>
    %1068 = vector.broadcast %1066 : f32 to vector<1x256xf32>
    %1069 = arith.mulf %1067, %1068 : vector<1x256xf32>
    %1070 = arith.addf %1062, %1069 : vector<1x256xf32>
    %c108_i32_238 = arith.constant 108 : i32
    %1071 = arith.addi %38, %c108_i32_238 : i32
    %c5_i32_239 = arith.constant 5 : i32
    %1072 = arith.addi %1071, %c5_i32_239 : i32
    %1073 = arith.index_cast %1072 : i32 to index
    %1074 = memref.load %arg4[%1073] : memref<1152xf32, #tpu.memory_space<smem>>
    %1075 = vector.extract_strided_slice %25 {offsets = [0, 0], sizes = [1, 256], strides = [1, 1]} : vector<4x256xf32> to vector<1x256xf32>
    %1076 = vector.broadcast %1074 : f32 to vector<1x256xf32>
    %1077 = arith.mulf %1075, %1076 : vector<1x256xf32>
    %1078 = arith.addf %1070, %1077 : vector<1x256xf32>
    %c117_i32_240 = arith.constant 117 : i32
    %1079 = arith.addi %38, %c117_i32_240 : i32
    %c5_i32_241 = arith.constant 5 : i32
    %1080 = arith.addi %1079, %c5_i32_241 : i32
    %1081 = arith.index_cast %1080 : i32 to index
    %1082 = memref.load %arg4[%1081] : memref<1152xf32, #tpu.memory_space<smem>>
    %1083 = vector.extract_strided_slice %25 {offsets = [1, 0], sizes = [1, 256], strides = [1, 1]} : vector<4x256xf32> to vector<1x256xf32>
    %1084 = vector.broadcast %1082 : f32 to vector<1x256xf32>
    %1085 = arith.mulf %1083, %1084 : vector<1x256xf32>
    %1086 = arith.addf %1078, %1085 : vector<1x256xf32>
    %c126_i32_242 = arith.constant 126 : i32
    %1087 = arith.addi %38, %c126_i32_242 : i32
    %c5_i32_243 = arith.constant 5 : i32
    %1088 = arith.addi %1087, %c5_i32_243 : i32
    %1089 = arith.index_cast %1088 : i32 to index
    %1090 = memref.load %arg4[%1089] : memref<1152xf32, #tpu.memory_space<smem>>
    %1091 = vector.extract_strided_slice %25 {offsets = [2, 0], sizes = [1, 256], strides = [1, 1]} : vector<4x256xf32> to vector<1x256xf32>
    %1092 = vector.broadcast %1090 : f32 to vector<1x256xf32>
    %1093 = arith.mulf %1091, %1092 : vector<1x256xf32>
    %1094 = arith.addf %1086, %1093 : vector<1x256xf32>
    %c135_i32_244 = arith.constant 135 : i32
    %1095 = arith.addi %38, %c135_i32_244 : i32
    %c5_i32_245 = arith.constant 5 : i32
    %1096 = arith.addi %1095, %c5_i32_245 : i32
    %1097 = arith.index_cast %1096 : i32 to index
    %1098 = memref.load %arg4[%1097] : memref<1152xf32, #tpu.memory_space<smem>>
    %1099 = vector.extract_strided_slice %25 {offsets = [3, 0], sizes = [1, 256], strides = [1, 1]} : vector<4x256xf32> to vector<1x256xf32>
    %1100 = vector.broadcast %1098 : f32 to vector<1x256xf32>
    %1101 = arith.mulf %1099, %1100 : vector<1x256xf32>
    %1102 = arith.addf %1094, %1101 : vector<1x256xf32>
    %c108_i32_246 = arith.constant 108 : i32
    %1103 = arith.addi %38, %c108_i32_246 : i32
    %c6_i32_247 = arith.constant 6 : i32
    %1104 = arith.addi %1103, %c6_i32_247 : i32
    %1105 = arith.index_cast %1104 : i32 to index
    %1106 = memref.load %arg4[%1105] : memref<1152xf32, #tpu.memory_space<smem>>
    %1107 = vector.extract_strided_slice %29 {offsets = [0, 0], sizes = [1, 256], strides = [1, 1]} : vector<4x256xf32> to vector<1x256xf32>
    %1108 = vector.broadcast %1106 : f32 to vector<1x256xf32>
    %1109 = arith.mulf %1107, %1108 : vector<1x256xf32>
    %1110 = arith.addf %1102, %1109 : vector<1x256xf32>
    %c117_i32_248 = arith.constant 117 : i32
    %1111 = arith.addi %38, %c117_i32_248 : i32
    %c6_i32_249 = arith.constant 6 : i32
    %1112 = arith.addi %1111, %c6_i32_249 : i32
    %1113 = arith.index_cast %1112 : i32 to index
    %1114 = memref.load %arg4[%1113] : memref<1152xf32, #tpu.memory_space<smem>>
    %1115 = vector.extract_strided_slice %29 {offsets = [1, 0], sizes = [1, 256], strides = [1, 1]} : vector<4x256xf32> to vector<1x256xf32>
    %1116 = vector.broadcast %1114 : f32 to vector<1x256xf32>
    %1117 = arith.mulf %1115, %1116 : vector<1x256xf32>
    %1118 = arith.addf %1110, %1117 : vector<1x256xf32>
    %c126_i32_250 = arith.constant 126 : i32
    %1119 = arith.addi %38, %c126_i32_250 : i32
    %c6_i32_251 = arith.constant 6 : i32
    %1120 = arith.addi %1119, %c6_i32_251 : i32
    %1121 = arith.index_cast %1120 : i32 to index
    %1122 = memref.load %arg4[%1121] : memref<1152xf32, #tpu.memory_space<smem>>
    %1123 = vector.extract_strided_slice %29 {offsets = [2, 0], sizes = [1, 256], strides = [1, 1]} : vector<4x256xf32> to vector<1x256xf32>
    %1124 = vector.broadcast %1122 : f32 to vector<1x256xf32>
    %1125 = arith.mulf %1123, %1124 : vector<1x256xf32>
    %1126 = arith.addf %1118, %1125 : vector<1x256xf32>
    %c135_i32_252 = arith.constant 135 : i32
    %1127 = arith.addi %38, %c135_i32_252 : i32
    %c6_i32_253 = arith.constant 6 : i32
    %1128 = arith.addi %1127, %c6_i32_253 : i32
    %1129 = arith.index_cast %1128 : i32 to index
    %1130 = memref.load %arg4[%1129] : memref<1152xf32, #tpu.memory_space<smem>>
    %1131 = vector.extract_strided_slice %29 {offsets = [3, 0], sizes = [1, 256], strides = [1, 1]} : vector<4x256xf32> to vector<1x256xf32>
    %1132 = vector.broadcast %1130 : f32 to vector<1x256xf32>
    %1133 = arith.mulf %1131, %1132 : vector<1x256xf32>
    %1134 = arith.addf %1126, %1133 : vector<1x256xf32>
    %c108_i32_254 = arith.constant 108 : i32
    %1135 = arith.addi %38, %c108_i32_254 : i32
    %c7_i32_255 = arith.constant 7 : i32
    %1136 = arith.addi %1135, %c7_i32_255 : i32
    %1137 = arith.index_cast %1136 : i32 to index
    %1138 = memref.load %arg4[%1137] : memref<1152xf32, #tpu.memory_space<smem>>
    %1139 = vector.extract_strided_slice %33 {offsets = [0, 0], sizes = [1, 256], strides = [1, 1]} : vector<4x256xf32> to vector<1x256xf32>
    %1140 = vector.broadcast %1138 : f32 to vector<1x256xf32>
    %1141 = arith.mulf %1139, %1140 : vector<1x256xf32>
    %1142 = arith.addf %1134, %1141 : vector<1x256xf32>
    %c117_i32_256 = arith.constant 117 : i32
    %1143 = arith.addi %38, %c117_i32_256 : i32
    %c7_i32_257 = arith.constant 7 : i32
    %1144 = arith.addi %1143, %c7_i32_257 : i32
    %1145 = arith.index_cast %1144 : i32 to index
    %1146 = memref.load %arg4[%1145] : memref<1152xf32, #tpu.memory_space<smem>>
    %1147 = vector.extract_strided_slice %33 {offsets = [1, 0], sizes = [1, 256], strides = [1, 1]} : vector<4x256xf32> to vector<1x256xf32>
    %1148 = vector.broadcast %1146 : f32 to vector<1x256xf32>
    %1149 = arith.mulf %1147, %1148 : vector<1x256xf32>
    %1150 = arith.addf %1142, %1149 : vector<1x256xf32>
    %c126_i32_258 = arith.constant 126 : i32
    %1151 = arith.addi %38, %c126_i32_258 : i32
    %c7_i32_259 = arith.constant 7 : i32
    %1152 = arith.addi %1151, %c7_i32_259 : i32
    %1153 = arith.index_cast %1152 : i32 to index
    %1154 = memref.load %arg4[%1153] : memref<1152xf32, #tpu.memory_space<smem>>
    %1155 = vector.extract_strided_slice %33 {offsets = [2, 0], sizes = [1, 256], strides = [1, 1]} : vector<4x256xf32> to vector<1x256xf32>
    %1156 = vector.broadcast %1154 : f32 to vector<1x256xf32>
    %1157 = arith.mulf %1155, %1156 : vector<1x256xf32>
    %1158 = arith.addf %1150, %1157 : vector<1x256xf32>
    %c135_i32_260 = arith.constant 135 : i32
    %1159 = arith.addi %38, %c135_i32_260 : i32
    %c7_i32_261 = arith.constant 7 : i32
    %1160 = arith.addi %1159, %c7_i32_261 : i32
    %1161 = arith.index_cast %1160 : i32 to index
    %1162 = memref.load %arg4[%1161] : memref<1152xf32, #tpu.memory_space<smem>>
    %1163 = vector.extract_strided_slice %33 {offsets = [3, 0], sizes = [1, 256], strides = [1, 1]} : vector<4x256xf32> to vector<1x256xf32>
    %1164 = vector.broadcast %1162 : f32 to vector<1x256xf32>
    %1165 = arith.mulf %1163, %1164 : vector<1x256xf32>
    %1166 = arith.addf %1158, %1165 : vector<1x256xf32>
    %c108_i32_262 = arith.constant 108 : i32
    %1167 = arith.addi %38, %c108_i32_262 : i32
    %c8_i32_263 = arith.constant 8 : i32
    %1168 = arith.addi %1167, %c8_i32_263 : i32
    %1169 = arith.index_cast %1168 : i32 to index
    %1170 = memref.load %arg4[%1169] : memref<1152xf32, #tpu.memory_space<smem>>
    %1171 = vector.extract_strided_slice %37 {offsets = [0, 0], sizes = [1, 256], strides = [1, 1]} : vector<4x256xf32> to vector<1x256xf32>
    %1172 = vector.broadcast %1170 : f32 to vector<1x256xf32>
    %1173 = arith.mulf %1171, %1172 : vector<1x256xf32>
    %1174 = arith.addf %1166, %1173 : vector<1x256xf32>
    %c117_i32_264 = arith.constant 117 : i32
    %1175 = arith.addi %38, %c117_i32_264 : i32
    %c8_i32_265 = arith.constant 8 : i32
    %1176 = arith.addi %1175, %c8_i32_265 : i32
    %1177 = arith.index_cast %1176 : i32 to index
    %1178 = memref.load %arg4[%1177] : memref<1152xf32, #tpu.memory_space<smem>>
    %1179 = vector.extract_strided_slice %37 {offsets = [1, 0], sizes = [1, 256], strides = [1, 1]} : vector<4x256xf32> to vector<1x256xf32>
    %1180 = vector.broadcast %1178 : f32 to vector<1x256xf32>
    %1181 = arith.mulf %1179, %1180 : vector<1x256xf32>
    %1182 = arith.addf %1174, %1181 : vector<1x256xf32>
    %c126_i32_266 = arith.constant 126 : i32
    %1183 = arith.addi %38, %c126_i32_266 : i32
    %c8_i32_267 = arith.constant 8 : i32
    %1184 = arith.addi %1183, %c8_i32_267 : i32
    %1185 = arith.index_cast %1184 : i32 to index
    %1186 = memref.load %arg4[%1185] : memref<1152xf32, #tpu.memory_space<smem>>
    %1187 = vector.extract_strided_slice %37 {offsets = [2, 0], sizes = [1, 256], strides = [1, 1]} : vector<4x256xf32> to vector<1x256xf32>
    %1188 = vector.broadcast %1186 : f32 to vector<1x256xf32>
    %1189 = arith.mulf %1187, %1188 : vector<1x256xf32>
    %1190 = arith.addf %1182, %1189 : vector<1x256xf32>
    %c135_i32_268 = arith.constant 135 : i32
    %1191 = arith.addi %38, %c135_i32_268 : i32
    %c8_i32_269 = arith.constant 8 : i32
    %1192 = arith.addi %1191, %c8_i32_269 : i32
    %1193 = arith.index_cast %1192 : i32 to index
    %1194 = memref.load %arg4[%1193] : memref<1152xf32, #tpu.memory_space<smem>>
    %1195 = vector.extract_strided_slice %37 {offsets = [3, 0], sizes = [1, 256], strides = [1, 1]} : vector<4x256xf32> to vector<1x256xf32>
    %1196 = vector.broadcast %1194 : f32 to vector<1x256xf32>
    %1197 = arith.mulf %1195, %1196 : vector<1x256xf32>
    %1198 = arith.addf %1190, %1197 : vector<1x256xf32>
    %1199 = tpu.concatenate %328, %618, %908, %1198 in 0 : vector<1x256xf32>, vector<1x256xf32>, vector<1x256xf32>, vector<1x256xf32> -> vector<4x256xf32>
    %c0_i32_270 = arith.constant 0 : i32
    %1200 = arith.cmpi eq, %arg1, %c0_i32_270 : i32
    %1201 = arith.extui %1200 : i1 to i32
    %c0_i32_271 = arith.constant 0 : i32
    %1202 = arith.cmpi ne, %1201, %c0_i32_271 : i32
    scf.if %1202 {
      %cst = arith.constant 0.000000e+00 : f32
      %1209 = vector.broadcast %cst : f32 to vector<4x256xf32>
      %c0_278 = arith.constant 0 : index
      %c0_279 = arith.constant 0 : index
      %1210 = vector.load %arg7[%c0_278, %c0_279] : memref<4x256xf32, #tpu.memory_space<vmem>>, vector<4x256xf32>
      tpu.vector_store %arg7[%c0_278, %c0_279], %1209 {strides = array<i32>} : memref<4x256xf32, #tpu.memory_space<vmem>>, vector<4x256xf32>,
    } else {
    }
    %c0_272 = arith.constant 0 : index
    %c0_273 = arith.constant 0 : index
    %1203 = vector.load %arg7[%c0_272, %c0_273] : memref<4x256xf32, #tpu.memory_space<vmem>>, vector<4x256xf32>
    %1204 = arith.addf %1203, %1199 : vector<4x256xf32>
    %c0_274 = arith.constant 0 : index
    %c0_275 = arith.constant 0 : index
    %1205 = vector.load %arg7[%c0_274, %c0_275] : memref<4x256xf32, #tpu.memory_space<vmem>>, vector<4x256xf32>
    tpu.vector_store %arg7[%c0_274, %c0_275], %1204 {strides = array<i32>} : memref<4x256xf32, #tpu.memory_space<vmem>>, vector<4x256xf32>,
    %c7_i32_276 = arith.constant 7 : i32
    %1206 = arith.cmpi eq, %arg1, %c7_i32_276 : i32
    %1207 = arith.extui %1206 : i1 to i32
    %c0_i32_277 = arith.constant 0 : i32
    %1208 = arith.cmpi ne, %1207, %c0_i32_277 : i32
    scf.if %1208 {
      %c0_278 = arith.constant 0 : index
      %c0_279 = arith.constant 0 : index
      %1209 = vector.load %arg7[%c0_278, %c0_279] : memref<4x256xf32, #tpu.memory_space<vmem>>, vector<4x256xf32>
      %cst = arith.constant 1.250000e-01 : f32
      %1210 = vector.broadcast %cst : f32 to vector<4x256xf32>
      %1211 = arith.mulf %1209, %1210 : vector<4x256xf32>
      %c0_280 = arith.constant 0 : index
      %c0_281 = arith.constant 0 : index
      %c0_282 = arith.constant 0 : index
      %1212 = vector.load %arg6[%c0_280, %c0_281, %c0_282] : memref<1x4x256xf32, #tpu.memory_space<vmem>>, vector<1x4x256xf32>
      %1213 = vector.shape_cast %1212 : vector<1x4x256xf32> to vector<4x256xf32>
      %1214 = vector.shape_cast %1211 : vector<4x256xf32> to vector<1x4x256xf32>
      tpu.vector_store %arg6[%c0_280, %c0_281, %c0_282], %1214 {strides = array<i32>} : memref<1x4x256xf32, #tpu.memory_space<vmem>>, vector<1x4x256xf32>,
    } else {
    }
    return
  }
  func.func @transform_0(%arg0: i32, %arg1: i32) -> (i32, i32, i32) {
    %c0_i32 = arith.constant 0 : i32
    %c0_i32_0 = arith.constant 0 : i32
    %c0_i32_1 = arith.constant 0 : i32
    return %arg0, %c0_i32, %c0_i32_0 : i32, i32, i32
  }
  func.func @transform_1(%arg0: i32, %arg1: i32) -> (i32, i32) {
    %c0_i32 = arith.constant 0 : i32
    %c0_i32_0 = arith.constant 0 : i32
    %c0_i32_1 = arith.constant 0 : i32
    return %c0_i32, %c0_i32_0 : i32, i32
  }
  func.func @transform_2(%arg0: i32, %arg1: i32) -> i32 {
    %c0_i32 = arith.constant 0 : i32
    %c0_i32_0 = arith.constant 0 : i32
    return %c0_i32 : i32
  }
  func.func @transform_3(%arg0: i32, %arg1: i32) -> i32 {
    %c0_i32 = arith.constant 0 : i32
    %c0_i32_0 = arith.constant 0 : i32
    return %c0_i32 : i32
  }
  func.func @transform_4(%arg0: i32, %arg1: i32) -> (i32, i32, i32) {
    %c0_i32 = arith.constant 0 : i32
    %c0_i32_0 = arith.constant 0 : i32
    %c0_i32_1 = arith.constant 0 : i32
    return %arg0, %c0_i32, %c0_i32_0 : i32, i32, i32
  }
}

</mosaic_0001>

<llo_original>
// kernel: tpu_custom_call.1
$region0: #{tpu_custom_call.1}
  #allocation0 [shape = 'u32[]', space=smem, size = 0x4, offset = 0x4, fixed_abs, tag = 'smem constant byte address 0x4 - core index']
  #allocation1 [shape = 'u32[144,128]{1,0:T(1,128)}', space=vmem, size = 0x12000, scoped, tag = 'internal scratch']
  #allocation2 [shape = 'f32[4,256]{1,0:T(4,128)}', space=vmem, size = 0x1000, scoped, tag = 'scratch operand']
  %s0 = inlined_call_operand.hbm [shape: f32[2,4,256], index: 0, kind: input, shape index: {}]
  %s1 = inlined_call_operand.hbm [shape: f32[9,256], index: 1, kind: input, shape index: {}]
  %s2 = inlined_call_operand.hbm [shape: f32[1152], index: 2, kind: input, shape index: {}]
  %s3 = inlined_call_operand.vmem [shape: f32[4], index: 3, kind: input, shape index: {}]
  %s4 = inlined_call_operand.hbm [shape: f32[2,4,256], index: 4, kind: output, shape index: {}]
  %s5 = sld [smem:[#allocation0]]
  $region73: #{tpu_custom_call.1} parent=0
    _
  %s7 = ssub.s32 1, %s5
  %s8 = scalar_select 0, %s7, %s5
  $region1: #{tpu_custom_call.1} parent=0
    #allocation3 [shape = 'u8[8192]{0}', space=vmem, size = 0x2000, scoped, tag = 'input window, operand 0']
    #allocation4 [shape = 's32[2]{0}', space=sflag, size = 0x8, scoped, tag = 'scoped memory for tpu_custom_call.1']
    #allocation5 [shape = 's32[2]{0}', space=sflag, size = 0x8, scoped, tag = 'scoped memory for tpu_custom_call.1']
    #allocation6 [shape = 's32[2]{0}', space=sflag, size = 0x8, scoped, tag = 'scoped memory for tpu_custom_call.1']
    #allocation7 [shape = 's32[2]{0}', space=sflag, size = 0x8, scoped, tag = 'scoped memory for tpu_custom_call.1']
    #allocation8 [shape = 'u8[16384]{0}', space=vmem, size = 0x4000, scoped, tag = 'input window, operand 1, single buffered']
    #allocation9 [shape = 's32[1]{0}', space=sflag, size = 0x4, scoped, tag = 'scoped memory for tpu_custom_call.1']
    #allocation10 [shape = 'u8[4608]{0}', space=smem, size = 0x1200, scoped, tag = 'input window, operand 2, single buffered']
    #allocation11 [shape = 'u8[512]{0}', space=smem, size = 0x200, scoped, tag = 'input window, operand 3, single buffered']
    #allocation12 [shape = 'u8[8192]{0}', space=vmem, size = 0x2000, scoped, tag = 'output window, operand 0']
    %9 = vsyncpa [#allocation4], 0
    %s10 = scalar_lea.sflag [#allocation4], 1
    %11 = vsyncpa %s10, 0
    %12 = vsyncpa [#allocation9], 0
    %13 = vsyncpa [#allocation6], 0
    %14 = vsyncpa [#allocation7], 0
    %15 = vsyncpa [#allocation5], 0
    %s16 = scalar_lea.sflag [#allocation5], 1
    %17 = vsyncpa %s16, 0
    loop: start=0, step=1, limit=18
    $region2: #{tpu_custom_call.1} parent=1 // loop_pre_header
      _
    $region3: #{tpu_custom_call.1} parent=1 // loop_header
      %s19 = sphi 0, %s23
      %p20 = scmp.ge.s32.totalorder %s19, 18
      %s26 = sphi 0, %s38
      %s27 = sphi 0, %s34
      %s28 = sphi 0, %s26
      %s29 = sphi 0, %s27
      %s30 = sphi 0, %s28
      %s31 = sphi 0, %s29
      %s41 = sphi 0, %s43
      %s44 = sphi 0, %s41
      %s45 = sphi 0, %s44
      %s61 = sphi 0, %s45
      %s65 = sphi 0, %s65
      %s67 = sphi 0, %s65
      %s68 = sphi 0, %s67
      %s82 = sphi 0, %s68
      %s86 = sphi 0, %s86
      %s88 = sphi 0, %s86
      %s89 = sphi 0, %s88
      %s103 = sphi 0, %s89
      %s107 = sphi 0, %s107
      %s109 = sphi 0, %s107
      %s110 = sphi 0, %s109
      %s124 = sphi 0, %s110
      %s130 = sphi 0, %s132
      %s133 = sphi 0, %s130
      %s134 = sphi 0, %s133
      %s150 = sphi 0, %s134
    $region4: #{tpu_custom_call.1} parent=1 // loop_header_branch
      %22 = sbr.rel (%p20) target = $region8
    $region5: #{tpu_custom_call.1} parent=1 // loop_body
      %s24 = ssub.s32 %s19, 1
      %s25 = ssub.s32 %s19, 2
      %s32 = sadd.s32 1, %s27
      %p33 = scmp.ge.s32.totalorder %s32, 8
      %s34 = scalar_select %p33, 0, %s32
      %s35 = sadd.s32 1, %s26
      %s36 = scalar_select %p33, %s35, %s26
      %p37 = scmp.ge.s32.totalorder %s36, 2
      %s38 = scalar_select %p37, 0, %s36
      %s39 = ssub.s32 %s26, %s38
      %p40 = scmp.eq.s32.totalorder %s39, 0
      %s42 = sadd.s32 %s41, 1
      %s43 = scalar_select %p40, %s41, %s42
      %p46 = pneg %p40
      %p47 = scmp.eq.s32.totalorder %s19, 15
      %p48 = por %p46, %p47
      %p49 = scmp.ne.s32.totalorder %s41, %s44
      %p50 = scmp.eq.s32.totalorder %s19, 0
      %p51 = por %p49, %p50
      %p52 = scmp.ne.s32.totalorder %s41, %s44
      %p53 = scmp.eq.s32.totalorder %s24, 15
      %p54 = por %p52, %p53
      %p55 = scmp.ne.s32.totalorder %s44, %s45
      %p56 = scmp.eq.s32.totalorder %s24, 0
      %p57 = por %p55, %p56
      %p58 = scmp.ne.s32.totalorder %s44, %s45
      %p59 = scmp.eq.s32.totalorder %s25, 15
      %p60 = por %p58, %p59
      %p62 = scmp.ne.s32.totalorder %s45, %s61
      %p63 = scmp.eq.s32.totalorder %s25, 0
      %p64 = por %p62, %p63
      %s66 = sadd.s32 %s65, 1
      %p69 = scmp.eq.s32.totalorder %s19, 15
      %p70 = scmp.ne.s32.totalorder %s65, %s67
      %p71 = scmp.eq.s32.totalorder %s19, 0
      %p72 = por %p70, %p71
      %p73 = scmp.ne.s32.totalorder %s65, %s67
      %p74 = scmp.eq.s32.totalorder %s24, 15
      %p75 = por %p73, %p74
      %p76 = scmp.ne.s32.totalorder %s67, %s68
      %p77 = scmp.eq.s32.totalorder %s24, 0
      %p78 = por %p76, %p77
      %p79 = scmp.ne.s32.totalorder %s67, %s68
      %p80 = scmp.eq.s32.totalorder %s25, 15
      %p81 = por %p79, %p80
      %p83 = scmp.ne.s32.totalorder %s68, %s82
      %p84 = scmp.eq.s32.totalorder %s25, 0
      %p85 = por %p83, %p84
      %s87 = sadd.s32 %s86, 1
      %p90 = scmp.eq.s32.totalorder %s19, 15
      %p91 = scmp.ne.s32.totalorder %s86, %s88
      %p92 = scmp.eq.s32.totalorder %s19, 0
      %p93 = por %p91, %p92
      %p94 = scmp.ne.s32.totalorder %s86, %s88
      %p95 = scmp.eq.s32.totalorder %s24, 15
      %p96 = por %p94, %p95
      %p97 = scmp.ne.s32.totalorder %s88, %s89
      %p98 = scmp.eq.s32.totalorder %s24, 0
      %p99 = por %p97, %p98
      %p100 = scmp.ne.s32.totalorder %s88, %s89
      %p101 = scmp.eq.s32.totalorder %s25, 15
      %p102 = por %p100, %p101
      %p104 = scmp.ne.s32.totalorder %s89, %s103
      %p105 = scmp.eq.s32.totalorder %s25, 0
      %p106 = por %p104, %p105
      %s108 = sadd.s32 %s107, 1
      %p111 = scmp.eq.s32.totalorder %s19, 15
      %p112 = scmp.ne.s32.totalorder %s107, %s109
      %p113 = scmp.eq.s32.totalorder %s19, 0
      %p114 = por %p112, %p113
      %p115 = scmp.ne.s32.totalorder %s107, %s109
      %p116 = scmp.eq.s32.totalorder %s24, 15
      %p117 = por %p115, %p116
      %p118 = scmp.ne.s32.totalorder %s109, %s110
      %p119 = scmp.eq.s32.totalorder %s24, 0
      %p120 = por %p118, %p119
      %p121 = scmp.ne.s32.totalorder %s109, %s110
      %p122 = scmp.eq.s32.totalorder %s25, 15
      %p123 = por %p121, %p122
      %p125 = scmp.ne.s32.totalorder %s110, %s124
      %p126 = scmp.eq.s32.totalorder %s25, 0
      %p127 = por %p125, %p126
      %s128 = ssub.s32 %s26, %s38
      %p129 = scmp.eq.s32.totalorder %s128, 0
      %s131 = sadd.s32 %s130, 1
      %s132 = scalar_select %p129, %s130, %s131
      %p135 = pneg %p129
      %p136 = scmp.eq.s32.totalorder %s19, 15
      %p137 = por %p135, %p136
      %p138 = scmp.ne.s32.totalorder %s130, %s133
      %p139 = scmp.eq.s32.totalorder %s19, 0
      %p140 = por %p138, %p139
      %p141 = scmp.ne.s32.totalorder %s130, %s133
      %p142 = scmp.eq.s32.totalorder %s24, 15
      %p143 = por %p141, %p142
      %p144 = scmp.ne.s32.totalorder %s133, %s134
      %p145 = scmp.eq.s32.totalorder %s24, 0
      %p146 = por %p144, %p145
      %p147 = scmp.ne.s32.totalorder %s133, %s134
      %p148 = scmp.eq.s32.totalorder %s25, 15
      %p149 = por %p147, %p148
      %p151 = scmp.ne.s32.totalorder %s134, %s150
      %p152 = scmp.eq.s32.totalorder %s25, 0
      %p153 = por %p151, %p152
      %p154 = scmp.le.s32.totalorder 1, %s19
      %p155 = scmp.lt.s32.totalorder %s19, 17
      %p156 = pnand %p154, %p155
      %p157 = pneg %p156
      // Predicated region
      $region9: #{tpu_custom_call.1} parent=5 // pred_check
        _
      $region10: #{tpu_custom_call.1} parent=5 // pred_check_branch
        %159 = sbr.rel (%p156) target = $region12
      $region11: #{tpu_custom_call.1} parent=5 // pred_region
        %s160 = ssub.s32 %s19, 1
        // Predicated region
        $region13: #{tpu_custom_call.1} parent=11 // pred_check
          %p161 = pneg %p78
        $region14: #{tpu_custom_call.1} parent=11 // pred_check_branch
          %163 = sbr.rel (%p161) target = $region16
        $region15: #{tpu_custom_call.1} parent=11 // pred_region
          %s165 = ssub.s32 512, 512
          %166 = vsyncadd [#allocation9], %s165
          %s167 = sshll.u32 [#allocation8], 4
          %s168 = int_to_ptr.vmem [resolvable:$true] %s167
          %173 = dma.hbm_to_vmem [thread:$0]  %s1, 512, %s168, [#allocation9], 256, 256, 16
        $region16: #{tpu_custom_call.1} parent=11 // pred_fallthru
          _
        // Predicated region
        $region17: #{tpu_custom_call.1} parent=11 // pred_check
          %p174 = pneg %p99
        $region18: #{tpu_custom_call.1} parent=11 // pred_check_branch
          %176 = sbr.rel (%p174) target = $region20
        $region19: #{tpu_custom_call.1} parent=11 // pred_region
          %s178 = ssub.s32 144, 144
          %179 = vsyncadd [#allocation6], %s178
          %182 = dma.hbm_to_smem %s2, 144, [#allocation10], [#allocation6]
        $region20: #{tpu_custom_call.1} parent=11 // pred_fallthru
          _
        // Predicated region
        $region21: #{tpu_custom_call.1} parent=11 // pred_check
          %p183 = pneg %p120
        $region22: #{tpu_custom_call.1} parent=11 // pred_check_branch
          %185 = sbr.rel (%p183) target = $region24
        $region23: #{tpu_custom_call.1} parent=11 // pred_region
          %s187 = ssub.s32 16, 16
          %188 = vsyncadd [#allocation7], %s187
          %s190 = sshll.u32 %s3, 4
          %s191 = int_to_ptr.vmem [resolvable:$true] %s190
          %193 = dma.vmem_to_smem %s191, 16, [#allocation11], [#allocation7]
        $region24: #{tpu_custom_call.1} parent=11 // pred_fallthru
          _
      $region12: #{tpu_custom_call.1} parent=5 // pred_fallthru
        _
      %p194 = scmp.lt.s32.totalorder %s19, 16
      // Predicated region
      $region25: #{tpu_custom_call.1} parent=5 // pred_check
        %p195 = pneg %p194
      $region26: #{tpu_custom_call.1} parent=5 // pred_check_branch
        %197 = sbr.rel (%p195) target = $region28
      $region27: #{tpu_custom_call.1} parent=5 // pred_region
        // Predicated region
        $region29: #{tpu_custom_call.1} parent=27 // pred_check
          %p198 = pneg %p51
        $region30: #{tpu_custom_call.1} parent=27 // pred_check_branch
          %200 = sbr.rel (%p198) target = $region32
        $region31: #{tpu_custom_call.1} parent=27 // pred_region
          %s201 = sand.u32 %s41, 1
          %s202 = scalar_lea.sflag [#allocation4], %s201
          %s203 = sand.u32 %s41, 1
          %s204 = smul.addr %s203, 8
          %s205 = scalar_lea.vmem [#allocation3], %s204
          %s207 = ssub.s32 128, 128
          %208 = vsyncadd %s202, %s207
          %s209 = smul.addr %s26, 2
          %s210 = smul.addr %s209, 64
          %s211 = scalar_lea.hbm %s0, %s210
          %s213 = sshll.u32 %s205, 4
          %s214 = int_to_ptr.vmem [resolvable:$true] %s213
          %216 = dma.hbm_to_vmem [thread:$0]  %s211, 128, %s214, %s202
        $region32: #{tpu_custom_call.1} parent=27 // pred_fallthru
          _
      $region28: #{tpu_custom_call.1} parent=5 // pred_fallthru
        _
      %p217 = scmp.le.s32.totalorder 1, %s19
      %p218 = scmp.lt.s32.totalorder %s19, 17
      %p219 = pnand %p217, %p218
      %p220 = pneg %p219
      // Predicated region
      $region33: #{tpu_custom_call.1} parent=5 // pred_check
        _
      $region34: #{tpu_custom_call.1} parent=5 // pred_check_branch
        %222 = sbr.rel (%p219) target = $region36
      $region35: #{tpu_custom_call.1} parent=5 // pred_region
        %s223 = ssub.s32 %s19, 1
        %s224 = sand.u32 %s44, 1
        %s225 = scalar_lea.sflag [#allocation4], %s224
        %s226 = sand.u32 %s44, 1
        %s227 = smul.addr %s226, 8
        %s228 = scalar_lea.vmem [#allocation3], %s227
        // Predicated region
        $region37: #{tpu_custom_call.1} parent=35 // pred_check
          %p229 = pneg %p57
        $region38: #{tpu_custom_call.1} parent=35 // pred_check_branch
          %231 = sbr.rel (%p229) target = $region40
        $region39: #{tpu_custom_call.1} parent=35 // pred_region
          %232 = dma.done %s225, 128
        $region40: #{tpu_custom_call.1} parent=35 // pred_fallthru
          _
        // Predicated region
        $region41: #{tpu_custom_call.1} parent=35 // pred_check
          %p233 = pneg %p78
        $region42: #{tpu_custom_call.1} parent=35 // pred_check_branch
          %235 = sbr.rel (%p233) target = $region44
        $region43: #{tpu_custom_call.1} parent=35 // pred_region
          %236 = dma.done [#allocation9], 512
        $region44: #{tpu_custom_call.1} parent=35 // pred_fallthru
          _
        // Predicated region
        $region45: #{tpu_custom_call.1} parent=35 // pred_check
          %p237 = pneg %p99
        $region46: #{tpu_custom_call.1} parent=35 // pred_check_branch
          %239 = sbr.rel (%p237) target = $region48
        $region47: #{tpu_custom_call.1} parent=35 // pred_region
          %240 = dma.done [#allocation6], 144
        $region48: #{tpu_custom_call.1} parent=35 // pred_fallthru
          _
        // Predicated region
        $region49: #{tpu_custom_call.1} parent=35 // pred_check
          %p241 = pneg %p120
        $region50: #{tpu_custom_call.1} parent=35 // pred_check_branch
          %243 = sbr.rel (%p241) target = $region52
        $region51: #{tpu_custom_call.1} parent=35 // pred_region
          %244 = dma.done [#allocation7], 16
        $region52: #{tpu_custom_call.1} parent=35 // pred_fallthru
          _
        %245 = sfence
        %s246 = sand.u32 %s44, 1
        %s247 = scalar_lea.sflag [#allocation4], %s246
        %s248 = sand.u32 %s44, 1
        %s249 = smul.addr %s248, 8
        %s250 = scalar_lea.vmem [#allocation3], %s249
        %p251 = pneg %p57
        %p252 = pneg %p54
        %p253 = pneg %p78
        %p254 = pneg %p75
        %p255 = pneg %p99
        %p256 = pneg %p96
        %p257 = pneg %p120
        %p258 = pneg %p117
        %p259 = pneg %p146
        %p260 = pneg %p143
        %s261 = sand.u32 %s133, 1
        %s262 = scalar_lea.sflag [#allocation5], %s261
        %s263 = sand.u32 %s133, 1
        %s264 = smul.addr %s263, 8
        %s265 = scalar_lea.vmem [#allocation12], %s264
        %v266 = vld [vmem:[%s228] sm:$0xff]
        %v267 = vld [vmem:[#allocation8] sm:$0xff]
        %v268 = vld [vmem:[#allocation8 + $0x8] sm:$0xff]
        %v269 = vld [vmem:[#allocation8 + $0x10] sm:$0x1]
        %v270 = vld [vmem:[#allocation8 + $0x18] sm:$0x1]
        %v272 = vcombine.high %v266, %v266
        %274 = vrot.lane.b32.xlu0 %v266, 17
        %v275 = vpop.permute.xlu0 %274
        %276 = vrot.lane.b32.xlu0 %v272, 17
        %v277 = vpop.permute.xlu0 %276
        %v278 = vlaneseq
        %v279 = vand.u32 %v278, 127
        %vm280 = vcmp.lt.s32.totalorder %v279, 17
        %v281 = vsel %vm280, %v275, %v277
        %v282 = vsel %vm280, %v277, %v275
        %v283 = vlaneseq
        %v284 = vshrl.u32 %v283, 7
        %v285 = vsub.s32 0, %v284
        %v286 = vrot.slane %v267, %v285
        %v287 = vlaneseq
        %v288 = vshrl.u32 %v287, 7
        %v289 = vsub.s32 0, %v288
        %v290 = vrot.slane %v268, %v289
        %v291 = vmul.f32 %v282, %v286
        %v292 = vmul.f32 %v281, %v290
        %293 = vrot.lane.b32.xlu0 %v266, 16
        %v294 = vpop.permute.xlu0 %293
        %295 = vrot.lane.b32.xlu0 %v272, 16
        %v296 = vpop.permute.xlu0 %295
        %vm297 = vcmp.lt.s32.totalorder %v279, 16
        %v298 = vsel %vm297, %v294, %v296
        %v299 = vsel %vm297, %v296, %v294
        %v300 = vlaneseq
        %v301 = vshrl.u32 %v300, 7
        %v302 = vsub.s32 1, %v301
        %v303 = vrot.slane %v267, %v302
        %v304 = vlaneseq
        %v305 = vshrl.u32 %v304, 7
        %v306 = vsub.s32 1, %v305
        %v307 = vrot.slane %v268, %v306
        %v308 = vmul.f32 %v299, %v303
        %v309 = vmul.f32 %v298, %v307
        %310 = vrot.lane.b32.xlu0 %v266, 15
        %v311 = vpop.permute.xlu0 %310
        %312 = vrot.lane.b32.xlu0 %v272, 15
        %v313 = vpop.permute.xlu0 %312
        %vm314 = vcmp.lt.s32.totalorder %v279, 15
        %v315 = vsel %vm314, %v311, %v313
        %v316 = vsel %vm314, %v313, %v311
        %v317 = vlaneseq
        %v318 = vshrl.u32 %v317, 7
        %v319 = vsub.s32 2, %v318
        %v320 = vrot.slane %v267, %v319
        %v321 = vlaneseq
        %v322 = vshrl.u32 %v321, 7
        %v323 = vsub.s32 2, %v322
        %v324 = vrot.slane %v268, %v323
        %v325 = vmul.f32 %v316, %v320
        %v326 = vmul.f32 %v315, %v324
        %327 = vrot.lane.b32.xlu0 %v266, 1
        %v328 = vpop.permute.xlu0 %327
        %329 = vrot.lane.b32.xlu0 %v272, 1
        %v330 = vpop.permute.xlu0 %329
        %vm331 = vcmp.lt.s32.totalorder %v279, 1
        %v332 = vsel %vm331, %v328, %v330
        %v333 = vsel %vm331, %v330, %v328
        %v334 = vlaneseq
        %v335 = vshrl.u32 %v334, 7
        %v336 = vsub.s32 3, %v335
        %v337 = vrot.slane %v267, %v336
        %v338 = vlaneseq
        %v339 = vshrl.u32 %v338, 7
        %v340 = vsub.s32 3, %v339
        %v341 = vrot.slane %v268, %v340
        %v342 = vmul.f32 %v333, %v337
        %v343 = vmul.f32 %v332, %v341
        %v344 = vlaneseq
        %v345 = vshrl.u32 %v344, 7
        %v346 = vsub.s32 4, %v345
        %v347 = vrot.slane %v267, %v346
        %v348 = vlaneseq
        %v349 = vshrl.u32 %v348, 7
        %v350 = vsub.s32 4, %v349
        %v351 = vrot.slane %v268, %v350
        %v354 = vcombine.low %v347, %v351
        %v356 = vmul.f32 %v266, %v354
        %357 = vrot.lane.b32.xlu0 %v266, 127
        %v358 = vpop.permute.xlu0 %357
        %359 = vrot.lane.b32.xlu0 %v272, 127
        %v360 = vpop.permute.xlu0 %359
        %vm361 = vcmp.lt.s32.totalorder %v279, 127
        %v362 = vsel %vm361, %v358, %v360
        %v363 = vsel %vm361, %v360, %v358
        %v364 = vlaneseq
        %v365 = vshrl.u32 %v364, 7
        %v366 = vsub.s32 5, %v365
        %v367 = vrot.slane %v267, %v366
        %v368 = vlaneseq
        %v369 = vshrl.u32 %v368, 7
        %v370 = vsub.s32 5, %v369
        %v371 = vrot.slane %v268, %v370
        %v372 = vmul.f32 %v362, %v367
        %v373 = vmul.f32 %v363, %v371
        %374 = vrot.lane.b32.xlu0 %v266, 113
        %v375 = vpop.permute.xlu0 %374
        %376 = vrot.lane.b32.xlu0 %v272, 113
        %v377 = vpop.permute.xlu0 %376
        %vm378 = vcmp.lt.s32.totalorder %v279, 113
        %v379 = vsel %vm378, %v375, %v377
        %v380 = vsel %vm378, %v377, %v375
        %v381 = vlaneseq
        %v382 = vshrl.u32 %v381, 7
        %v383 = vsub.s32 6, %v382
        %v384 = vrot.slane %v267, %v383
        %v385 = vlaneseq
        %v386 = vshrl.u32 %v385, 7
        %v387 = vsub.s32 6, %v386
        %v388 = vrot.slane %v268, %v387
        %v389 = vmul.f32 %v379, %v384
        %v390 = vmul.f32 %v380, %v388
        %391 = vrot.lane.b32.xlu0 %v266, 112
        %v392 = vpop.permute.xlu0 %391
        %393 = vrot.lane.b32.xlu0 %v272, 112
        %v394 = vpop.permute.xlu0 %393
        %vm395 = vcmp.lt.s32.totalorder %v279, 112
        %v396 = vsel %vm395, %v392, %v394
        %v397 = vsel %vm395, %v394, %v392
        %v398 = vlaneseq
        %v399 = vshrl.u32 %v398, 7
        %v400 = vsub.s32 7, %v399
        %v401 = vrot.slane %v267, %v400
        %v402 = vlaneseq
        %v403 = vshrl.u32 %v402, 7
        %v404 = vsub.s32 7, %v403
        %v405 = vrot.slane %v268, %v404
        %v406 = vmul.f32 %v396, %v401
        %v407 = vmul.f32 %v397, %v405
        %408 = vrot.lane.b32.xlu0 %v266, 111
        %v409 = vpop.permute.xlu0 %408
        %410 = vrot.lane.b32.xlu0 %v272, 111
        %v411 = vpop.permute.xlu0 %410
        %vm412 = vcmp.lt.s32.totalorder %v279, 111
        %v413 = vsel %vm412, %v409, %v411
        %v414 = vsel %vm412, %v411, %v409
        %v415 = vlaneseq
        %v416 = vshrl.u32 %v415, 7
        %v417 = vsub.s32 0, %v416
        %v418 = vrot.slane %v269, %v417
        %v419 = vlaneseq
        %v420 = vshrl.u32 %v419, 7
        %v421 = vsub.s32 0, %v420
        %v422 = vrot.slane %v270, %v421
        %v423 = vmul.f32 %v413, %v418
        %v424 = vmul.f32 %v414, %v422
        %s425 = smul.u32 %s29, 144
        %s426 = sld [smem:[#allocation11]]
        %v427 = vstv %s426
        %s428 = sld [smem:[#allocation10 + %s425]]
        %v429 = vstv %s428
        %v430 = vmul.f32 %v291, %v429
        %v431 = vmul.f32 %v292, %v429
        %v432 = vadd.f32 %v427, %v430
        %v433 = vadd.f32 %v427, %v431
        %s434 = sadd.s32 %s425, 9
        %s435 = sld [smem:[#allocation10 + %s434]]
        %v436 = vstv %s435
        %v437 = vmul.f32 %v291, %v436
        %v438 = vmul.f32 %v292, %v436
        %v441 = vrot.slane %v437, 1
        %v442 = vrot.slane %v438, 1
        %v445 = vadd.f32 %v432, %v441
        %v446 = vadd.f32 %v433, %v442
        %s447 = sadd.s32 %s425, 18
        %s448 = sld [smem:[#allocation10 + %s447]]
        %v449 = vstv %s448
        %v450 = vmul.f32 %v291, %v449
        %v451 = vmul.f32 %v292, %v449
        %v454 = vrot.slane %v450, 2
        %v455 = vrot.slane %v451, 2
        %v458 = vadd.f32 %v445, %v454
        %v459 = vadd.f32 %v446, %v455
        %s460 = sadd.s32 %s425, 27
        %s461 = sld [smem:[#allocation10 + %s460]]
        %v462 = vstv %s461
        %v463 = vmul.f32 %v291, %v462
        %v464 = vmul.f32 %v292, %v462
        %v467 = vrot.slane %v463, 3
        %v468 = vrot.slane %v464, 3
        %v471 = vadd.f32 %v458, %v467
        %v472 = vadd.f32 %v459, %v468
        %s473 = sadd.s32 %s425, 1
        %s474 = sld [smem:[#allocation10 + %s473]]
        %v475 = vstv %s474
        %v476 = vmul.f32 %v308, %v475
        %v477 = vmul.f32 %v309, %v475
        %v478 = vadd.f32 %v471, %v476
        %v479 = vadd.f32 %v472, %v477
        %s480 = sadd.s32 %s425, 10
        %s481 = sld [smem:[#allocation10 + %s480]]
        %v482 = vstv %s481
        %v483 = vmul.f32 %v308, %v482
        %v484 = vmul.f32 %v309, %v482
        %v487 = vrot.slane %v483, 1
        %v488 = vrot.slane %v484, 1
        %v491 = vadd.f32 %v478, %v487
        %v492 = vadd.f32 %v479, %v488
        %s493 = sadd.s32 %s425, 19
        %s494 = sld [smem:[#allocation10 + %s493]]
        %v495 = vstv %s494
        %v496 = vmul.f32 %v308, %v495
        %v497 = vmul.f32 %v309, %v495
        %v500 = vrot.slane %v496, 2
        %v501 = vrot.slane %v497, 2
        %v504 = vadd.f32 %v491, %v500
        %v505 = vadd.f32 %v492, %v501
        %s506 = sadd.s32 %s425, 28
        %s507 = sld [smem:[#allocation10 + %s506]]
        %v508 = vstv %s507
        %v509 = vmul.f32 %v308, %v508
        %v510 = vmul.f32 %v309, %v508
        %v513 = vrot.slane %v509, 3
        %v514 = vrot.slane %v510, 3
        %v517 = vadd.f32 %v504, %v513
        %v518 = vadd.f32 %v505, %v514
        %s519 = sadd.s32 %s425, 2
        %s520 = sld [smem:[#allocation10 + %s519]]
        %v521 = vstv %s520
        %v522 = vmul.f32 %v325, %v521
        %v523 = vmul.f32 %v326, %v521
        %v524 = vadd.f32 %v517, %v522
        %v525 = vadd.f32 %v518, %v523
        %s526 = sadd.s32 %s425, 11
        %s527 = sld [smem:[#allocation10 + %s526]]
        %v528 = vstv %s527
        %v529 = vmul.f32 %v325, %v528
        %v530 = vmul.f32 %v326, %v528
        %v533 = vrot.slane %v529, 1
        %v534 = vrot.slane %v530, 1
        %v537 = vadd.f32 %v524, %v533
        %v538 = vadd.f32 %v525, %v534
        %s539 = sadd.s32 %s425, 20
        %s540 = sld [smem:[#allocation10 + %s539]]
        %v541 = vstv %s540
        %v542 = vmul.f32 %v325, %v541
        %v543 = vmul.f32 %v326, %v541
        %v546 = vrot.slane %v542, 2
        %v547 = vrot.slane %v543, 2
        %v550 = vadd.f32 %v537, %v546
        %v551 = vadd.f32 %v538, %v547
        %s552 = sadd.s32 %s425, 29
        %s553 = sld [smem:[#allocation10 + %s552]]
        %v554 = vstv %s553
        %v555 = vmul.f32 %v325, %v554
        %v556 = vmul.f32 %v326, %v554
        %v559 = vrot.slane %v555, 3
        %v560 = vrot.slane %v556, 3
        %v563 = vadd.f32 %v550, %v559
        %v564 = vadd.f32 %v551, %v560
        %s565 = sadd.s32 %s425, 3
        %s566 = sld [smem:[#allocation10 + %s565]]
        %v567 = vstv %s566
        %v568 = vmul.f32 %v342, %v567
        %v569 = vmul.f32 %v343, %v567
        %v570 = vadd.f32 %v563, %v568
        %v571 = vadd.f32 %v564, %v569
        %s572 = sadd.s32 %s425, 12
        %s573 = sld [smem:[#allocation10 + %s572]]
        %v574 = vstv %s573
        %v575 = vmul.f32 %v342, %v574
        %v576 = vmul.f32 %v343, %v574
        %v579 = vrot.slane %v575, 1
        %v580 = vrot.slane %v576, 1
        %v583 = vadd.f32 %v570, %v579
        %v584 = vadd.f32 %v571, %v580
        %s585 = sadd.s32 %s425, 21
        %s586 = sld [smem:[#allocation10 + %s585]]
        %v587 = vstv %s586
        %v588 = vmul.f32 %v342, %v587
        %v589 = vmul.f32 %v343, %v587
        %v592 = vrot.slane %v588, 2
        %v593 = vrot.slane %v589, 2
        %v596 = vadd.f32 %v583, %v592
        %v597 = vadd.f32 %v584, %v593
        %s598 = sadd.s32 %s425, 30
        %s599 = sld [smem:[#allocation10 + %s598]]
        %v600 = vstv %s599
        %v601 = vmul.f32 %v342, %v600
        %v602 = vmul.f32 %v343, %v600
        %v605 = vrot.slane %v601, 3
        %v606 = vrot.slane %v602, 3
        %v609 = vadd.f32 %v596, %v605
        %v610 = vadd.f32 %v597, %v606
        %s611 = sadd.s32 %s425, 4
        %s612 = sld [smem:[#allocation10 + %s611]]
        %v613 = vstv %s612
        %v614 = vmul.f32 %v356, %v613
        %v616 = vlaneseq
        %v617 = vshrl.u32 %v616, 7
        %v618 = vsub.s32 0, %v617
        %v619 = vrot.slane %v614, %v618
        %v620 = vlaneseq
        %v621 = vshrl.u32 %v620, 7
        %v622 = vsub.s32 4, %v621
        %v623 = vrot.slane %v614, %v622
        %v626 = vadd.f32 %v609, %v619
        %v627 = vadd.f32 %v610, %v623
        %s628 = sadd.s32 %s425, 13
        %s629 = sld [smem:[#allocation10 + %s628]]
        %v630 = vstv %s629
        %v631 = vmul.f32 %v356, %v630
        %v633 = vlaneseq
        %v634 = vshrl.u32 %v633, 7
        %v635 = vsub.s32 1, %v634
        %v636 = vrot.slane %v631, %v635
        %v637 = vlaneseq
        %v638 = vshrl.u32 %v637, 7
        %v639 = vsub.s32 5, %v638
        %v640 = vrot.slane %v631, %v639
        %v643 = vadd.f32 %v626, %v636
        %v644 = vadd.f32 %v627, %v640
        %s645 = sadd.s32 %s425, 22
        %s646 = sld [smem:[#allocation10 + %s645]]
        %v647 = vstv %s646
        %v648 = vmul.f32 %v356, %v647
        %v650 = vlaneseq
        %v651 = vshrl.u32 %v650, 7
        %v652 = vsub.s32 2, %v651
        %v653 = vrot.slane %v648, %v652
        %v654 = vlaneseq
        %v655 = vshrl.u32 %v654, 7
        %v656 = vsub.s32 6, %v655
        %v657 = vrot.slane %v648, %v656
        %v660 = vadd.f32 %v643, %v653
        %v661 = vadd.f32 %v644, %v657
        %s662 = sadd.s32 %s425, 31
        %s663 = sld [smem:[#allocation10 + %s662]]
        %v664 = vstv %s663
        %v665 = vmul.f32 %v356, %v664
        %v667 = vlaneseq
        %v668 = vshrl.u32 %v667, 7
        %v669 = vsub.s32 3, %v668
        %v670 = vrot.slane %v665, %v669
        %v671 = vlaneseq
        %v672 = vshrl.u32 %v671, 7
        %v673 = vsub.s32 7, %v672
        %v674 = vrot.slane %v665, %v673
        %v677 = vadd.f32 %v660, %v670
        %v678 = vadd.f32 %v661, %v674
        %s679 = sadd.s32 %s425, 5
        %s680 = sld [smem:[#allocation10 + %s679]]
        %v681 = vstv %s680
        %v682 = vmul.f32 %v372, %v681
        %v683 = vmul.f32 %v373, %v681
        %v684 = vadd.f32 %v677, %v682
        %v685 = vadd.f32 %v678, %v683
        %s686 = sadd.s32 %s425, 14
        %s687 = sld [smem:[#allocation10 + %s686]]
        %v688 = vstv %s687
        %v689 = vmul.f32 %v372, %v688
        %v690 = vmul.f32 %v373, %v688
        %v693 = vrot.slane %v689, 1
        %v694 = vrot.slane %v690, 1
        %v697 = vadd.f32 %v684, %v693
        %v698 = vadd.f32 %v685, %v694
        %s699 = sadd.s32 %s425, 23
        %s700 = sld [smem:[#allocation10 + %s699]]
        %v701 = vstv %s700
        %v702 = vmul.f32 %v372, %v701
        %v703 = vmul.f32 %v373, %v701
        %v706 = vrot.slane %v702, 2
        %v707 = vrot.slane %v703, 2
        %v710 = vadd.f32 %v697, %v706
        %v711 = vadd.f32 %v698, %v707
        %s712 = sadd.s32 %s425, 32
        %s713 = sld [smem:[#allocation10 + %s712]]
        %v714 = vstv %s713
        %v715 = vmul.f32 %v372, %v714
        %v716 = vmul.f32 %v373, %v714
        %v719 = vrot.slane %v715, 3
        %v720 = vrot.slane %v716, 3
        %v723 = vadd.f32 %v710, %v719
        %v724 = vadd.f32 %v711, %v720
        %s725 = sadd.s32 %s425, 6
        %s726 = sld [smem:[#allocation10 + %s725]]
        %v727 = vstv %s726
        %v728 = vmul.f32 %v389, %v727
        %v729 = vmul.f32 %v390, %v727
        %v730 = vadd.f32 %v723, %v728
        %v731 = vadd.f32 %v724, %v729
        %s732 = sadd.s32 %s425, 15
        %s733 = sld [smem:[#allocation10 + %s732]]
        %v734 = vstv %s733
        %v735 = vmul.f32 %v389, %v734
        %v736 = vmul.f32 %v390, %v734
        %v739 = vrot.slane %v735, 1
        %v740 = vrot.slane %v736, 1
        %v743 = vadd.f32 %v730, %v739
        %v744 = vadd.f32 %v731, %v740
        %s745 = sadd.s32 %s425, 24
        %s746 = sld [smem:[#allocation10 + %s745]]
        %v747 = vstv %s746
        %v748 = vmul.f32 %v389, %v747
        %v749 = vmul.f32 %v390, %v747
        %v752 = vrot.slane %v748, 2
        %v753 = vrot.slane %v749, 2
        %v756 = vadd.f32 %v743, %v752
        %v757 = vadd.f32 %v744, %v753
        %s758 = sadd.s32 %s425, 33
        %s759 = sld [smem:[#allocation10 + %s758]]
        %v760 = vstv %s759
        %v761 = vmul.f32 %v389, %v760
        %v762 = vmul.f32 %v390, %v760
        %v765 = vrot.slane %v761, 3
        %v766 = vrot.slane %v762, 3
        %v769 = vadd.f32 %v756, %v765
        %v770 = vadd.f32 %v757, %v766
        %s771 = sadd.s32 %s425, 7
        %s772 = sld [smem:[#allocation10 + %s771]]
        %v773 = vstv %s772
        %v774 = vmul.f32 %v406, %v773
        %v775 = vmul.f32 %v407, %v773
        %v776 = vadd.f32 %v769, %v774
        %v777 = vadd.f32 %v770, %v775
        %s778 = sadd.s32 %s425, 16
        %s779 = sld [smem:[#allocation10 + %s778]]
        %v780 = vstv %s779
        %v781 = vmul.f32 %v406, %v780
        %v782 = vmul.f32 %v407, %v780
        %v785 = vrot.slane %v781, 1
        %v786 = vrot.slane %v782, 1
        %v789 = vadd.f32 %v776, %v785
        %v790 = vadd.f32 %v777, %v786
        %s791 = sadd.s32 %s425, 25
        %s792 = sld [smem:[#allocation10 + %s791]]
        %v793 = vstv %s792
        %v794 = vmul.f32 %v406, %v793
        %v795 = vmul.f32 %v407, %v793
        %v798 = vrot.slane %v794, 2
        %v799 = vrot.slane %v795, 2
        %v802 = vadd.f32 %v789, %v798
        %v803 = vadd.f32 %v790, %v799
        %s804 = sadd.s32 %s425, 34
        %s805 = sld [smem:[#allocation10 + %s804]]
        %v806 = vstv %s805
        %v807 = vmul.f32 %v406, %v806
        %v808 = vmul.f32 %v407, %v806
        %v811 = vrot.slane %v807, 3
        %v812 = vrot.slane %v808, 3
        %v815 = vadd.f32 %v802, %v811
        %v816 = vadd.f32 %v803, %v812
        %s817 = sadd.s32 %s425, 8
        %s818 = sld [smem:[#allocation10 + %s817]]
        %v819 = vstv %s818
        %v820 = vmul.f32 %v423, %v819
        %v821 = vmul.f32 %v424, %v819
        %v822 = vadd.f32 %v815, %v820
        %v823 = vadd.f32 %v816, %v821
        %s824 = sadd.s32 %s425, 17
        %s825 = sld [smem:[#allocation10 + %s824]]
        %v826 = vstv %s825
        %v827 = vmul.f32 %v423, %v826
        %v828 = vmul.f32 %v424, %v826
        %v831 = vrot.slane %v827, 1
        %v832 = vrot.slane %v828, 1
        %v835 = vadd.f32 %v822, %v831
        %v836 = vadd.f32 %v823, %v832
        %s837 = sadd.s32 %s425, 26
        %s838 = sld [smem:[#allocation10 + %s837]]
        %v839 = vstv %s838
        %v840 = vmul.f32 %v423, %v839
        %v841 = vmul.f32 %v424, %v839
        %v844 = vrot.slane %v840, 2
        %v845 = vrot.slane %v841, 2
        %v848 = vadd.f32 %v835, %v844
        %v849 = vadd.f32 %v836, %v845
        %s850 = sadd.s32 %s425, 35
        %s851 = sld [smem:[#allocation10 + %s850]]
        %v852 = vstv %s851
        %v853 = vmul.f32 %v423, %v852
        %v854 = vmul.f32 %v424, %v852
        %v857 = vrot.slane %v853, 3
        %v858 = vrot.slane %v854, 3
        %v861 = vadd.f32 %v848, %v857
        %v862 = vadd.f32 %v849, %v858
        %s863 = sld [smem:[#allocation11 + $0x1]]
        %v864 = vstv %s863
        %s865 = sadd.s32 %s425, 36
        %s866 = sld [smem:[#allocation10 + %s865]]
        %v867 = vstv %s866
        %v868 = vmul.f32 %v291, %v867
        %v869 = vmul.f32 %v292, %v867
        %v870 = vadd.f32 %v864, %v868
        %v871 = vadd.f32 %v864, %v869
        %s872 = sadd.s32 %s425, 45
        %s873 = sld [smem:[#allocation10 + %s872]]
        %v874 = vstv %s873
        %v875 = vmul.f32 %v291, %v874
        %v876 = vmul.f32 %v292, %v874
        %v879 = vrot.slane %v875, 1
        %v880 = vrot.slane %v876, 1
        %v883 = vadd.f32 %v870, %v879
        %v884 = vadd.f32 %v871, %v880
        %s885 = sadd.s32 %s425, 54
        %s886 = sld [smem:[#allocation10 + %s885]]
        %v887 = vstv %s886
        %v888 = vmul.f32 %v291, %v887
        %v889 = vmul.f32 %v292, %v887
        %v892 = vrot.slane %v888, 2
        %v893 = vrot.slane %v889, 2
        %v896 = vadd.f32 %v883, %v892
        %v897 = vadd.f32 %v884, %v893
        %s898 = sadd.s32 %s425, 63
        %s899 = sld [smem:[#allocation10 + %s898]]
        %v900 = vstv %s899
        %v901 = vmul.f32 %v291, %v900
        %v902 = vmul.f32 %v292, %v900
        %v905 = vrot.slane %v901, 3
        %v906 = vrot.slane %v902, 3
        %v909 = vadd.f32 %v896, %v905
        %v910 = vadd.f32 %v897, %v906
        %s911 = sadd.s32 %s425, 37
        %s912 = sld [smem:[#allocation10 + %s911]]
        %v913 = vstv %s912
        %v914 = vmul.f32 %v308, %v913
        %v915 = vmul.f32 %v309, %v913
        %v916 = vadd.f32 %v909, %v914
        %v917 = vadd.f32 %v910, %v915
        %s918 = sadd.s32 %s425, 46
        %s919 = sld [smem:[#allocation10 + %s918]]
        %v920 = vstv %s919
        %v921 = vmul.f32 %v308, %v920
        %v922 = vmul.f32 %v309, %v920
        %v925 = vrot.slane %v921, 1
        %v926 = vrot.slane %v922, 1
        %v929 = vadd.f32 %v916, %v925
        %v930 = vadd.f32 %v917, %v926
        %s931 = sadd.s32 %s425, 55
        %s932 = sld [smem:[#allocation10 + %s931]]
        %v933 = vstv %s932
        %v934 = vmul.f32 %v308, %v933
        %v935 = vmul.f32 %v309, %v933
        %v938 = vrot.slane %v934, 2
        %v939 = vrot.slane %v935, 2
        %v942 = vadd.f32 %v929, %v938
        %v943 = vadd.f32 %v930, %v939
        %s944 = sadd.s32 %s425, 64
        %s945 = sld [smem:[#allocation10 + %s944]]
        %v946 = vstv %s945
        %v947 = vmul.f32 %v308, %v946
        %v948 = vmul.f32 %v309, %v946
        %v951 = vrot.slane %v947, 3
        %v952 = vrot.slane %v948, 3
        %v955 = vadd.f32 %v942, %v951
        %v956 = vadd.f32 %v943, %v952
        %s957 = sadd.s32 %s425, 38
        %s958 = sld [smem:[#allocation10 + %s957]]
        %v959 = vstv %s958
        %v960 = vmul.f32 %v325, %v959
        %v961 = vmul.f32 %v326, %v959
        %v962 = vadd.f32 %v955, %v960
        %v963 = vadd.f32 %v956, %v961
        %s964 = sadd.s32 %s425, 47
        %s965 = sld [smem:[#allocation10 + %s964]]
        %v966 = vstv %s965
        %v967 = vmul.f32 %v325, %v966
        %v968 = vmul.f32 %v326, %v966
        %v971 = vrot.slane %v967, 1
        %v972 = vrot.slane %v968, 1
        %v975 = vadd.f32 %v962, %v971
        %v976 = vadd.f32 %v963, %v972
        %s977 = sadd.s32 %s425, 56
        %s978 = sld [smem:[#allocation10 + %s977]]
        %v979 = vstv %s978
        %v980 = vmul.f32 %v325, %v979
        %v981 = vmul.f32 %v326, %v979
        %v984 = vrot.slane %v980, 2
        %v985 = vrot.slane %v981, 2
        %v988 = vadd.f32 %v975, %v984
        %v989 = vadd.f32 %v976, %v985
        %s990 = sadd.s32 %s425, 65
        %s991 = sld [smem:[#allocation10 + %s990]]
        %v992 = vstv %s991
        %v993 = vmul.f32 %v325, %v992
        %v994 = vmul.f32 %v326, %v992
        %v997 = vrot.slane %v993, 3
        %v998 = vrot.slane %v994, 3
        %v1001 = vadd.f32 %v988, %v997
        %v1002 = vadd.f32 %v989, %v998
        %s1003 = sadd.s32 %s425, 39
        %s1004 = sld [smem:[#allocation10 + %s1003]]
        %v1005 = vstv %s1004
        %v1006 = vmul.f32 %v342, %v1005
        %v1007 = vmul.f32 %v343, %v1005
        %v1008 = vadd.f32 %v1001, %v1006
        %v1009 = vadd.f32 %v1002, %v1007
        %s1010 = sadd.s32 %s425, 48
        %s1011 = sld [smem:[#allocation10 + %s1010]]
        %v1012 = vstv %s1011
        %v1013 = vmul.f32 %v342, %v1012
        %v1014 = vmul.f32 %v343, %v1012
        %v1017 = vrot.slane %v1013, 1
        %v1018 = vrot.slane %v1014, 1
        %v1021 = vadd.f32 %v1008, %v1017
        %v1022 = vadd.f32 %v1009, %v1018
        %s1023 = sadd.s32 %s425, 57
        %s1024 = sld [smem:[#allocation10 + %s1023]]
        %v1025 = vstv %s1024
        %v1026 = vmul.f32 %v342, %v1025
        %v1027 = vmul.f32 %v343, %v1025
        %v1030 = vrot.slane %v1026, 2
        %v1031 = vrot.slane %v1027, 2
        %v1034 = vadd.f32 %v1021, %v1030
        %v1035 = vadd.f32 %v1022, %v1031
        %s1036 = sadd.s32 %s425, 66
        %s1037 = sld [smem:[#allocation10 + %s1036]]
        %v1038 = vstv %s1037
        %v1039 = vmul.f32 %v342, %v1038
        %v1040 = vmul.f32 %v343, %v1038
        %v1043 = vrot.slane %v1039, 3
        %v1044 = vrot.slane %v1040, 3
        %v1047 = vadd.f32 %v1034, %v1043
        %v1048 = vadd.f32 %v1035, %v1044
        %s1049 = sadd.s32 %s425, 40
        %s1050 = sld [smem:[#allocation10 + %s1049]]
        %v1051 = vstv %s1050
        %v1052 = vmul.f32 %v356, %v1051
        %v1054 = vlaneseq
        %v1055 = vshrl.u32 %v1054, 7
        %v1056 = vsub.s32 0, %v1055
        %v1057 = vrot.slane %v1052, %v1056
        %v1058 = vlaneseq
        %v1059 = vshrl.u32 %v1058, 7
        %v1060 = vsub.s32 4, %v1059
        %v1061 = vrot.slane %v1052, %v1060
        %v1064 = vadd.f32 %v1047, %v1057
        %v1065 = vadd.f32 %v1048, %v1061
        %s1066 = sadd.s32 %s425, 49
        %s1067 = sld [smem:[#allocation10 + %s1066]]
        %v1068 = vstv %s1067
        %v1069 = vmul.f32 %v356, %v1068
        %v1071 = vlaneseq
        %v1072 = vshrl.u32 %v1071, 7
        %v1073 = vsub.s32 1, %v1072
        %v1074 = vrot.slane %v1069, %v1073
        %v1075 = vlaneseq
        %v1076 = vshrl.u32 %v1075, 7
        %v1077 = vsub.s32 5, %v1076
        %v1078 = vrot.slane %v1069, %v1077
        %v1081 = vadd.f32 %v1064, %v1074
        %v1082 = vadd.f32 %v1065, %v1078
        %s1083 = sadd.s32 %s425, 58
        %s1084 = sld [smem:[#allocation10 + %s1083]]
        %v1085 = vstv %s1084
        %v1086 = vmul.f32 %v356, %v1085
        %v1088 = vlaneseq
        %v1089 = vshrl.u32 %v1088, 7
        %v1090 = vsub.s32 2, %v1089
        %v1091 = vrot.slane %v1086, %v1090
        %v1092 = vlaneseq
        %v1093 = vshrl.u32 %v1092, 7
        %v1094 = vsub.s32 6, %v1093
        %v1095 = vrot.slane %v1086, %v1094
        %v1098 = vadd.f32 %v1081, %v1091
        %v1099 = vadd.f32 %v1082, %v1095
        %s1100 = sadd.s32 %s425, 67
        %s1101 = sld [smem:[#allocation10 + %s1100]]
        %v1102 = vstv %s1101
        %v1103 = vmul.f32 %v356, %v1102
        %v1105 = vlaneseq
        %v1106 = vshrl.u32 %v1105, 7
        %v1107 = vsub.s32 3, %v1106
        %v1108 = vrot.slane %v1103, %v1107
        %v1109 = vlaneseq
        %v1110 = vshrl.u32 %v1109, 7
        %v1111 = vsub.s32 7, %v1110
        %v1112 = vrot.slane %v1103, %v1111
        %v1115 = vadd.f32 %v1098, %v1108
        %v1116 = vadd.f32 %v1099, %v1112
        %s1117 = sadd.s32 %s425, 41
        %s1118 = sld [smem:[#allocation10 + %s1117]]
        %v1119 = vstv %s1118
        %v1120 = vmul.f32 %v372, %v1119
        %v1121 = vmul.f32 %v373, %v1119
        %v1122 = vadd.f32 %v1115, %v1120
        %v1123 = vadd.f32 %v1116, %v1121
        %s1124 = sadd.s32 %s425, 50
        %s1125 = sld [smem:[#allocation10 + %s1124]]
        %v1126 = vstv %s1125
        %v1127 = vmul.f32 %v372, %v1126
        %v1128 = vmul.f32 %v373, %v1126
        %v1131 = vrot.slane %v1127, 1
        %v1132 = vrot.slane %v1128, 1
        %v1135 = vadd.f32 %v1122, %v1131
        %v1136 = vadd.f32 %v1123, %v1132
        %s1137 = sadd.s32 %s425, 59
        %s1138 = sld [smem:[#allocation10 + %s1137]]
        %v1139 = vstv %s1138
        %v1140 = vmul.f32 %v372, %v1139
        %v1141 = vmul.f32 %v373, %v1139
        %v1144 = vrot.slane %v1140, 2
        %v1145 = vrot.slane %v1141, 2
        %v1148 = vadd.f32 %v1135, %v1144
        %v1149 = vadd.f32 %v1136, %v1145
        %s1150 = sadd.s32 %s425, 68
        %s1151 = sld [smem:[#allocation10 + %s1150]]
        %v1152 = vstv %s1151
        %v1153 = vmul.f32 %v372, %v1152
        %v1154 = vmul.f32 %v373, %v1152
        %v1157 = vrot.slane %v1153, 3
        %v1158 = vrot.slane %v1154, 3
        %v1161 = vadd.f32 %v1148, %v1157
        %v1162 = vadd.f32 %v1149, %v1158
        %s1163 = sadd.s32 %s425, 42
        %s1164 = sld [smem:[#allocation10 + %s1163]]
        %v1165 = vstv %s1164
        %v1166 = vmul.f32 %v389, %v1165
        %v1167 = vmul.f32 %v390, %v1165
        %v1168 = vadd.f32 %v1161, %v1166
        %v1169 = vadd.f32 %v1162, %v1167
        %s1170 = sadd.s32 %s425, 51
        %s1171 = sld [smem:[#allocation10 + %s1170]]
        %v1172 = vstv %s1171
        %v1173 = vmul.f32 %v389, %v1172
        %v1174 = vmul.f32 %v390, %v1172
        %v1177 = vrot.slane %v1173, 1
        %v1178 = vrot.slane %v1174, 1
        %v1181 = vadd.f32 %v1168, %v1177
        %v1182 = vadd.f32 %v1169, %v1178
        %s1183 = sadd.s32 %s425, 60
        %s1184 = sld [smem:[#allocation10 + %s1183]]
        %v1185 = vstv %s1184
        %v1186 = vmul.f32 %v389, %v1185
        %v1187 = vmul.f32 %v390, %v1185
        %v1190 = vrot.slane %v1186, 2
        %v1191 = vrot.slane %v1187, 2
        %v1194 = vadd.f32 %v1181, %v1190
        %v1195 = vadd.f32 %v1182, %v1191
        %s1196 = sadd.s32 %s425, 69
        %s1197 = sld [smem:[#allocation10 + %s1196]]
        %v1198 = vstv %s1197
        %v1199 = vmul.f32 %v389, %v1198
        %v1200 = vmul.f32 %v390, %v1198
        %v1203 = vrot.slane %v1199, 3
        %v1204 = vrot.slane %v1200, 3
        %v1207 = vadd.f32 %v1194, %v1203
        %v1208 = vadd.f32 %v1195, %v1204
        %s1209 = sadd.s32 %s425, 43
        %s1210 = sld [smem:[#allocation10 + %s1209]]
        %v1211 = vstv %s1210
        %v1212 = vmul.f32 %v406, %v1211
        %v1213 = vmul.f32 %v407, %v1211
        %v1214 = vadd.f32 %v1207, %v1212
        %v1215 = vadd.f32 %v1208, %v1213
        %s1216 = sadd.s32 %s425, 52
        %s1217 = sld [smem:[#allocation10 + %s1216]]
        %v1218 = vstv %s1217
        %v1219 = vmul.f32 %v406, %v1218
        %v1220 = vmul.f32 %v407, %v1218
        %v1223 = vrot.slane %v1219, 1
        %v1224 = vrot.slane %v1220, 1
        %v1227 = vadd.f32 %v1214, %v1223
        %v1228 = vadd.f32 %v1215, %v1224
        %s1229 = sadd.s32 %s425, 61
        %s1230 = sld [smem:[#allocation10 + %s1229]]
        %v1231 = vstv %s1230
        %v1232 = vmul.f32 %v406, %v1231
        %v1233 = vmul.f32 %v407, %v1231
        %v1236 = vrot.slane %v1232, 2
        %v1237 = vrot.slane %v1233, 2
        %v1240 = vadd.f32 %v1227, %v1236
        %v1241 = vadd.f32 %v1228, %v1237
        %s1242 = sadd.s32 %s425, 70
        %s1243 = sld [smem:[#allocation10 + %s1242]]
        %v1244 = vstv %s1243
        %v1245 = vmul.f32 %v406, %v1244
        %v1246 = vmul.f32 %v407, %v1244
        %v1249 = vrot.slane %v1245, 3
        %v1250 = vrot.slane %v1246, 3
        %v1253 = vadd.f32 %v1240, %v1249
        %v1254 = vadd.f32 %v1241, %v1250
        %s1255 = sadd.s32 %s425, 44
        %s1256 = sld [smem:[#allocation10 + %s1255]]
        %v1257 = vstv %s1256
        %v1258 = vmul.f32 %v423, %v1257
        %v1259 = vmul.f32 %v424, %v1257
        %v1260 = vadd.f32 %v1253, %v1258
        %v1261 = vadd.f32 %v1254, %v1259
        %s1262 = sadd.s32 %s425, 53
        %s1263 = sld [smem:[#allocation10 + %s1262]]
        %v1264 = vstv %s1263
        %v1265 = vmul.f32 %v423, %v1264
        %v1266 = vmul.f32 %v424, %v1264
        %v1269 = vrot.slane %v1265, 1
        %v1270 = vrot.slane %v1266, 1
        %v1273 = vadd.f32 %v1260, %v1269
        %v1274 = vadd.f32 %v1261, %v1270
        %s1275 = sadd.s32 %s425, 62
        %s1276 = sld [smem:[#allocation10 + %s1275]]
        %v1277 = vstv %s1276
        %v1278 = vmul.f32 %v423, %v1277
        %v1279 = vmul.f32 %v424, %v1277
        %v1282 = vrot.slane %v1278, 2
        %v1283 = vrot.slane %v1279, 2
        %v1286 = vadd.f32 %v1273, %v1282
        %v1287 = vadd.f32 %v1274, %v1283
        %s1288 = sadd.s32 %s425, 71
        %s1289 = sld [smem:[#allocation10 + %s1288]]
        %v1290 = vstv %s1289
        %v1291 = vmul.f32 %v423, %v1290
        %v1292 = vmul.f32 %v424, %v1290
        %v1295 = vrot.slane %v1291, 3
        %v1296 = vrot.slane %v1292, 3
        %v1299 = vadd.f32 %v1286, %v1295
        %v1300 = vadd.f32 %v1287, %v1296
        %s1301 = sld [smem:[#allocation11 + $0x2]]
        %v1302 = vstv %s1301
        %s1303 = sadd.s32 %s425, 72
        %s1304 = sld [smem:[#allocation10 + %s1303]]
        %v1305 = vstv %s1304
        %v1306 = vmul.f32 %v291, %v1305
        %v1307 = vmul.f32 %v292, %v1305
        %v1308 = vadd.f32 %v1302, %v1306
        %v1309 = vadd.f32 %v1302, %v1307
        %s1310 = sadd.s32 %s425, 81
        %s1311 = sld [smem:[#allocation10 + %s1310]]
        %v1312 = vstv %s1311
        %v1313 = vmul.f32 %v291, %v1312
        %v1314 = vmul.f32 %v292, %v1312
        %v1317 = vrot.slane %v1313, 1
        %v1318 = vrot.slane %v1314, 1
        %v1321 = vadd.f32 %v1308, %v1317
        %v1322 = vadd.f32 %v1309, %v1318
        %s1323 = sadd.s32 %s425, 90
        %s1324 = sld [smem:[#allocation10 + %s1323]]
        %v1325 = vstv %s1324
        %v1326 = vmul.f32 %v291, %v1325
        %v1327 = vmul.f32 %v292, %v1325
        %v1330 = vrot.slane %v1326, 2
        %v1331 = vrot.slane %v1327, 2
        %v1334 = vadd.f32 %v1321, %v1330
        %v1335 = vadd.f32 %v1322, %v1331
        %s1336 = sadd.s32 %s425, 99
        %s1337 = sld [smem:[#allocation10 + %s1336]]
        %v1338 = vstv %s1337
        %v1339 = vmul.f32 %v291, %v1338
        %v1340 = vmul.f32 %v292, %v1338
        %v1343 = vrot.slane %v1339, 3
        %v1344 = vrot.slane %v1340, 3
        %v1347 = vadd.f32 %v1334, %v1343
        %v1348 = vadd.f32 %v1335, %v1344
        %s1349 = sadd.s32 %s425, 73
        %s1350 = sld [smem:[#allocation10 + %s1349]]
        %v1351 = vstv %s1350
        %v1352 = vmul.f32 %v308, %v1351
        %v1353 = vmul.f32 %v309, %v1351
        %v1354 = vadd.f32 %v1347, %v1352
        %v1355 = vadd.f32 %v1348, %v1353
        %s1356 = sadd.s32 %s425, 82
        %s1357 = sld [smem:[#allocation10 + %s1356]]
        %v1358 = vstv %s1357
        %v1359 = vmul.f32 %v308, %v1358
        %v1360 = vmul.f32 %v309, %v1358
        %v1363 = vrot.slane %v1359, 1
        %v1364 = vrot.slane %v1360, 1
        %v1367 = vadd.f32 %v1354, %v1363
        %v1368 = vadd.f32 %v1355, %v1364
        %s1369 = sadd.s32 %s425, 91
        %s1370 = sld [smem:[#allocation10 + %s1369]]
        %v1371 = vstv %s1370
        %v1372 = vmul.f32 %v308, %v1371
        %v1373 = vmul.f32 %v309, %v1371
        %v1376 = vrot.slane %v1372, 2
        %v1377 = vrot.slane %v1373, 2
        %v1380 = vadd.f32 %v1367, %v1376
        %v1381 = vadd.f32 %v1368, %v1377
        %s1382 = sadd.s32 %s425, 100
        %s1383 = sld [smem:[#allocation10 + %s1382]]
        %v1384 = vstv %s1383
        %v1385 = vmul.f32 %v308, %v1384
        %v1386 = vmul.f32 %v309, %v1384
        %v1389 = vrot.slane %v1385, 3
        %v1390 = vrot.slane %v1386, 3
        %v1393 = vadd.f32 %v1380, %v1389
        %v1394 = vadd.f32 %v1381, %v1390
        %s1395 = sadd.s32 %s425, 74
        %s1396 = sld [smem:[#allocation10 + %s1395]]
        %v1397 = vstv %s1396
        %v1398 = vmul.f32 %v325, %v1397
        %v1399 = vmul.f32 %v326, %v1397
        %v1400 = vadd.f32 %v1393, %v1398
        %v1401 = vadd.f32 %v1394, %v1399
        %s1402 = sadd.s32 %s425, 83
        %s1403 = sld [smem:[#allocation10 + %s1402]]
        %v1404 = vstv %s1403
        %v1405 = vmul.f32 %v325, %v1404
        %v1406 = vmul.f32 %v326, %v1404
        %v1409 = vrot.slane %v1405, 1
        %v1410 = vrot.slane %v1406, 1
        %v1413 = vadd.f32 %v1400, %v1409
        %v1414 = vadd.f32 %v1401, %v1410
        %s1415 = sadd.s32 %s425, 92
        %s1416 = sld [smem:[#allocation10 + %s1415]]
        %v1417 = vstv %s1416
        %v1418 = vmul.f32 %v325, %v1417
        %v1419 = vmul.f32 %v326, %v1417
        %v1422 = vrot.slane %v1418, 2
        %v1423 = vrot.slane %v1419, 2
        %v1426 = vadd.f32 %v1413, %v1422
        %v1427 = vadd.f32 %v1414, %v1423
        %s1428 = sadd.s32 %s425, 101
        %s1429 = sld [smem:[#allocation10 + %s1428]]
        %v1430 = vstv %s1429
        %v1431 = vmul.f32 %v325, %v1430
        %v1432 = vmul.f32 %v326, %v1430
        %v1435 = vrot.slane %v1431, 3
        %v1436 = vrot.slane %v1432, 3
        %v1439 = vadd.f32 %v1426, %v1435
        %v1440 = vadd.f32 %v1427, %v1436
        %s1441 = sadd.s32 %s425, 75
        %s1442 = sld [smem:[#allocation10 + %s1441]]
        %v1443 = vstv %s1442
        %v1444 = vmul.f32 %v342, %v1443
        %v1445 = vmul.f32 %v343, %v1443
        %v1446 = vadd.f32 %v1439, %v1444
        %v1447 = vadd.f32 %v1440, %v1445
        %s1448 = sadd.s32 %s425, 84
        %s1449 = sld [smem:[#allocation10 + %s1448]]
        %v1450 = vstv %s1449
        %v1451 = vmul.f32 %v342, %v1450
        %v1452 = vmul.f32 %v343, %v1450
        %v1455 = vrot.slane %v1451, 1
        %v1456 = vrot.slane %v1452, 1
        %v1459 = vadd.f32 %v1446, %v1455
        %v1460 = vadd.f32 %v1447, %v1456
        %s1461 = sadd.s32 %s425, 93
        %s1462 = sld [smem:[#allocation10 + %s1461]]
        %v1463 = vstv %s1462
        %v1464 = vmul.f32 %v342, %v1463
        %v1465 = vmul.f32 %v343, %v1463
        %v1468 = vrot.slane %v1464, 2
        %v1469 = vrot.slane %v1465, 2
        %v1472 = vadd.f32 %v1459, %v1468
        %v1473 = vadd.f32 %v1460, %v1469
        %s1474 = sadd.s32 %s425, 102
        %s1475 = sld [smem:[#allocation10 + %s1474]]
        %v1476 = vstv %s1475
        %v1477 = vmul.f32 %v342, %v1476
        %v1478 = vmul.f32 %v343, %v1476
        %v1481 = vrot.slane %v1477, 3
        %v1482 = vrot.slane %v1478, 3
        %v1485 = vadd.f32 %v1472, %v1481
        %v1486 = vadd.f32 %v1473, %v1482
        %s1487 = sadd.s32 %s425, 76
        %s1488 = sld [smem:[#allocation10 + %s1487]]
        %v1489 = vstv %s1488
        %v1490 = vmul.f32 %v356, %v1489
        %v1492 = vlaneseq
        %v1493 = vshrl.u32 %v1492, 7
        %v1494 = vsub.s32 0, %v1493
        %v1495 = vrot.slane %v1490, %v1494
        %v1496 = vlaneseq
        %v1497 = vshrl.u32 %v1496, 7
        %v1498 = vsub.s32 4, %v1497
        %v1499 = vrot.slane %v1490, %v1498
        %v1502 = vadd.f32 %v1485, %v1495
        %v1503 = vadd.f32 %v1486, %v1499
        %s1504 = sadd.s32 %s425, 85
        %s1505 = sld [smem:[#allocation10 + %s1504]]
        %v1506 = vstv %s1505
        %v1507 = vmul.f32 %v356, %v1506
        %v1509 = vlaneseq
        %v1510 = vshrl.u32 %v1509, 7
        %v1511 = vsub.s32 1, %v1510
        %v1512 = vrot.slane %v1507, %v1511
        %v1513 = vlaneseq
        %v1514 = vshrl.u32 %v1513, 7
        %v1515 = vsub.s32 5, %v1514
        %v1516 = vrot.slane %v1507, %v1515
        %v1519 = vadd.f32 %v1502, %v1512
        %v1520 = vadd.f32 %v1503, %v1516
        %s1521 = sadd.s32 %s425, 94
        %s1522 = sld [smem:[#allocation10 + %s1521]]
        %v1523 = vstv %s1522
        %v1524 = vmul.f32 %v356, %v1523
        %v1526 = vlaneseq
        %v1527 = vshrl.u32 %v1526, 7
        %v1528 = vsub.s32 2, %v1527
        %v1529 = vrot.slane %v1524, %v1528
        %v1530 = vlaneseq
        %v1531 = vshrl.u32 %v1530, 7
        %v1532 = vsub.s32 6, %v1531
        %v1533 = vrot.slane %v1524, %v1532
        %v1536 = vadd.f32 %v1519, %v1529
        %v1537 = vadd.f32 %v1520, %v1533
        %s1538 = sadd.s32 %s425, 103
        %s1539 = sld [smem:[#allocation10 + %s1538]]
        %v1540 = vstv %s1539
        %v1541 = vmul.f32 %v356, %v1540
        %v1543 = vlaneseq
        %v1544 = vshrl.u32 %v1543, 7
        %v1545 = vsub.s32 3, %v1544
        %v1546 = vrot.slane %v1541, %v1545
        %v1547 = vlaneseq
        %v1548 = vshrl.u32 %v1547, 7
        %v1549 = vsub.s32 7, %v1548
        %v1550 = vrot.slane %v1541, %v1549
        %v1553 = vadd.f32 %v1536, %v1546
        %v1554 = vadd.f32 %v1537, %v1550
        %s1555 = sadd.s32 %s425, 77
        %s1556 = sld [smem:[#allocation10 + %s1555]]
        %v1557 = vstv %s1556
        %v1558 = vmul.f32 %v372, %v1557
        %v1559 = vmul.f32 %v373, %v1557
        %v1560 = vadd.f32 %v1553, %v1558
        %v1561 = vadd.f32 %v1554, %v1559
        %s1562 = sadd.s32 %s425, 86
        %s1563 = sld [smem:[#allocation10 + %s1562]]
        %v1564 = vstv %s1563
        %v1565 = vmul.f32 %v372, %v1564
        %v1566 = vmul.f32 %v373, %v1564
        %v1569 = vrot.slane %v1565, 1
        %v1570 = vrot.slane %v1566, 1
        %v1573 = vadd.f32 %v1560, %v1569
        %v1574 = vadd.f32 %v1561, %v1570
        %s1575 = sadd.s32 %s425, 95
        %s1576 = sld [smem:[#allocation10 + %s1575]]
        %v1577 = vstv %s1576
        %v1578 = vmul.f32 %v372, %v1577
        %v1579 = vmul.f32 %v373, %v1577
        %v1582 = vrot.slane %v1578, 2
        %v1583 = vrot.slane %v1579, 2
        %v1586 = vadd.f32 %v1573, %v1582
        %v1587 = vadd.f32 %v1574, %v1583
        %s1588 = sadd.s32 %s425, 104
        %s1589 = sld [smem:[#allocation10 + %s1588]]
        %v1590 = vstv %s1589
        %v1591 = vmul.f32 %v372, %v1590
        %v1592 = vmul.f32 %v373, %v1590
        %v1595 = vrot.slane %v1591, 3
        %v1596 = vrot.slane %v1592, 3
        %v1599 = vadd.f32 %v1586, %v1595
        %v1600 = vadd.f32 %v1587, %v1596
        %s1601 = sadd.s32 %s425, 78
        %s1602 = sld [smem:[#allocation10 + %s1601]]
        %v1603 = vstv %s1602
        %v1604 = vmul.f32 %v389, %v1603
        %v1605 = vmul.f32 %v390, %v1603
        %v1606 = vadd.f32 %v1599, %v1604
        %v1607 = vadd.f32 %v1600, %v1605
        %s1608 = sadd.s32 %s425, 87
        %s1609 = sld [smem:[#allocation10 + %s1608]]
        %v1610 = vstv %s1609
        %v1611 = vmul.f32 %v389, %v1610
        %v1612 = vmul.f32 %v390, %v1610
        %v1615 = vrot.slane %v1611, 1
        %v1616 = vrot.slane %v1612, 1
        %v1619 = vadd.f32 %v1606, %v1615
        %v1620 = vadd.f32 %v1607, %v1616
        %s1621 = sadd.s32 %s425, 96
        %s1622 = sld [smem:[#allocation10 + %s1621]]
        %v1623 = vstv %s1622
        %v1624 = vmul.f32 %v389, %v1623
        %v1625 = vmul.f32 %v390, %v1623
        %v1628 = vrot.slane %v1624, 2
        %v1629 = vrot.slane %v1625, 2
        %v1632 = vadd.f32 %v1619, %v1628
        %v1633 = vadd.f32 %v1620, %v1629
        %s1634 = sadd.s32 %s425, 105
        %s1635 = sld [smem:[#allocation10 + %s1634]]
        %v1636 = vstv %s1635
        %v1637 = vmul.f32 %v389, %v1636
        %v1638 = vmul.f32 %v390, %v1636
        %v1641 = vrot.slane %v1637, 3
        %v1642 = vrot.slane %v1638, 3
        %v1645 = vadd.f32 %v1632, %v1641
        %v1646 = vadd.f32 %v1633, %v1642
        %s1647 = sadd.s32 %s425, 79
        %s1648 = sld [smem:[#allocation10 + %s1647]]
        %v1649 = vstv %s1648
        %v1650 = vmul.f32 %v406, %v1649
        %v1651 = vmul.f32 %v407, %v1649
        %v1652 = vadd.f32 %v1645, %v1650
        %v1653 = vadd.f32 %v1646, %v1651
        %s1654 = sadd.s32 %s425, 88
        %s1655 = sld [smem:[#allocation10 + %s1654]]
        %v1656 = vstv %s1655
        %v1657 = vmul.f32 %v406, %v1656
        %v1658 = vmul.f32 %v407, %v1656
        %v1661 = vrot.slane %v1657, 1
        %v1662 = vrot.slane %v1658, 1
        %v1665 = vadd.f32 %v1652, %v1661
        %v1666 = vadd.f32 %v1653, %v1662
        %s1667 = sadd.s32 %s425, 97
        %s1668 = sld [smem:[#allocation10 + %s1667]]
        %v1669 = vstv %s1668
        %v1670 = vmul.f32 %v406, %v1669
        %v1671 = vmul.f32 %v407, %v1669
        %v1674 = vrot.slane %v1670, 2
        %v1675 = vrot.slane %v1671, 2
        %v1678 = vadd.f32 %v1665, %v1674
        %v1679 = vadd.f32 %v1666, %v1675
        %s1680 = sadd.s32 %s425, 106
        %s1681 = sld [smem:[#allocation10 + %s1680]]
        %v1682 = vstv %s1681
        %v1683 = vmul.f32 %v406, %v1682
        %v1684 = vmul.f32 %v407, %v1682
        %v1687 = vrot.slane %v1683, 3
        %v1688 = vrot.slane %v1684, 3
        %v1691 = vadd.f32 %v1678, %v1687
        %v1692 = vadd.f32 %v1679, %v1688
        %s1693 = sadd.s32 %s425, 80
        %s1694 = sld [smem:[#allocation10 + %s1693]]
        %v1695 = vstv %s1694
        %v1696 = vmul.f32 %v423, %v1695
        %v1697 = vmul.f32 %v424, %v1695
        %v1698 = vadd.f32 %v1691, %v1696
        %v1699 = vadd.f32 %v1692, %v1697
        %s1700 = sadd.s32 %s425, 89
        %s1701 = sld [smem:[#allocation10 + %s1700]]
        %v1702 = vstv %s1701
        %v1703 = vmul.f32 %v423, %v1702
        %v1704 = vmul.f32 %v424, %v1702
        %v1707 = vrot.slane %v1703, 1
        %v1708 = vrot.slane %v1704, 1
        %v1711 = vadd.f32 %v1698, %v1707
        %v1712 = vadd.f32 %v1699, %v1708
        %s1713 = sadd.s32 %s425, 98
        %s1714 = sld [smem:[#allocation10 + %s1713]]
        %v1715 = vstv %s1714
        %v1716 = vmul.f32 %v423, %v1715
        %v1717 = vmul.f32 %v424, %v1715
        %v1720 = vrot.slane %v1716, 2
        %v1721 = vrot.slane %v1717, 2
        %v1724 = vadd.f32 %v1711, %v1720
        %v1725 = vadd.f32 %v1712, %v1721
        %s1726 = sadd.s32 %s425, 107
        %s1727 = sld [smem:[#allocation10 + %s1726]]
        %v1728 = vstv %s1727
        %v1729 = vmul.f32 %v423, %v1728
        %v1730 = vmul.f32 %v424, %v1728
        %v1733 = vrot.slane %v1729, 3
        %v1734 = vrot.slane %v1730, 3
        %v1737 = vadd.f32 %v1724, %v1733
        %v1738 = vadd.f32 %v1725, %v1734
        %s1739 = sld [smem:[#allocation11 + $0x3]]
        %v1740 = vstv %s1739
        %s1741 = sadd.s32 %s425, 108
        %s1742 = sld [smem:[#allocation10 + %s1741]]
        %v1743 = vstv %s1742
        %v1744 = vmul.f32 %v291, %v1743
        %v1745 = vmul.f32 %v292, %v1743
        %v1746 = vadd.f32 %v1740, %v1744
        %v1747 = vadd.f32 %v1740, %v1745
        %s1748 = sadd.s32 %s425, 117
        %s1749 = sld [smem:[#allocation10 + %s1748]]
        %v1750 = vstv %s1749
        %v1751 = vmul.f32 %v291, %v1750
        %v1752 = vmul.f32 %v292, %v1750
        %v1755 = vrot.slane %v1751, 1
        %v1756 = vrot.slane %v1752, 1
        %v1759 = vadd.f32 %v1746, %v1755
        %v1760 = vadd.f32 %v1747, %v1756
        %s1761 = sadd.s32 %s425, 126
        %s1762 = sld [smem:[#allocation10 + %s1761]]
        %v1763 = vstv %s1762
        %v1764 = vmul.f32 %v291, %v1763
        %v1765 = vmul.f32 %v292, %v1763
        %v1768 = vrot.slane %v1764, 2
        %v1769 = vrot.slane %v1765, 2
        %v1772 = vadd.f32 %v1759, %v1768
        %v1773 = vadd.f32 %v1760, %v1769
        %s1774 = sadd.s32 %s425, 135
        %s1775 = sld [smem:[#allocation10 + %s1774]]
        %v1776 = vstv %s1775
        %v1777 = vmul.f32 %v291, %v1776
        %v1778 = vmul.f32 %v292, %v1776
        %v1781 = vrot.slane %v1777, 3
        %v1782 = vrot.slane %v1778, 3
        %v1785 = vadd.f32 %v1772, %v1781
        %v1786 = vadd.f32 %v1773, %v1782
        %s1787 = sadd.s32 %s425, 109
        %s1788 = sld [smem:[#allocation10 + %s1787]]
        %v1789 = vstv %s1788
        %v1790 = vmul.f32 %v308, %v1789
        %v1791 = vmul.f32 %v309, %v1789
        %v1792 = vadd.f32 %v1785, %v1790
        %v1793 = vadd.f32 %v1786, %v1791
        %s1794 = sadd.s32 %s425, 118
        %s1795 = sld [smem:[#allocation10 + %s1794]]
        %v1796 = vstv %s1795
        %v1797 = vmul.f32 %v308, %v1796
        %v1798 = vmul.f32 %v309, %v1796
        %v1801 = vrot.slane %v1797, 1
        %v1802 = vrot.slane %v1798, 1
        %v1805 = vadd.f32 %v1792, %v1801
        %v1806 = vadd.f32 %v1793, %v1802
        %s1807 = sadd.s32 %s425, 127
        %s1808 = sld [smem:[#allocation10 + %s1807]]
        %v1809 = vstv %s1808
        %v1810 = vmul.f32 %v308, %v1809
        %v1811 = vmul.f32 %v309, %v1809
        %v1814 = vrot.slane %v1810, 2
        %v1815 = vrot.slane %v1811, 2
        %v1818 = vadd.f32 %v1805, %v1814
        %v1819 = vadd.f32 %v1806, %v1815
        %s1820 = sadd.s32 %s425, 136
        %s1821 = sld [smem:[#allocation10 + %s1820]]
        %v1822 = vstv %s1821
        %v1823 = vmul.f32 %v308, %v1822
        %v1824 = vmul.f32 %v309, %v1822
        %v1827 = vrot.slane %v1823, 3
        %v1828 = vrot.slane %v1824, 3
        %v1831 = vadd.f32 %v1818, %v1827
        %v1832 = vadd.f32 %v1819, %v1828
        %s1833 = sadd.s32 %s425, 110
        %s1834 = sld [smem:[#allocation10 + %s1833]]
        %v1835 = vstv %s1834
        %v1836 = vmul.f32 %v325, %v1835
        %v1837 = vmul.f32 %v326, %v1835
        %v1838 = vadd.f32 %v1831, %v1836
        %v1839 = vadd.f32 %v1832, %v1837
        %s1840 = sadd.s32 %s425, 119
        %s1841 = sld [smem:[#allocation10 + %s1840]]
        %v1842 = vstv %s1841
        %v1843 = vmul.f32 %v325, %v1842
        %v1844 = vmul.f32 %v326, %v1842
        %v1847 = vrot.slane %v1843, 1
        %v1848 = vrot.slane %v1844, 1
        %v1851 = vadd.f32 %v1838, %v1847
        %v1852 = vadd.f32 %v1839, %v1848
        %s1853 = sadd.s32 %s425, 128
        %s1854 = sld [smem:[#allocation10 + %s1853]]
        %v1855 = vstv %s1854
        %v1856 = vmul.f32 %v325, %v1855
        %v1857 = vmul.f32 %v326, %v1855
        %v1860 = vrot.slane %v1856, 2
        %v1861 = vrot.slane %v1857, 2
        %v1864 = vadd.f32 %v1851, %v1860
        %v1865 = vadd.f32 %v1852, %v1861
        %s1866 = sadd.s32 %s425, 137
        %s1867 = sld [smem:[#allocation10 + %s1866]]
        %v1868 = vstv %s1867
        %v1869 = vmul.f32 %v325, %v1868
        %v1870 = vmul.f32 %v326, %v1868
        %v1873 = vrot.slane %v1869, 3
        %v1874 = vrot.slane %v1870, 3
        %v1877 = vadd.f32 %v1864, %v1873
        %v1878 = vadd.f32 %v1865, %v1874
        %s1879 = sadd.s32 %s425, 111
        %s1880 = sld [smem:[#allocation10 + %s1879]]
        %v1881 = vstv %s1880
        %v1882 = vmul.f32 %v342, %v1881
        %v1883 = vmul.f32 %v343, %v1881
        %v1884 = vadd.f32 %v1877, %v1882
        %v1885 = vadd.f32 %v1878, %v1883
        %s1886 = sadd.s32 %s425, 120
        %s1887 = sld [smem:[#allocation10 + %s1886]]
        %v1888 = vstv %s1887
        %v1889 = vmul.f32 %v342, %v1888
        %v1890 = vmul.f32 %v343, %v1888
        %v1893 = vrot.slane %v1889, 1
        %v1894 = vrot.slane %v1890, 1
        %v1897 = vadd.f32 %v1884, %v1893
        %v1898 = vadd.f32 %v1885, %v1894
        %s1899 = sadd.s32 %s425, 129
        %s1900 = sld [smem:[#allocation10 + %s1899]]
        %v1901 = vstv %s1900
        %v1902 = vmul.f32 %v342, %v1901
        %v1903 = vmul.f32 %v343, %v1901
        %v1906 = vrot.slane %v1902, 2
        %v1907 = vrot.slane %v1903, 2
        %v1910 = vadd.f32 %v1897, %v1906
        %v1911 = vadd.f32 %v1898, %v1907
        %s1912 = sadd.s32 %s425, 138
        %s1913 = sld [smem:[#allocation10 + %s1912]]
        %v1914 = vstv %s1913
        %v1915 = vmul.f32 %v342, %v1914
        %v1916 = vmul.f32 %v343, %v1914
        %v1919 = vrot.slane %v1915, 3
        %v1920 = vrot.slane %v1916, 3
        %v1923 = vadd.f32 %v1910, %v1919
        %v1924 = vadd.f32 %v1911, %v1920
        %s1925 = sadd.s32 %s425, 112
        %s1926 = sld [smem:[#allocation10 + %s1925]]
        %v1927 = vstv %s1926
        %v1928 = vmul.f32 %v356, %v1927
        %v1930 = vlaneseq
        %v1931 = vshrl.u32 %v1930, 7
        %v1932 = vsub.s32 0, %v1931
        %v1933 = vrot.slane %v1928, %v1932
        %v1934 = vlaneseq
        %v1935 = vshrl.u32 %v1934, 7
        %v1936 = vsub.s32 4, %v1935
        %v1937 = vrot.slane %v1928, %v1936
        %v1940 = vadd.f32 %v1923, %v1933
        %v1941 = vadd.f32 %v1924, %v1937
        %s1942 = sadd.s32 %s425, 121
        %s1943 = sld [smem:[#allocation10 + %s1942]]
        %v1944 = vstv %s1943
        %v1945 = vmul.f32 %v356, %v1944
        %v1947 = vlaneseq
        %v1948 = vshrl.u32 %v1947, 7
        %v1949 = vsub.s32 1, %v1948
        %v1950 = vrot.slane %v1945, %v1949
        %v1951 = vlaneseq
        %v1952 = vshrl.u32 %v1951, 7
        %v1953 = vsub.s32 5, %v1952
        %v1954 = vrot.slane %v1945, %v1953
        %v1957 = vadd.f32 %v1940, %v1950
        %v1958 = vadd.f32 %v1941, %v1954
        %s1959 = sadd.s32 %s425, 130
        %s1960 = sld [smem:[#allocation10 + %s1959]]
        %v1961 = vstv %s1960
        %v1962 = vmul.f32 %v356, %v1961
        %v1964 = vlaneseq
        %v1965 = vshrl.u32 %v1964, 7
        %v1966 = vsub.s32 2, %v1965
        %v1967 = vrot.slane %v1962, %v1966
        %v1968 = vlaneseq
        %v1969 = vshrl.u32 %v1968, 7
        %v1970 = vsub.s32 6, %v1969
        %v1971 = vrot.slane %v1962, %v1970
        %v1974 = vadd.f32 %v1957, %v1967
        %v1975 = vadd.f32 %v1958, %v1971
        %s1976 = sadd.s32 %s425, 139
        %s1977 = sld [smem:[#allocation10 + %s1976]]
        %v1978 = vstv %s1977
        %v1979 = vmul.f32 %v356, %v1978
        %v1981 = vlaneseq
        %v1982 = vshrl.u32 %v1981, 7
        %v1983 = vsub.s32 3, %v1982
        %v1984 = vrot.slane %v1979, %v1983
        %v1985 = vlaneseq
        %v1986 = vshrl.u32 %v1985, 7
        %v1987 = vsub.s32 7, %v1986
        %v1988 = vrot.slane %v1979, %v1987
        %v1991 = vadd.f32 %v1974, %v1984
        %v1992 = vadd.f32 %v1975, %v1988
        %s1993 = sadd.s32 %s425, 113
        %s1994 = sld [smem:[#allocation10 + %s1993]]
        %v1995 = vstv %s1994
        %v1996 = vmul.f32 %v372, %v1995
        %v1997 = vmul.f32 %v373, %v1995
        %v1998 = vadd.f32 %v1991, %v1996
        %v1999 = vadd.f32 %v1992, %v1997
        %s2000 = sadd.s32 %s425, 122
        %s2001 = sld [smem:[#allocation10 + %s2000]]
        %v2002 = vstv %s2001
        %v2003 = vmul.f32 %v372, %v2002
        %v2004 = vmul.f32 %v373, %v2002
        %v2007 = vrot.slane %v2003, 1
        %v2008 = vrot.slane %v2004, 1
        %v2011 = vadd.f32 %v1998, %v2007
        %v2012 = vadd.f32 %v1999, %v2008
        %s2013 = sadd.s32 %s425, 131
        %s2014 = sld [smem:[#allocation10 + %s2013]]
        %v2015 = vstv %s2014
        %v2016 = vmul.f32 %v372, %v2015
        %v2017 = vmul.f32 %v373, %v2015
        %v2020 = vrot.slane %v2016, 2
        %v2021 = vrot.slane %v2017, 2
        %v2024 = vadd.f32 %v2011, %v2020
        %v2025 = vadd.f32 %v2012, %v2021
        %s2026 = sadd.s32 %s425, 140
        %s2027 = sld [smem:[#allocation10 + %s2026]]
        %v2028 = vstv %s2027
        %v2029 = vmul.f32 %v372, %v2028
        %v2030 = vmul.f32 %v373, %v2028
        %v2033 = vrot.slane %v2029, 3
        %v2034 = vrot.slane %v2030, 3
        %v2037 = vadd.f32 %v2024, %v2033
        %v2038 = vadd.f32 %v2025, %v2034
        %s2039 = sadd.s32 %s425, 114
        %s2040 = sld [smem:[#allocation10 + %s2039]]
        %v2041 = vstv %s2040
        %v2042 = vmul.f32 %v389, %v2041
        %v2043 = vmul.f32 %v390, %v2041
        %v2044 = vadd.f32 %v2037, %v2042
        %v2045 = vadd.f32 %v2038, %v2043
        %s2046 = sadd.s32 %s425, 123
        %s2047 = sld [smem:[#allocation10 + %s2046]]
        %v2048 = vstv %s2047
        %v2049 = vmul.f32 %v389, %v2048
        %v2050 = vmul.f32 %v390, %v2048
        %v2053 = vrot.slane %v2049, 1
        %v2054 = vrot.slane %v2050, 1
        %v2057 = vadd.f32 %v2044, %v2053
        %v2058 = vadd.f32 %v2045, %v2054
        %s2059 = sadd.s32 %s425, 132
        %s2060 = sld [smem:[#allocation10 + %s2059]]
        %v2061 = vstv %s2060
        %v2062 = vmul.f32 %v389, %v2061
        %v2063 = vmul.f32 %v390, %v2061
        %v2066 = vrot.slane %v2062, 2
        %v2067 = vrot.slane %v2063, 2
        %v2070 = vadd.f32 %v2057, %v2066
        %v2071 = vadd.f32 %v2058, %v2067
        %s2072 = sadd.s32 %s425, 141
        %s2073 = sld [smem:[#allocation10 + %s2072]]
        %v2074 = vstv %s2073
        %v2075 = vmul.f32 %v389, %v2074
        %v2076 = vmul.f32 %v390, %v2074
        %v2079 = vrot.slane %v2075, 3
        %v2080 = vrot.slane %v2076, 3
        %v2083 = vadd.f32 %v2070, %v2079
        %v2084 = vadd.f32 %v2071, %v2080
        %s2085 = sadd.s32 %s425, 115
        %s2086 = sld [smem:[#allocation10 + %s2085]]
        %v2087 = vstv %s2086
        %v2088 = vmul.f32 %v406, %v2087
        %v2089 = vmul.f32 %v407, %v2087
        %v2090 = vadd.f32 %v2083, %v2088
        %v2091 = vadd.f32 %v2084, %v2089
        %s2092 = sadd.s32 %s425, 124
        %s2093 = sld [smem:[#allocation10 + %s2092]]
        %v2094 = vstv %s2093
        %v2095 = vmul.f32 %v406, %v2094
        %v2096 = vmul.f32 %v407, %v2094
        %v2099 = vrot.slane %v2095, 1
        %v2100 = vrot.slane %v2096, 1
        %v2103 = vadd.f32 %v2090, %v2099
        %v2104 = vadd.f32 %v2091, %v2100
        %s2105 = sadd.s32 %s425, 133
        %s2106 = sld [smem:[#allocation10 + %s2105]]
        %v2107 = vstv %s2106
        %v2108 = vmul.f32 %v406, %v2107
        %v2109 = vmul.f32 %v407, %v2107
        %v2112 = vrot.slane %v2108, 2
        %v2113 = vrot.slane %v2109, 2
        %v2116 = vadd.f32 %v2103, %v2112
        %v2117 = vadd.f32 %v2104, %v2113
        %s2118 = sadd.s32 %s425, 142
        %s2119 = sld [smem:[#allocation10 + %s2118]]
        %v2120 = vstv %s2119
        %v2121 = vmul.f32 %v406, %v2120
        %v2122 = vmul.f32 %v407, %v2120
        %v2125 = vrot.slane %v2121, 3
        %v2126 = vrot.slane %v2122, 3
        %v2129 = vadd.f32 %v2116, %v2125
        %v2130 = vadd.f32 %v2117, %v2126
        %s2131 = sadd.s32 %s425, 116
        %s2132 = sld [smem:[#allocation10 + %s2131]]
        %v2133 = vstv %s2132
        %v2134 = vmul.f32 %v423, %v2133
        %v2135 = vmul.f32 %v424, %v2133
        %v2136 = vadd.f32 %v2129, %v2134
        %v2137 = vadd.f32 %v2130, %v2135
        %s2138 = sadd.s32 %s425, 125
        %s2139 = sld [smem:[#allocation10 + %s2138]]
        %v2140 = vstv %s2139
        %v2141 = vmul.f32 %v423, %v2140
        %v2142 = vmul.f32 %v424, %v2140
        %v2145 = vrot.slane %v2141, 1
        %v2146 = vrot.slane %v2142, 1
        %v2149 = vadd.f32 %v2136, %v2145
        %v2150 = vadd.f32 %v2137, %v2146
        %s2151 = sadd.s32 %s425, 134
        %s2152 = sld [smem:[#allocation10 + %s2151]]
        %v2153 = vstv %s2152
        %v2154 = vmul.f32 %v423, %v2153
        %v2155 = vmul.f32 %v424, %v2153
        %v2158 = vrot.slane %v2154, 2
        %v2159 = vrot.slane %v2155, 2
        %v2162 = vadd.f32 %v2149, %v2158
        %v2163 = vadd.f32 %v2150, %v2159
        %s2164 = sadd.s32 %s425, 143
        %s2165 = sld [smem:[#allocation10 + %s2164]]
        %v2166 = vstv %s2165
        %v2167 = vmul.f32 %v423, %v2166
        %v2168 = vmul.f32 %v424, %v2166
        %v2171 = vrot.slane %v2167, 3
        %v2172 = vrot.slane %v2168, 3
        %v2175 = vadd.f32 %v2162, %v2171
        %v2176 = vadd.f32 %v2163, %v2172
        %v2179 = vrot.slane %v1299, 7
        %v2180 = vrot.slane %v1300, 7
        %v2185 = vrot.slane %v1737, 6
        %v2186 = vrot.slane %v1738, 6
        %v2191 = vrot.slane %v2175, 5
        %v2192 = vrot.slane %v2176, 5
        %vm2195 = vcmask 1040384
        %v2196 = vsel %vm2195, %v861, %v2179
        %v2197 = vsel %vm2195, %v862, %v2180
        %vm2198 = vcmask 1041408
        %v2199 = vsel %vm2198, %v2196, %v2185
        %v2200 = vsel %vm2198, %v2197, %v2186
        %vm2201 = vcmask 1042432
        %v2202 = vsel %vm2201, %v2199, %v2191
        %v2203 = vsel %vm2201, %v2200, %v2192
        %p2204 = scmp.eq.s32.totalorder %s29, 0
        // Predicated region
        $region53: #{tpu_custom_call.1} parent=35 // pred_check
          %p2205 = pneg %p2204
        $region54: #{tpu_custom_call.1} parent=35 // pred_check_branch
          %2207 = sbr.rel (%p2205) target = $region56
        $region55: #{tpu_custom_call.1} parent=35 // pred_region
          %2208 = vst [vmem:[#allocation2] sm:$0xff] 0.0
        $region56: #{tpu_custom_call.1} parent=35 // pred_fallthru
          _
        %v2209 = vld [vmem:[#allocation2] sm:$0xff]
        %v2212 = vcombine.low %v2202, %v2203
        %v2214 = vadd.f32 %v2209, %v2212
        %2215 = vst [vmem:[#allocation2] sm:$0xff] %v2214
        %p2216 = scmp.eq.s32.totalorder %s29, 7
        // Predicated region
        $region57: #{tpu_custom_call.1} parent=35 // pred_check
          %p2217 = pneg %p2216
        $region58: #{tpu_custom_call.1} parent=35 // pred_check_branch
          %2219 = sbr.rel (%p2217) target = $region60
        $region59: #{tpu_custom_call.1} parent=35 // pred_region
          %v2220 = vld [vmem:[#allocation2] sm:$0xff]
          %v2221 = vmul.f32 %v2220, 0.125
          %2222 = vst [vmem:[%s265] sm:$0xff] %v2221
        $region60: #{tpu_custom_call.1} parent=35 // pred_fallthru
          _
        %s2223 = sand.u32 %s133, 1
        %s2224 = scalar_lea.sflag [#allocation5], %s2223
        %s2225 = sand.u32 %s133, 1
        %s2226 = smul.addr %s2225, 8
        %s2227 = scalar_lea.vmem [#allocation12], %s2226
        // Predicated region
        $region61: #{tpu_custom_call.1} parent=35 // pred_check
          %p2228 = pneg %p143
        $region62: #{tpu_custom_call.1} parent=35 // pred_check_branch
          %2230 = sbr.rel (%p2228) target = $region64
        $region63: #{tpu_custom_call.1} parent=35 // pred_region
          %s2232 = ssub.s32 128, 128
          %2233 = vsyncadd %s2224, %s2232
          %s2234 = smul.addr %s28, 2
          %s2235 = smul.addr %s2234, 64
          %s2236 = scalar_lea.hbm %s4, %s2235
          %s2238 = sshll.u32 %s2227, 4
          %s2239 = int_to_ptr.vmem [resolvable:$true] %s2238
          %2241 = dma.vmem_to_hbm [thread:$0]  %s2239, 128, %s2236, %s2224
        $region64: #{tpu_custom_call.1} parent=35 // pred_fallthru
          _
      $region36: #{tpu_custom_call.1} parent=5 // pred_fallthru
        _
      %p2242 = scmp.le.s32.totalorder 2, %s19
      // Predicated region
      $region65: #{tpu_custom_call.1} parent=5 // pred_check
        %p2243 = pneg %p2242
      $region66: #{tpu_custom_call.1} parent=5 // pred_check_branch
        %2245 = sbr.rel (%p2243) target = $region68
      $region67: #{tpu_custom_call.1} parent=5 // pred_region
        %s2246 = ssub.s32 %s19, 2
        // Predicated region
        $region69: #{tpu_custom_call.1} parent=67 // pred_check
          %p2247 = pneg %p149
        $region70: #{tpu_custom_call.1} parent=67 // pred_check_branch
          %2249 = sbr.rel (%p2247) target = $region72
        $region71: #{tpu_custom_call.1} parent=67 // pred_region
          %s2250 = sand.u32 %s134, 1
          %s2251 = scalar_lea.sflag [#allocation5], %s2250
          %s2252 = sand.u32 %s134, 1
          %s2253 = smul.addr %s2252, 8
          %s2254 = scalar_lea.vmem [#allocation12], %s2253
          %2255 = dma.done %s2251, 128
        $region72: #{tpu_custom_call.1} parent=67 // pred_fallthru
          _
      $region68: #{tpu_custom_call.1} parent=5 // pred_fallthru
        _
    $region6: #{tpu_custom_call.1} parent=1 // loop_footer
      %s23 = sadd.s32 1, %s19
    $region7: #{tpu_custom_call.1} parent=1 // loop_footer_branch
      %18 = sbr.rel target = $region3
    $region8: #{tpu_custom_call.1} parent=1 // loop_exit
      _
    %2256 = vsyncpa [#allocation4], 1
    %s2257 = scalar_lea.sflag [#allocation4], 1
    %2258 = vsyncpa %s2257, 1
    %2259 = vsyncpa [#allocation9], 1
    %2260 = vsyncpa [#allocation5], 1
    %s2261 = scalar_lea.sflag [#allocation5], 1
    %2262 = vsyncpa %s2261, 1
    %2263 = vsyncpa [#allocation6], 1
    %s2264 = scalar_lea.sflag [#allocation6], 1
    %2265 = vsyncpa %s2264, 1
    %2266 = vsyncpa [#allocation7], 1
    %s2267 = scalar_lea.sflag [#allocation7], 1
    %2268 = vsyncpa %s2267, 1

</llo_original>
